<compile_context>
chip_gen: v6e
topology: v6e:2x2x1
jax: 0.10.0
libtpu: 0.0.40
codegen_flags: <defaults>
</compile_context>

<pallas_src>
import jax
import jax.numpy as jnp
from jax.experimental import pallas as pl
from jax.experimental.pallas import tpu as pltpu

# Small synthetic shapes consistent with the forward pass.
B, C, T, H, W = 8, 3, 4, 16, 16
DIN = C * T * H * W            # 3072 (K of the feature matmul)
FEAT = 128                     # synthetic lane-dense feature dim (real I3D: 400 -> pad 512)
NS_ITERS = 20                  # Newton-Schulz iterations per matrix square root

VMEM = pltpu.MemorySpace.VMEM


# ---------------------------------------------------------------------------
# Kernel 1 (fused, no grid): synthetic I3D feature extractor for BOTH streams
# in one bf16 MXU matmul + per-stream batch mean & covariance.
# ---------------------------------------------------------------------------
def _feat_stats_kernel(x_ref, w_ref, b_ref, mu_ref, sigma_ref):
    # TODO(synk): the real detector is a pretrained TorchScript I3D network
    # (rescale/resize/return_features); replaced by a deterministic linear
    # projection implemented in Pallas -- no checkpoint loading.
    # bf16 operands, f32 accumulation on the MXU; M=16 fills the bf16 sublane
    # tile for both streams at once.  (The bias cancels exactly in the final
    # loss but is kept for detector-feature fidelity; it is one VPU add.)
    feats = (
        jnp.dot(x_ref[...], w_ref[...], preferred_element_type=jnp.float32)
        + b_ref[...]
    )                                                    # (2B, F) f32
    nb = x_ref.shape[0] // 2                             # rows per stream (static)
    mus = []
    for s in range(2):                                   # static slices: [0:B], [B:2B]
        f = feats[s * nb:(s + 1) * nb, :]
        mu = jnp.mean(f, axis=0, keepdims=True)          # (1, F)
        xc = f - mu                                      # (nb, F)
        sigma = jax.lax.dot_general(                     # xc^T @ xc on the MXU, f32
            xc, xc, (((0,), (0,)), ((), ())),
            preferred_element_type=jnp.float32,
        ) / jnp.float32(nb - 1)                          # np.cov, ddof=1
        sigma_ref[s, :, :] = sigma
        mus.append(mu)
    mu_ref[...] = jnp.concatenate(mus, axis=0)           # (2, F), one lane-dense store


def feature_stats(videos_fake, targets, w, b):
    """Returns mu: (2, FEAT) f32 and sigma: (2, FEAT, FEAT) f32 for [fake, real]."""
    # Single concatenate + cast: both streams share one (2B, DIN) bf16 LHS.
    # TODO(synk): at real I3D input sizes the upstream producer should emit bf16
    # directly; this wrapper cast is an extra HBM pass there (negligible here).
    x = jnp.concatenate(
        [videos_fake.reshape(videos_fake.shape[0], -1),
         targets.reshape(targets.shape[0], -1)],
        axis=0,
    ).astype(jnp.bfloat16)                               # (2B, DIN)
    w16 = w.astype(jnp.bfloat16)

    # NOTE(real I3D path): for I3D-sized DIN, add a K grid axis marked
    # "arbitrary" with a f32 VMEM accumulator (pl.when init/finalize).  Size the
    # K tile so double-buffered bf16 inputs + the Fpad^2 f32 accumulator stay
    # under ~half the scoped VMEM limit: 32 MiB default / 64 MiB physical on
    # v7x vs 128 MiB physical on v5e/v6e, i.e. a v6e-sized tile roughly halves
    # on v7x (or raise vmem_limit_bytes with headroom).  Batch M >= 256 rows per
    # call so the MXU systolic depth is used on v6e/v7x.
    return pl.pallas_call(
        _feat_stats_kernel,
        out_shape=(
            jax.ShapeDtypeStruct((2, FEAT), jnp.float32),
            jax.ShapeDtypeStruct((2, FEAT, FEAT), jnp.float32),
        ),
        in_specs=[
            pl.BlockSpec(memory_space=VMEM),   # x  (2B, DIN) bf16
            pl.BlockSpec(memory_space=VMEM),   # w  (DIN, FEAT) bf16
            pl.BlockSpec(memory_space=VMEM),   # b  (1, FEAT)  f32
        ],
        out_specs=(
            pl.BlockSpec(memory_space=VMEM),
            pl.BlockSpec(memory_space=VMEM),
        ),
    )(x, w16, b)


# ---------------------------------------------------------------------------
# Kernel 2: sqrtm(sqrt(Sg) @ Sr @ sqrt(Sg)) via Newton-Schulz, all in VMEM.
# Same eigenvalues as sqrtm(Sg @ Sr) for PSD Sg, Sr, so its trace is the FVD
# cross term.  Replaces scipy.linalg.sqrtm / jnp.linalg.eigh entirely.
# ---------------------------------------------------------------------------
def _newton_schulz_sqrtm(a, eye, n_iters):
    """Matrix sqrt of a symmetric PSD (F, F) f32 matrix; pure MXU/VPU work."""
    norm2 = jnp.sum(a * a, keepdims=True) + jnp.float32(1e-12)   # (1,1) ||A||_F^2
    y = a * jax.lax.rsqrt(norm2)                                 # eigenvalues in [0, 1]
    z = eye

    def body(_, carry):
        y, z = carry
        t = 0.5 * (3.0 * eye - jnp.dot(z, y, preferred_element_type=jnp.float32))
        return (jnp.dot(y, t, preferred_element_type=jnp.float32),
                jnp.dot(t, z, preferred_element_type=jnp.float32))

    y, _ = jax.lax.fori_loop(0, n_iters, body, (y, z))
    return y * jnp.sqrt(jnp.sqrt(norm2))       # undo Frobenius normalisation


def _trace_sqrtm_kernel(sigma_ref, sqrtm_ref):
    f = sigma_ref.shape[-1]
    row = jax.lax.broadcasted_iota(jnp.int32, (f, f), 0)
    col = jax.lax.broadcasted_iota(jnp.int32, (f, f), 1)
    eye = (row == col).astype(jnp.float32)

    sg = sigma_ref[0]
    sr = sigma_ref[1]
    sg = 0.5 * (sg + sg.T)        # symmetrise (xc^T xc is symmetric up to roundoff)
    sr = 0.5 * (sr + sr.T)

    sqrt_g = _newton_schulz_sqrtm(sg, eye, NS_ITERS)
    m = jnp.dot(
        jnp.dot(sqrt_g, sr, preferred_element_type=jnp.float32),
        sqrt_g,
        preferred_element_type=jnp.float32,
    )
    m = 0.5 * (m + m.T)
    # TODO(synk): on rank-deficient covariances (B << FEAT) this differs from
    # scipy.linalg.sqrtm(...).real at the level of the near-zero eigenvalue
    # noise, exactly like the previous eigh+clip path.
    sqrtm_ref[...] = _newton_schulz_sqrtm(m, eye, NS_ITERS)


def sqrtm_of_product(sigma):
    """sigma: (2, F, F) f32 -> sqrtm(sqrt(Sg) Sr sqrt(Sg)): (F, F) f32."""
    f = sigma.shape[-1]
    return pl.pallas_call(
        _trace_sqrtm_kernel,
        out_shape=jax.ShapeDtypeStruct((f, f), jnp.float32),
        in_specs=[pl.BlockSpec(memory_space=VMEM)],
        out_specs=pl.BlockSpec(memory_space=VMEM),
    )(sigma)


# ---------------------------------------------------------------------------
# Plain-JAX glue: only the tiny scalar epilogue remains outside Pallas.
# ---------------------------------------------------------------------------
@jax.jit
def fvd_loss(videos_fake, targets, w, b):
    mu, sigma = feature_stats(videos_fake, targets, w, b)
    mu_g, mu_r = mu[0], mu[1]
    sigma_g, sigma_r = sigma[0], sigma[1]

    sqrt_m = sqrtm_of_product(sigma)            # (F, F)
    tr_sqrt = jnp.trace(sqrt_m)                 # trace(sqrtm(Sg @ Sr))

    mean_term = jnp.sum(jnp.square(mu_g - mu_r))
    trace_term = jnp.trace(sigma_g) + jnp.trace(sigma_r)
    return mean_term + trace_term - 2.0 * tr_sqrt


if __name__ == "__main__":
    key = jax.random.PRNGKey(0)
    k1, k2, k3, k4 = jax.random.split(key, 4)
    videos_fake = jax.random.normal(k1, (B, C, T, H, W), dtype=jnp.float32)
    targets = jax.random.normal(k2, (B, C, T, H, W), dtype=jnp.float32)
    # Deterministic synthetic detector parameters (shapes from the forward pass).
    w = jax.random.normal(k3, (DIN, FEAT), dtype=jnp.float32) / jnp.sqrt(
        jnp.float32(DIN)
    )
    b = jax.random.normal(k4, (1, FEAT), dtype=jnp.float32) * 0.01

    fid = jax.block_until_ready(fvd_loss(videos_fake, targets, w, b))
    assert jnp.isfinite(fid), "FVD result is not finite"
    print("KERNEL_OK")
</pallas_src>

<mosaic_0001>
module attributes {stable_mosaic.version = 11 : i64} {
  func.func @_feat_stats_kernel(%arg0: memref<16x3072xbf16, #tpu.memory_space<vmem>>, %arg1: memref<3072x128xbf16, #tpu.memory_space<vmem>>, %arg2: memref<1x128xf32, #tpu.memory_space<vmem>>, %arg3: memref<2x128xf32, #tpu.memory_space<vmem>>, %arg4: memref<2x128x128xf32, #tpu.memory_space<vmem>>) attributes {dimension_semantics = [], scalar_prefetch = 0 : i64, scratch_operands = 0 : i64, tpu.core_type = #tpu.core_type<tc>} {
    %c0 = arith.constant 0 : index
    %c0_0 = arith.constant 0 : index
    %0 = vector.load %arg0[%c0, %c0_0] : memref<16x3072xbf16, #tpu.memory_space<vmem>>, vector<16x3072xbf16>
    %c0_1 = arith.constant 0 : index
    %c0_2 = arith.constant 0 : index
    %1 = vector.load %arg1[%c0_1, %c0_2] : memref<3072x128xbf16, #tpu.memory_space<vmem>>, vector<3072x128xbf16>
    %cst = arith.constant dense<0.000000e+00> : vector<16x128xf32>
    %2 = tpu.matmul %0, %1, %cst {dimension_numbers = #tpu.dot_dimension_numbers<[1], [0], [0], [1], [0, 0, 1, 1], [], []>} : vector<16x3072xbf16>, vector<3072x128xbf16>, vector<16x128xf32> -> vector<16x128xf32>
    %c0_3 = arith.constant 0 : index
    %c0_4 = arith.constant 0 : index
    %3 = vector.load %arg2[%c0_3, %c0_4] : memref<1x128xf32, #tpu.memory_space<vmem>>, vector<1x128xf32>
    %4 = vector.broadcast %3 : vector<1x128xf32> to vector<16x128xf32>
    %5 = arith.addf %2, %4 : vector<16x128xf32>
    %6 = vector.extract_strided_slice %5 {offsets = [0, 0], sizes = [8, 128], strides = [1, 1]} : vector<16x128xf32> to vector<8x128xf32>
    %cst_5 = arith.constant dense<0.000000e+00> : vector<128xf32>
    %7 = vector.multi_reduction <add>, %6, %cst_5 [0] : vector<8x128xf32> to vector<128xf32>
    %8 = vector.shape_cast %7 : vector<128xf32> to vector<1x128xf32>
    %cst_6 = arith.constant 8.000000e+00 : f32
    %9 = vector.broadcast %cst_6 : f32 to vector<1x128xf32>
    %10 = arith.divf %8, %9 : vector<1x128xf32>
    %11 = vector.broadcast %10 : vector<1x128xf32> to vector<8x128xf32>
    %12 = arith.subf %6, %11 : vector<8x128xf32>
    %cst_7 = arith.constant dense<0.000000e+00> : vector<128x128xf32>
    %13 = tpu.matmul %12, %12, %cst_7 {dimension_numbers = #tpu.dot_dimension_numbers<[0], [0], [1], [1], [0, 1, 1, 1], [], []>} : vector<8x128xf32>, vector<8x128xf32>, vector<128x128xf32> -> vector<128x128xf32>
    %cst_8 = arith.constant 7.000000e+00 : f32
    %14 = vector.broadcast %cst_8 : f32 to vector<128x128xf32>
    %15 = arith.divf %13, %14 : vector<128x128xf32>
    %c0_9 = arith.constant 0 : index
    %c0_10 = arith.constant 0 : index
    %c0_11 = arith.constant 0 : index
    %16 = vector.load %arg4[%c0_9, %c0_10, %c0_11] : memref<2x128x128xf32, #tpu.memory_space<vmem>>, vector<1x128x128xf32>
    %17 = vector.shape_cast %16 : vector<1x128x128xf32> to vector<128x128xf32>
    %18 = vector.shape_cast %15 : vector<128x128xf32> to vector<1x128x128xf32>
    tpu.vector_store %arg4[%c0_9, %c0_10, %c0_11], %18 {strides = array<i32>} : memref<2x128x128xf32, #tpu.memory_space<vmem>>, vector<1x128x128xf32>,
    %19 = vector.extract_strided_slice %5 {offsets = [8, 0], sizes = [8, 128], strides = [1, 1]} : vector<16x128xf32> to vector<8x128xf32>
    %cst_12 = arith.constant dense<0.000000e+00> : vector<128xf32>
    %20 = vector.multi_reduction <add>, %19, %cst_12 [0] : vector<8x128xf32> to vector<128xf32>
    %21 = vector.shape_cast %20 : vector<128xf32> to vector<1x128xf32>
    %cst_13 = arith.constant 8.000000e+00 : f32
    %22 = vector.broadcast %cst_13 : f32 to vector<1x128xf32>
    %23 = arith.divf %21, %22 : vector<1x128xf32>
    %24 = vector.broadcast %23 : vector<1x128xf32> to vector<8x128xf32>
    %25 = arith.subf %19, %24 : vector<8x128xf32>
    %cst_14 = arith.constant dense<0.000000e+00> : vector<128x128xf32>
    %26 = tpu.matmul %25, %25, %cst_14 {dimension_numbers = #tpu.dot_dimension_numbers<[0], [0], [1], [1], [0, 1, 1, 1], [], []>} : vector<8x128xf32>, vector<8x128xf32>, vector<128x128xf32> -> vector<128x128xf32>
    %cst_15 = arith.constant 7.000000e+00 : f32
    %27 = vector.broadcast %cst_15 : f32 to vector<128x128xf32>
    %28 = arith.divf %26, %27 : vector<128x128xf32>
    %c1 = arith.constant 1 : index
    %c0_16 = arith.constant 0 : index
    %c0_17 = arith.constant 0 : index
    %29 = vector.load %arg4[%c1, %c0_16, %c0_17] : memref<2x128x128xf32, #tpu.memory_space<vmem>>, vector<1x128x128xf32>
    %30 = vector.shape_cast %29 : vector<1x128x128xf32> to vector<128x128xf32>
    %31 = vector.shape_cast %28 : vector<128x128xf32> to vector<1x128x128xf32>
    tpu.vector_store %arg4[%c1, %c0_16, %c0_17], %31 {strides = array<i32>} : memref<2x128x128xf32, #tpu.memory_space<vmem>>, vector<1x128x128xf32>,
    %32 = tpu.concatenate %10, %23 in 0 : vector<1x128xf32>, vector<1x128xf32> -> vector<2x128xf32>
    %c0_18 = arith.constant 0 : index
    %c0_19 = arith.constant 0 : index
    %33 = vector.load %arg3[%c0_18, %c0_19] : memref<2x128xf32, #tpu.memory_space<vmem>>, vector<2x128xf32>
    tpu.vector_store %arg3[%c0_18, %c0_19], %32 {strides = array<i32>} : memref<2x128xf32, #tpu.memory_space<vmem>>, vector<2x128xf32>,
    return
  }
}

module attributes {stable_mosaic.version = 11 : i64} {
  func.func @_trace_sqrtm_kernel(%arg0: memref<2x128x128xf32, #tpu.memory_space<vmem>>, %arg1: memref<128x128xf32, #tpu.memory_space<vmem>>) attributes {dimension_semantics = [], scalar_prefetch = 0 : i64, scratch_operands = 0 : i64, tpu.core_type = #tpu.core_type<tc>} {
    %0 = tpu.iota {dimensions = array<i32: 0>} : vector<128x128xi32>
    %1 = tpu.iota {dimensions = array<i32: 1>} : vector<128x128xi32>
    %2 = arith.cmpi eq, %0, %1 : vector<128x128xi32>
    %3 = arith.extui %2 : vector<128x128xi1> to vector<128x128xi32>
    %4 = arith.sitofp %3 : vector<128x128xi32> to vector<128x128xf32>
    %c0 = arith.constant 0 : index
    %c0_0 = arith.constant 0 : index
    %c0_1 = arith.constant 0 : index
    %5 = vector.load %arg0[%c0, %c0_0, %c0_1] : memref<2x128x128xf32, #tpu.memory_space<vmem>>, vector<1x128x128xf32>
    %6 = vector.shape_cast %5 : vector<1x128x128xf32> to vector<128x128xf32>
    %c1 = arith.constant 1 : index
    %c0_2 = arith.constant 0 : index
    %c0_3 = arith.constant 0 : index
    %7 = vector.load %arg0[%c1, %c0_2, %c0_3] : memref<2x128x128xf32, #tpu.memory_space<vmem>>, vector<1x128x128xf32>
    %8 = vector.shape_cast %7 : vector<1x128x128xf32> to vector<128x128xf32>
    %9 = tpu.transpose %6, [1, 0] : vector<128x128xf32> -> vector<128x128xf32>
    %10 = arith.addf %6, %9 : vector<128x128xf32>
    %cst = arith.constant 5.000000e-01 : f32
    %11 = vector.broadcast %cst : f32 to vector<128x128xf32>
    %12 = arith.mulf %11, %10 : vector<128x128xf32>
    %13 = tpu.transpose %8, [1, 0] : vector<128x128xf32> -> vector<128x128xf32>
    %14 = arith.addf %8, %13 : vector<128x128xf32>
    %cst_4 = arith.constant 5.000000e-01 : f32
    %15 = vector.broadcast %cst_4 : f32 to vector<128x128xf32>
    %16 = arith.mulf %15, %14 : vector<128x128xf32>
    %17 = arith.mulf %12, %12 : vector<128x128xf32>
    %18 = vector.shape_cast %17 : vector<128x128xf32> to vector<1x128x128xf32>
    %cst_5 = arith.constant dense<0.000000e+00> : vector<1xf32>
    %19 = vector.multi_reduction <add>, %18, %cst_5 [1, 2] : vector<1x128x128xf32> to vector<1xf32>
    %20 = vector.shape_cast %19 : vector<1xf32> to vector<1x1x1xf32>
    %21 = vector.extract %20[0, 0, 0] : f32 from vector<1x1x1xf32>
    %22 = vector.broadcast %21 : f32 to vector<1x1xf32>
    %cst_6 = arith.constant 9.99999996E-13 : f32
    %23 = vector.broadcast %cst_6 : f32 to vector<1x1xf32>
    %24 = arith.addf %22, %23 : vector<1x1xf32>
    %25 = math.rsqrt %24 : vector<1x1xf32>
    %26 = vector.broadcast %25 : vector<1x1xf32> to vector<128x128xf32>
    %27 = arith.mulf %12, %26 : vector<128x128xf32>
    %c0_i32 = arith.constant 0 : i32
    %c20_i32 = arith.constant 20 : i32
    %28 = arith.addi %c0_i32, %c20_i32 : i32
    %c1_i32 = arith.constant 1 : i32
    %29:2 = scf.for %arg2 = %c0_i32 to %28 step %c1_i32 iter_args(%arg3 = %27, %arg4 = %4) -> (vector<128x128xf32>, vector<128x128xf32>)  : i32 {
      %cst_17 = arith.constant 3.000000e+00 : f32
      %58 = vector.broadcast %cst_17 : f32 to vector<128x128xf32>
      %59 = arith.mulf %58, %4 : vector<128x128xf32>
      %cst_18 = arith.constant dense<0.000000e+00> : vector<128x128xf32>
      %60 = tpu.matmul %arg4, %arg3, %cst_18 {dimension_numbers = #tpu.dot_dimension_numbers<[1], [0], [0], [1], [0, 0, 1, 1], [], []>} : vector<128x128xf32>, vector<128x128xf32>, vector<128x128xf32> -> vector<128x128xf32>
      %61 = arith.subf %59, %60 : vector<128x128xf32>
      %cst_19 = arith.constant 5.000000e-01 : f32
      %62 = vector.broadcast %cst_19 : f32 to vector<128x128xf32>
      %63 = arith.mulf %62, %61 : vector<128x128xf32>
      %cst_20 = arith.constant dense<0.000000e+00> : vector<128x128xf32>
      %64 = tpu.matmul %arg3, %63, %cst_20 {dimension_numbers = #tpu.dot_dimension_numbers<[1], [0], [0], [1], [0, 0, 1, 1], [], []>} : vector<128x128xf32>, vector<128x128xf32>, vector<128x128xf32> -> vector<128x128xf32>
      %cst_21 = arith.constant dense<0.000000e+00> : vector<128x128xf32>
      %65 = tpu.matmul %63, %arg4, %cst_21 {dimension_numbers = #tpu.dot_dimension_numbers<[1], [0], [0], [1], [0, 0, 1, 1], [], []>} : vector<128x128xf32>, vector<128x128xf32>, vector<128x128xf32> -> vector<128x128xf32>
      scf.yield %64, %65 : vector<128x128xf32>, vector<128x128xf32>
    }
    %30 = math.sqrt %24 : vector<1x1xf32>
    %31 = math.sqrt %30 : vector<1x1xf32>
    %32 = vector.broadcast %31 : vector<1x1xf32> to vector<128x128xf32>
    %33 = arith.mulf %29#0, %32 : vector<128x128xf32>
    %cst_7 = arith.constant dense<0.000000e+00> : vector<128x128xf32>
    %34 = tpu.matmul %33, %16, %cst_7 {dimension_numbers = #tpu.dot_dimension_numbers<[1], [0], [0], [1], [0, 0, 1, 1], [], []>} : vector<128x128xf32>, vector<128x128xf32>, vector<128x128xf32> -> vector<128x128xf32>
    %cst_8 = arith.constant dense<0.000000e+00> : vector<128x128xf32>
    %35 = tpu.matmul %34, %33, %cst_8 {dimension_numbers = #tpu.dot_dimension_numbers<[1], [0], [0], [1], [0, 0, 1, 1], [], []>} : vector<128x128xf32>, vector<128x128xf32>, vector<128x128xf32> -> vector<128x128xf32>
    %36 = tpu.transpose %35, [1, 0] : vector<128x128xf32> -> vector<128x128xf32>
    %37 = arith.addf %35, %36 : vector<128x128xf32>
    %cst_9 = arith.constant 5.000000e-01 : f32
    %38 = vector.broadcast %cst_9 : f32 to vector<128x128xf32>
    %39 = arith.mulf %38, %37 : vector<128x128xf32>
    %40 = arith.mulf %39, %39 : vector<128x128xf32>
    %41 = vector.shape_cast %40 : vector<128x128xf32> to vector<1x128x128xf32>
    %cst_10 = arith.constant dense<0.000000e+00> : vector<1xf32>
    %42 = vector.multi_reduction <add>, %41, %cst_10 [1, 2] : vector<1x128x128xf32> to vector<1xf32>
    %43 = vector.shape_cast %42 : vector<1xf32> to vector<1x1x1xf32>
    %44 = vector.extract %43[0, 0, 0] : f32 from vector<1x1x1xf32>
    %45 = vector.broadcast %44 : f32 to vector<1x1xf32>
    %cst_11 = arith.constant 9.99999996E-13 : f32
    %46 = vector.broadcast %cst_11 : f32 to vector<1x1xf32>
    %47 = arith.addf %45, %46 : vector<1x1xf32>
    %48 = math.rsqrt %47 : vector<1x1xf32>
    %49 = vector.broadcast %48 : vector<1x1xf32> to vector<128x128xf32>
    %50 = arith.mulf %39, %49 : vector<128x128xf32>
    %c0_i32_12 = arith.constant 0 : i32
    %c20_i32_13 = arith.constant 20 : i32
    %51 = arith.addi %c0_i32_12, %c20_i32_13 : i32
    %c1_i32_14 = arith.constant 1 : i32
    %52:2 = scf.for %arg2 = %c0_i32_12 to %51 step %c1_i32_14 iter_args(%arg3 = %50, %arg4 = %4) -> (vector<128x128xf32>, vector<128x128xf32>)  : i32 {
      %cst_17 = arith.constant 3.000000e+00 : f32
      %58 = vector.broadcast %cst_17 : f32 to vector<128x128xf32>
      %59 = arith.mulf %58, %4 : vector<128x128xf32>
      %cst_18 = arith.constant dense<0.000000e+00> : vector<128x128xf32>
      %60 = tpu.matmul %arg4, %arg3, %cst_18 {dimension_numbers = #tpu.dot_dimension_numbers<[1], [0], [0], [1], [0, 0, 1, 1], [], []>} : vector<128x128xf32>, vector<128x128xf32>, vector<128x128xf32> -> vector<128x128xf32>
      %61 = arith.subf %59, %60 : vector<128x128xf32>
      %cst_19 = arith.constant 5.000000e-01 : f32
      %62 = vector.broadcast %cst_19 : f32 to vector<128x128xf32>
      %63 = arith.mulf %62, %61 : vector<128x128xf32>
      %cst_20 = arith.constant dense<0.000000e+00> : vector<128x128xf32>
      %64 = tpu.matmul %arg3, %63, %cst_20 {dimension_numbers = #tpu.dot_dimension_numbers<[1], [0], [0], [1], [0, 0, 1, 1], [], []>} : vector<128x128xf32>, vector<128x128xf32>, vector<128x128xf32> -> vector<128x128xf32>
      %cst_21 = arith.constant dense<0.000000e+00> : vector<128x128xf32>
      %65 = tpu.matmul %63, %arg4, %cst_21 {dimension_numbers = #tpu.dot_dimension_numbers<[1], [0], [0], [1], [0, 0, 1, 1], [], []>} : vector<128x128xf32>, vector<128x128xf32>, vector<128x128xf32> -> vector<128x128xf32>
      scf.yield %64, %65 : vector<128x128xf32>, vector<128x128xf32>
    }
    %53 = math.sqrt %47 : vector<1x1xf32>
    %54 = math.sqrt %53 : vector<1x1xf32>
    %55 = vector.broadcast %54 : vector<1x1xf32> to vector<128x128xf32>
    %56 = arith.mulf %52#0, %55 : vector<128x128xf32>
    %c0_15 = arith.constant 0 : index
    %c0_16 = arith.constant 0 : index
    %57 = vector.load %arg1[%c0_15, %c0_16] : memref<128x128xf32, #tpu.memory_space<vmem>>, vector<128x128xf32>
    tpu.vector_store %arg1[%c0_15, %c0_16], %56 {strides = array<i32>} : memref<128x128xf32, #tpu.memory_space<vmem>>, vector<128x128xf32>,
    return
  }
}

</mosaic_0001>

<llo_original>
// kernel: fvd_loss.3
$region0: #{fvd_loss.3}
  #allocation0 [shape = 'u32[]', space=smem, size = 0x4, offset = 0x4, fixed_abs, tag = 'smem constant byte address 0x4 - core index']
  #allocation1 [shape = 'u32[144,128]{1,0:T(1,128)}', space=vmem, size = 0x12000, scoped, tag = 'internal scratch']
  %s0 = inlined_call_operand.vmem [shape: f32[2,128,128], index: 0, kind: input, shape index: {}]
  %s1 = inlined_call_operand.vmem [shape: f32[128,128], index: 1, kind: output, shape index: {}]
  %s2 = sld [smem:[#allocation0]]
  $region28: #{fvd_loss.3} parent=0
    _
  %s4 = ssub.s32 1, %s2
  %s5 = scalar_select 0, %s4, %s2
  // Predicated region
  $region2: #{fvd_loss.3} parent=0 // pred_check
    _
  $region3: #{fvd_loss.3} parent=0 // pred_check_branch
    %7 = sbr.rel (0) target = $region5
  $region4: #{fvd_loss.3} parent=0 // pred_region
    _
  $region5: #{fvd_loss.3} parent=0 // pred_fallthru
    _
  %v8 = vlaneseq
  %v9 = vshrl.u32 %v8, 7
  %v10 = vadd.s32 %v9, 8
  %v11 = vadd.s32 %v9, 16
  %v12 = vadd.s32 %v9, 24
  %v13 = vadd.s32 %v9, 32
  %v14 = vadd.s32 %v9, 40
  %v15 = vadd.s32 %v9, 48
  %v16 = vadd.s32 %v9, 56
  %v17 = vadd.s32 %v9, 64
  %v18 = vadd.s32 %v9, 72
  %v19 = vadd.s32 %v9, 80
  %v20 = vadd.s32 %v9, 88
  %v21 = vadd.s32 %v9, 96
  %v22 = vadd.s32 %v9, 104
  %v23 = vadd.s32 %v9, 112
  %v24 = vadd.s32 %v9, 120
  %v25 = vlaneseq
  %v26 = vand.u32 %v25, 127
  %vm27 = vcmp.eq.s32.totalorder %v9, %v26
  %vm28 = vcmp.eq.s32.totalorder %v10, %v26
  %vm29 = vcmp.eq.s32.totalorder %v11, %v26
  %vm30 = vcmp.eq.s32.totalorder %v12, %v26
  %vm31 = vcmp.eq.s32.totalorder %v13, %v26
  %vm32 = vcmp.eq.s32.totalorder %v14, %v26
  %vm33 = vcmp.eq.s32.totalorder %v15, %v26
  %vm34 = vcmp.eq.s32.totalorder %v16, %v26
  %vm35 = vcmp.eq.s32.totalorder %v17, %v26
  %vm36 = vcmp.eq.s32.totalorder %v18, %v26
  %vm37 = vcmp.eq.s32.totalorder %v19, %v26
  %vm38 = vcmp.eq.s32.totalorder %v20, %v26
  %vm39 = vcmp.eq.s32.totalorder %v21, %v26
  %vm40 = vcmp.eq.s32.totalorder %v22, %v26
  %vm41 = vcmp.eq.s32.totalorder %v23, %v26
  %vm42 = vcmp.eq.s32.totalorder %v24, %v26
  %v43 = vsel %vm27, 1, 0
  %v44 = vsel %vm28, 1, 0
  %v45 = vsel %vm29, 1, 0
  %v46 = vsel %vm30, 1, 0
  %v47 = vsel %vm31, 1, 0
  %v48 = vsel %vm32, 1, 0
  %v49 = vsel %vm33, 1, 0
  %v50 = vsel %vm34, 1, 0
  %v51 = vsel %vm35, 1, 0
  %v52 = vsel %vm36, 1, 0
  %v53 = vsel %vm37, 1, 0
  %v54 = vsel %vm38, 1, 0
  %v55 = vsel %vm39, 1, 0
  %v56 = vsel %vm40, 1, 0
  %v57 = vsel %vm41, 1, 0
  %v58 = vsel %vm42, 1, 0
  %v59 = vcvt.s32.f32 %v43
  %v60 = vcvt.s32.f32 %v44
  %v61 = vcvt.s32.f32 %v45
  %v62 = vcvt.s32.f32 %v46
  %v63 = vcvt.s32.f32 %v47
  %v64 = vcvt.s32.f32 %v48
  %v65 = vcvt.s32.f32 %v49
  %v66 = vcvt.s32.f32 %v50
  %v67 = vcvt.s32.f32 %v51
  %v68 = vcvt.s32.f32 %v52
  %v69 = vcvt.s32.f32 %v53
  %v70 = vcvt.s32.f32 %v54
  %v71 = vcvt.s32.f32 %v55
  %v72 = vcvt.s32.f32 %v56
  %v73 = vcvt.s32.f32 %v57
  %v74 = vcvt.s32.f32 %v58
  %v75 = vld [vmem:[%s0] sm:$0xff]
  %v76 = vld [vmem:[%s0 + $0x8] sm:$0xff]
  %v77 = vld [vmem:[%s0 + $0x10] sm:$0xff]
  %v78 = vld [vmem:[%s0 + $0x18] sm:$0xff]
  %v79 = vld [vmem:[%s0 + $0x20] sm:$0xff]
  %v80 = vld [vmem:[%s0 + $0x28] sm:$0xff]
  %v81 = vld [vmem:[%s0 + $0x30] sm:$0xff]
  %v82 = vld [vmem:[%s0 + $0x38] sm:$0xff]
  %v83 = vld [vmem:[%s0 + $0x40] sm:$0xff]
  %v84 = vld [vmem:[%s0 + $0x48] sm:$0xff]
  %v85 = vld [vmem:[%s0 + $0x50] sm:$0xff]
  %v86 = vld [vmem:[%s0 + $0x58] sm:$0xff]
  %v87 = vld [vmem:[%s0 + $0x60] sm:$0xff]
  %v88 = vld [vmem:[%s0 + $0x68] sm:$0xff]
  %v89 = vld [vmem:[%s0 + $0x70] sm:$0xff]
  %v90 = vld [vmem:[%s0 + $0x78] sm:$0xff]
  %s91 = scalar_lea.vmem %s0, 128
  %v92 = vld [vmem:[%s91] sm:$0xff]
  %v93 = vld [vmem:[%s91 + $0x8] sm:$0xff]
  %v94 = vld [vmem:[%s91 + $0x10] sm:$0xff]
  %v95 = vld [vmem:[%s91 + $0x18] sm:$0xff]
  %v96 = vld [vmem:[%s91 + $0x20] sm:$0xff]
  %v97 = vld [vmem:[%s91 + $0x28] sm:$0xff]
  %v98 = vld [vmem:[%s91 + $0x30] sm:$0xff]
  %v99 = vld [vmem:[%s91 + $0x38] sm:$0xff]
  %v100 = vld [vmem:[%s91 + $0x40] sm:$0xff]
  %v101 = vld [vmem:[%s91 + $0x48] sm:$0xff]
  %v102 = vld [vmem:[%s91 + $0x50] sm:$0xff]
  %v103 = vld [vmem:[%s91 + $0x58] sm:$0xff]
  %v104 = vld [vmem:[%s91 + $0x60] sm:$0xff]
  %v105 = vld [vmem:[%s91 + $0x68] sm:$0xff]
  %v106 = vld [vmem:[%s91 + $0x70] sm:$0xff]
  %v107 = vld [vmem:[%s91 + $0x78] sm:$0xff]
  %108 = vxpose.xlu0.b32.start [1/16] %v75, 128
  %109 = vxpose.xlu0.b32.cont [2/16] %v76, 128
  %110 = vxpose.xlu0.b32.cont [3/16] %v77, 128
  %111 = vxpose.xlu0.b32.cont [4/16] %v78, 128
  %112 = vxpose.xlu0.b32.cont [5/16] %v79, 128
  %113 = vxpose.xlu0.b32.cont [6/16] %v80, 128
  %114 = vxpose.xlu0.b32.cont [7/16] %v81, 128
  %115 = vxpose.xlu0.b32.cont [8/16] %v82, 128
  %116 = vxpose.xlu0.b32.cont [9/16] %v83, 128
  %117 = vxpose.xlu0.b32.cont [10/16] %v84, 128
  %118 = vxpose.xlu0.b32.cont [11/16] %v85, 128
  %119 = vxpose.xlu0.b32.cont [12/16] %v86, 128
  %120 = vxpose.xlu0.b32.cont [13/16] %v87, 128
  %121 = vxpose.xlu0.b32.cont [14/16] %v88, 128
  %122 = vxpose.xlu0.b32.cont [15/16] %v89, 128
  %123 = vxpose.xlu0.b32.end [16/16] %v90, 128
  %v124 = vpop.trf.xlu0
  %v125 = vpop.trf.xlu0
  %v126 = vpop.trf.xlu0
  %v127 = vpop.trf.xlu0
  %v128 = vpop.trf.xlu0
  %v129 = vpop.trf.xlu0
  %v130 = vpop.trf.xlu0
  %v131 = vpop.trf.xlu0
  %v132 = vpop.trf.xlu0
  %v133 = vpop.trf.xlu0
  %v134 = vpop.trf.xlu0
  %v135 = vpop.trf.xlu0
  %v136 = vpop.trf.xlu0
  %v137 = vpop.trf.xlu0
  %v138 = vpop.trf.xlu0
  %v139 = vpop.trf.xlu0
  %v140 = vadd.f32 %v75, %v124
  %v141 = vadd.f32 %v76, %v125
  %v142 = vadd.f32 %v77, %v126
  %v143 = vadd.f32 %v78, %v127
  %v144 = vadd.f32 %v79, %v128
  %v145 = vadd.f32 %v80, %v129
  %v146 = vadd.f32 %v81, %v130
  %v147 = vadd.f32 %v82, %v131
  %v148 = vadd.f32 %v83, %v132
  %v149 = vadd.f32 %v84, %v133
  %v150 = vadd.f32 %v85, %v134
  %v151 = vadd.f32 %v86, %v135
  %v152 = vadd.f32 %v87, %v136
  %v153 = vadd.f32 %v88, %v137
  %v154 = vadd.f32 %v89, %v138
  %v155 = vadd.f32 %v90, %v139
  %v156 = vmul.f32 %v140, 0.5
  %v157 = vmul.f32 %v141, 0.5
  %v158 = vmul.f32 %v142, 0.5
  %v159 = vmul.f32 %v143, 0.5
  %v160 = vmul.f32 %v144, 0.5
  %v161 = vmul.f32 %v145, 0.5
  %v162 = vmul.f32 %v146, 0.5
  %v163 = vmul.f32 %v147, 0.5
  %v164 = vmul.f32 %v148, 0.5
  %v165 = vmul.f32 %v149, 0.5
  %v166 = vmul.f32 %v150, 0.5
  %v167 = vmul.f32 %v151, 0.5
  %v168 = vmul.f32 %v152, 0.5
  %v169 = vmul.f32 %v153, 0.5
  %v170 = vmul.f32 %v154, 0.5
  %v171 = vmul.f32 %v155, 0.5
  %172 = vxpose.xlu0.b32.start [1/16] %v92, 128
  %173 = vxpose.xlu0.b32.cont [2/16] %v93, 128
  %174 = vxpose.xlu0.b32.cont [3/16] %v94, 128
  %175 = vxpose.xlu0.b32.cont [4/16] %v95, 128
  %176 = vxpose.xlu0.b32.cont [5/16] %v96, 128
  %177 = vxpose.xlu0.b32.cont [6/16] %v97, 128
  %178 = vxpose.xlu0.b32.cont [7/16] %v98, 128
  %179 = vxpose.xlu0.b32.cont [8/16] %v99, 128
  %180 = vxpose.xlu0.b32.cont [9/16] %v100, 128
  %181 = vxpose.xlu0.b32.cont [10/16] %v101, 128
  %182 = vxpose.xlu0.b32.cont [11/16] %v102, 128
  %183 = vxpose.xlu0.b32.cont [12/16] %v103, 128
  %184 = vxpose.xlu0.b32.cont [13/16] %v104, 128
  %185 = vxpose.xlu0.b32.cont [14/16] %v105, 128
  %186 = vxpose.xlu0.b32.cont [15/16] %v106, 128
  %187 = vxpose.xlu0.b32.end [16/16] %v107, 128
  %v188 = vpop.trf.xlu0
  %v189 = vpop.trf.xlu0
  %v190 = vpop.trf.xlu0
  %v191 = vpop.trf.xlu0
  %v192 = vpop.trf.xlu0
  %v193 = vpop.trf.xlu0
  %v194 = vpop.trf.xlu0
  %v195 = vpop.trf.xlu0
  %v196 = vpop.trf.xlu0
  %v197 = vpop.trf.xlu0
  %v198 = vpop.trf.xlu0
  %v199 = vpop.trf.xlu0
  %v200 = vpop.trf.xlu0
  %v201 = vpop.trf.xlu0
  %v202 = vpop.trf.xlu0
  %v203 = vpop.trf.xlu0
  %v204 = vadd.f32 %v92, %v188
  %v205 = vadd.f32 %v93, %v189
  %v206 = vadd.f32 %v94, %v190
  %v207 = vadd.f32 %v95, %v191
  %v208 = vadd.f32 %v96, %v192
  %v209 = vadd.f32 %v97, %v193
  %v210 = vadd.f32 %v98, %v194
  %v211 = vadd.f32 %v99, %v195
  %v212 = vadd.f32 %v100, %v196
  %v213 = vadd.f32 %v101, %v197
  %v214 = vadd.f32 %v102, %v198
  %v215 = vadd.f32 %v103, %v199
  %v216 = vadd.f32 %v104, %v200
  %v217 = vadd.f32 %v105, %v201
  %v218 = vadd.f32 %v106, %v202
  %v219 = vadd.f32 %v107, %v203
  %v220 = vmul.f32 %v204, 0.5
  %v221 = vmul.f32 %v205, 0.5
  %v222 = vmul.f32 %v206, 0.5
  %v223 = vmul.f32 %v207, 0.5
  %v224 = vmul.f32 %v208, 0.5
  %v225 = vmul.f32 %v209, 0.5
  %v226 = vmul.f32 %v210, 0.5
  %v227 = vmul.f32 %v211, 0.5
  %v228 = vmul.f32 %v212, 0.5
  %v229 = vmul.f32 %v213, 0.5
  %v230 = vmul.f32 %v214, 0.5
  %v231 = vmul.f32 %v215, 0.5
  %v232 = vmul.f32 %v216, 0.5
  %v233 = vmul.f32 %v217, 0.5
  %v234 = vmul.f32 %v218, 0.5
  %v235 = vmul.f32 %v219, 0.5
  %v236 = vmul.f32 %v156, %v156
  %v237 = vmul.f32 %v157, %v157
  %v238 = vmul.f32 %v158, %v158
  %v239 = vmul.f32 %v159, %v159
  %v240 = vmul.f32 %v160, %v160
  %v241 = vmul.f32 %v161, %v161
  %v242 = vmul.f32 %v162, %v162
  %v243 = vmul.f32 %v163, %v163
  %v244 = vmul.f32 %v164, %v164
  %v245 = vmul.f32 %v165, %v165
  %v246 = vmul.f32 %v166, %v166
  %v247 = vmul.f32 %v167, %v167
  %v248 = vmul.f32 %v168, %v168
  %v249 = vmul.f32 %v169, %v169
  %v250 = vmul.f32 %v170, %v170
  %v251 = vmul.f32 %v171, %v171
  %v252 = vadd.f32 %v236, %v237
  %v253 = vadd.f32 %v252, %v238
  %v254 = vadd.f32 %v253, %v239
  %v255 = vadd.f32 %v254, %v240
  %v256 = vadd.f32 %v255, %v241
  %v257 = vadd.f32 %v256, %v242
  %v258 = vadd.f32 %v257, %v243
  %v259 = vadd.f32 %v258, %v244
  %v260 = vadd.f32 %v259, %v245
  %v261 = vadd.f32 %v260, %v246
  %v262 = vadd.f32 %v261, %v247
  %v263 = vadd.f32 %v262, %v248
  %v264 = vadd.f32 %v263, %v249
  %v265 = vadd.f32 %v264, %v250
  %v266 = vadd.f32 %v265, %v251
  %267 = vadd.xlane.f32.xlu0 %v266
  %v268 = vpop.xlane.xlu0 %267
  %v269 = vrot.slane %v268, 4
  %v270 = vadd.f32 %v268, %v269
  %v271 = vrot.slane %v270, 2
  %v272 = vadd.f32 %v270, %v271
  %v273 = vrot.slane %v272, 1
  %v274 = vadd.f32 %v272, %v273
  %s275 = vtos %v274
  %v276 = vstv %s275
  %v277 = vadd.f32 %v276, 1e-12
  %v278 = vrsqrt.pop %v277
  %v279 = vmul.f32 %v156, %v278
  %v280 = vmul.f32 %v157, %v278
  %v281 = vmul.f32 %v158, %v278
  %v282 = vmul.f32 %v159, %v278
  %v283 = vmul.f32 %v160, %v278
  %v284 = vmul.f32 %v161, %v278
  %v285 = vmul.f32 %v162, %v278
  %v286 = vmul.f32 %v163, %v278
  %v287 = vmul.f32 %v164, %v278
  %v288 = vmul.f32 %v165, %v278
  %v289 = vmul.f32 %v166, %v278
  %v290 = vmul.f32 %v167, %v278
  %v291 = vmul.f32 %v168, %v278
  %v292 = vmul.f32 %v169, %v278
  %v293 = vmul.f32 %v170, %v278
  %v294 = vmul.f32 %v171, %v278
  loop: start=0, step=1, limit=20
  $region6: #{fvd_loss.3} parent=0 // loop_pre_header
    _
  $region7: #{fvd_loss.3} parent=0 // loop_header
    %s296 = sphi 0, %s300
    %p297 = scmp.ge.s32.totalorder %s296, 20
    %v301 = vphi %v279, %v593
    %v302 = vphi %v280, %v598
    %v303 = vphi %v281, %v603
    %v304 = vphi %v282, %v608
    %v305 = vphi %v283, %v613
    %v306 = vphi %v284, %v618
    %v307 = vphi %v285, %v623
    %v308 = vphi %v286, %v628
    %v309 = vphi %v287, %v633
    %v310 = vphi %v288, %v638
    %v311 = vphi %v289, %v643
    %v312 = vphi %v290, %v648
    %v313 = vphi %v291, %v653
    %v314 = vphi %v292, %v658
    %v315 = vphi %v293, %v663
    %v316 = vphi %v294, %v668
    %v317 = vphi %v59, %v738
    %v318 = vphi %v60, %v743
    %v319 = vphi %v61, %v748
    %v320 = vphi %v62, %v753
    %v321 = vphi %v63, %v758
    %v322 = vphi %v64, %v763
    %v323 = vphi %v65, %v768
    %v324 = vphi %v66, %v773
    %v325 = vphi %v67, %v778
    %v326 = vphi %v68, %v783
    %v327 = vphi %v69, %v788
    %v328 = vphi %v70, %v793
    %v329 = vphi %v71, %v798
    %v330 = vphi %v72, %v803
    %v331 = vphi %v73, %v808
    %v332 = vphi %v74, %v813
  $region8: #{fvd_loss.3} parent=0 // loop_header_branch
    %299 = sbr.rel (%p297) target = $region12
  $region9: #{fvd_loss.3} parent=0 // loop_body
    %v333 = vmul.f32 %v59, 3.0
    %v334 = vmul.f32 %v60, 3.0
    %v335 = vmul.f32 %v61, 3.0
    %v336 = vmul.f32 %v62, 3.0
    %v337 = vmul.f32 %v63, 3.0
    %v338 = vmul.f32 %v64, 3.0
    %v339 = vmul.f32 %v65, 3.0
    %v340 = vmul.f32 %v66, 3.0
    %v341 = vmul.f32 %v67, 3.0
    %v342 = vmul.f32 %v68, 3.0
    %v343 = vmul.f32 %v69, 3.0
    %v344 = vmul.f32 %v70, 3.0
    %v345 = vmul.f32 %v71, 3.0
    %v346 = vmul.f32 %v72, 3.0
    %v347 = vmul.f32 %v73, 3.0
    %v348 = vmul.f32 %v74, 3.0
    %349 = vmatprep.subr.mxu0 0.0
    %350 = vmatpush1.msra.mxu0 %v316
    %351 = vmatprep.subr.mxu0 0.0
    %352 = vmatpush1.msra.mxu0 %v315
    %353 = vmatprep.subr.mxu0 0.0
    %354 = vmatpush1.msra.mxu0 %v314
    %355 = vmatprep.subr.mxu0 0.0
    %356 = vmatpush1.msra.mxu0 %v313
    %357 = vmatprep.subr.mxu0 0.0
    %358 = vmatpush1.msra.mxu0 %v312
    %359 = vmatprep.subr.mxu0 0.0
    %360 = vmatpush1.msra.mxu0 %v311
    %361 = vmatprep.subr.mxu0 0.0
    %362 = vmatpush1.msra.mxu0 %v310
    %363 = vmatprep.subr.mxu0 0.0
    %364 = vmatpush1.msra.mxu0 %v309
    %365 = vmatprep.subr.mxu0 0.0
    %366 = vmatpush1.msra.mxu0 %v308
    %367 = vmatprep.subr.mxu0 0.0
    %368 = vmatpush1.msra.mxu0 %v307
    %369 = vmatprep.subr.mxu0 0.0
    %370 = vmatpush1.msra.mxu0 %v306
    %371 = vmatprep.subr.mxu0 0.0
    %372 = vmatpush1.msra.mxu0 %v305
    %373 = vmatprep.subr.mxu0 0.0
    %374 = vmatpush1.msra.mxu0 %v304
    %375 = vmatprep.subr.mxu0 0.0
    %376 = vmatpush1.msra.mxu0 %v303
    %377 = vmatprep.subr.mxu0 0.0
    %378 = vmatpush1.msra.mxu0 %v302
    %379 = vmatprep.subr.mxu0 0.0
    %380 = vmatpush1.msra.mxu0 %v301
    %381 = vmatprep.subr.mxu0 0.0
    %382 = vmatpush2.msra.mxu0 0.0
    %383 = vmatprep.subr.mxu0 0.0
    %384 = vmatpush2.msra.mxu0 0.0
    %385 = vmatprep.subr.mxu0 0.0
    %386 = vmatpush2.msra.mxu0 0.0
    %387 = vmatprep.subr.mxu0 0.0
    %388 = vmatpush2.msra.mxu0 0.0
    %389 = vmatprep.subr.mxu0 0.0
    %390 = vmatpush2.msra.mxu0 0.0
    %391 = vmatprep.subr.mxu0 0.0
    %392 = vmatpush2.msra.mxu0 0.0
    %393 = vmatprep.subr.mxu0 0.0
    %394 = vmatpush2.msra.mxu0 0.0
    %395 = vmatprep.subr.mxu0 0.0
    %396 = vmatpush2.msra.mxu0 0.0
    %397 = vmatprep.subr.mxu0 0.0
    %398 = vmatpush2.msra.mxu0 0.0
    %399 = vmatprep.subr.mxu0 0.0
    %400 = vmatpush2.msra.mxu0 0.0
    %401 = vmatprep.subr.mxu0 0.0
    %402 = vmatpush2.msra.mxu0 0.0
    %403 = vmatprep.subr.mxu0 0.0
    %404 = vmatpush2.msra.mxu0 0.0
    %405 = vmatprep.subr.mxu0 0.0
    %406 = vmatpush2.msra.mxu0 0.0
    %407 = vmatprep.subr.mxu0 0.0
    %408 = vmatpush2.msra.mxu0 0.0
    %409 = vmatprep.subr.mxu0 0.0
    %410 = vmatpush2.msra.mxu0 0.0
    %411 = vmatprep.subr.mxu0 0.0
    %412 = vmatpush2.msra.mxu0 0.0
    %413 = vmatprep.mubr.f32.mxu0 0.0
    %414 = vmatmul.mubr.f32.gmra.mxu0 %v317
    %v415 = vpop.f32.mrf.mxu0
    %v416 = vadd.f32 0.0, %v415
    %v417 = vpop.f32.mrf.mxu0
    %418 = vmatprep.mubr.f32.mxu0 0.0
    %419 = vmatmul.mubr.f32.gmra.mxu0 %v318
    %v420 = vpop.f32.mrf.mxu0
    %v421 = vadd.f32 0.0, %v420
    %v422 = vpop.f32.mrf.mxu0
    %423 = vmatprep.mubr.f32.mxu0 0.0
    %424 = vmatmul.mubr.f32.gmra.mxu0 %v319
    %v425 = vpop.f32.mrf.mxu0
    %v426 = vadd.f32 0.0, %v425
    %v427 = vpop.f32.mrf.mxu0
    %428 = vmatprep.mubr.f32.mxu0 0.0
    %429 = vmatmul.mubr.f32.gmra.mxu0 %v320
    %v430 = vpop.f32.mrf.mxu0
    %v431 = vadd.f32 0.0, %v430
    %v432 = vpop.f32.mrf.mxu0
    %433 = vmatprep.mubr.f32.mxu0 0.0
    %434 = vmatmul.mubr.f32.gmra.mxu0 %v321
    %v435 = vpop.f32.mrf.mxu0
    %v436 = vadd.f32 0.0, %v435
    %v437 = vpop.f32.mrf.mxu0
    %438 = vmatprep.mubr.f32.mxu0 0.0
    %439 = vmatmul.mubr.f32.gmra.mxu0 %v322
    %v440 = vpop.f32.mrf.mxu0
    %v441 = vadd.f32 0.0, %v440
    %v442 = vpop.f32.mrf.mxu0
    %443 = vmatprep.mubr.f32.mxu0 0.0
    %444 = vmatmul.mubr.f32.gmra.mxu0 %v323
    %v445 = vpop.f32.mrf.mxu0
    %v446 = vadd.f32 0.0, %v445
    %v447 = vpop.f32.mrf.mxu0
    %448 = vmatprep.mubr.f32.mxu0 0.0
    %449 = vmatmul.mubr.f32.gmra.mxu0 %v324
    %v450 = vpop.f32.mrf.mxu0
    %v451 = vadd.f32 0.0, %v450
    %v452 = vpop.f32.mrf.mxu0
    %453 = vmatprep.mubr.f32.mxu0 0.0
    %454 = vmatmul.mubr.f32.gmra.mxu0 %v325
    %v455 = vpop.f32.mrf.mxu0
    %v456 = vadd.f32 0.0, %v455
    %v457 = vpop.f32.mrf.mxu0
    %458 = vmatprep.mubr.f32.mxu0 0.0
    %459 = vmatmul.mubr.f32.gmra.mxu0 %v326
    %v460 = vpop.f32.mrf.mxu0
    %v461 = vadd.f32 0.0, %v460
    %v462 = vpop.f32.mrf.mxu0
    %463 = vmatprep.mubr.f32.mxu0 0.0
    %464 = vmatmul.mubr.f32.gmra.mxu0 %v327
    %v465 = vpop.f32.mrf.mxu0
    %v466 = vadd.f32 0.0, %v465
    %v467 = vpop.f32.mrf.mxu0
    %468 = vmatprep.mubr.f32.mxu0 0.0
    %469 = vmatmul.mubr.f32.gmra.mxu0 %v328
    %v470 = vpop.f32.mrf.mxu0
    %v471 = vadd.f32 0.0, %v470
    %v472 = vpop.f32.mrf.mxu0
    %473 = vmatprep.mubr.f32.mxu0 0.0
    %474 = vmatmul.mubr.f32.gmra.mxu0 %v329
    %v475 = vpop.f32.mrf.mxu0
    %v476 = vadd.f32 0.0, %v475
    %v477 = vpop.f32.mrf.mxu0
    %478 = vmatprep.mubr.f32.mxu0 0.0
    %479 = vmatmul.mubr.f32.gmra.mxu0 %v330
    %v480 = vpop.f32.mrf.mxu0
    %v481 = vadd.f32 0.0, %v480
    %v482 = vpop.f32.mrf.mxu0
    %483 = vmatprep.mubr.f32.mxu0 0.0
    %484 = vmatmul.mubr.f32.gmra.mxu0 %v331
    %v485 = vpop.f32.mrf.mxu0
    %v486 = vadd.f32 0.0, %v485
    %v487 = vpop.f32.mrf.mxu0
    %488 = vmatprep.mubr.f32.mxu0 0.0
    %489 = vmatmul.mubr.f32.gmra.mxu0 %v332
    %v490 = vpop.f32.mrf.mxu0
    %v491 = vadd.f32 0.0, %v490
    %v492 = vpop.f32.mrf.mxu0
    %493 = vdwg.mxu0
    %v494 = vsub.f32 %v333, %v416
    %v495 = vsub.f32 %v334, %v421
    %v496 = vsub.f32 %v335, %v426
    %v497 = vsub.f32 %v336, %v431
    %v498 = vsub.f32 %v337, %v436
    %v499 = vsub.f32 %v338, %v441
    %v500 = vsub.f32 %v339, %v446
    %v501 = vsub.f32 %v340, %v451
    %v502 = vsub.f32 %v341, %v456
    %v503 = vsub.f32 %v342, %v461
    %v504 = vsub.f32 %v343, %v466
    %v505 = vsub.f32 %v344, %v471
    %v506 = vsub.f32 %v345, %v476
    %v507 = vsub.f32 %v346, %v481
    %v508 = vsub.f32 %v347, %v486
    %v509 = vsub.f32 %v348, %v491
    %v510 = vmul.f32 %v494, 0.5
    %v511 = vmul.f32 %v495, 0.5
    %v512 = vmul.f32 %v496, 0.5
    %v513 = vmul.f32 %v497, 0.5
    %v514 = vmul.f32 %v498, 0.5
    %v515 = vmul.f32 %v499, 0.5
    %v516 = vmul.f32 %v500, 0.5
    %v517 = vmul.f32 %v501, 0.5
    %v518 = vmul.f32 %v502, 0.5
    %v519 = vmul.f32 %v503, 0.5
    %v520 = vmul.f32 %v504, 0.5
    %v521 = vmul.f32 %v505, 0.5
    %v522 = vmul.f32 %v506, 0.5
    %v523 = vmul.f32 %v507, 0.5
    %v524 = vmul.f32 %v508, 0.5
    %v525 = vmul.f32 %v509, 0.5
    %526 = vmatprep.subr.mxu0 0.0
    %527 = vmatpush1.msra.mxu0 %v525
    %528 = vmatprep.subr.mxu0 0.0
    %529 = vmatpush1.msra.mxu0 %v524
    %530 = vmatprep.subr.mxu0 0.0
    %531 = vmatpush1.msra.mxu0 %v523
    %532 = vmatprep.subr.mxu0 0.0
    %533 = vmatpush1.msra.mxu0 %v522
    %534 = vmatprep.subr.mxu0 0.0
    %535 = vmatpush1.msra.mxu0 %v521
    %536 = vmatprep.subr.mxu0 0.0
    %537 = vmatpush1.msra.mxu0 %v520
    %538 = vmatprep.subr.mxu0 0.0
    %539 = vmatpush1.msra.mxu0 %v519
    %540 = vmatprep.subr.mxu0 0.0
    %541 = vmatpush1.msra.mxu0 %v518
    %542 = vmatprep.subr.mxu0 0.0
    %543 = vmatpush1.msra.mxu0 %v517
    %544 = vmatprep.subr.mxu0 0.0
    %545 = vmatpush1.msra.mxu0 %v516
    %546 = vmatprep.subr.mxu0 0.0
    %547 = vmatpush1.msra.mxu0 %v515
    %548 = vmatprep.subr.mxu0 0.0
    %549 = vmatpush1.msra.mxu0 %v514
    %550 = vmatprep.subr.mxu0 0.0
    %551 = vmatpush1.msra.mxu0 %v513
    %552 = vmatprep.subr.mxu0 0.0
    %553 = vmatpush1.msra.mxu0 %v512
    %554 = vmatprep.subr.mxu0 0.0
    %555 = vmatpush1.msra.mxu0 %v511
    %556 = vmatprep.subr.mxu0 0.0
    %557 = vmatpush1.msra.mxu0 %v510
    %558 = vmatprep.subr.mxu0 0.0
    %559 = vmatpush2.msra.mxu0 0.0
    %560 = vmatprep.subr.mxu0 0.0
    %561 = vmatpush2.msra.mxu0 0.0
    %562 = vmatprep.subr.mxu0 0.0
    %563 = vmatpush2.msra.mxu0 0.0
    %564 = vmatprep.subr.mxu0 0.0
    %565 = vmatpush2.msra.mxu0 0.0
    %566 = vmatprep.subr.mxu0 0.0
    %567 = vmatpush2.msra.mxu0 0.0
    %568 = vmatprep.subr.mxu0 0.0
    %569 = vmatpush2.msra.mxu0 0.0
    %570 = vmatprep.subr.mxu0 0.0
    %571 = vmatpush2.msra.mxu0 0.0
    %572 = vmatprep.subr.mxu0 0.0
    %573 = vmatpush2.msra.mxu0 0.0
    %574 = vmatprep.subr.mxu0 0.0
    %575 = vmatpush2.msra.mxu0 0.0
    %576 = vmatprep.subr.mxu0 0.0
    %577 = vmatpush2.msra.mxu0 0.0
    %578 = vmatprep.subr.mxu0 0.0
    %579 = vmatpush2.msra.mxu0 0.0
    %580 = vmatprep.subr.mxu0 0.0
    %581 = vmatpush2.msra.mxu0 0.0
    %582 = vmatprep.subr.mxu0 0.0
    %583 = vmatpush2.msra.mxu0 0.0
    %584 = vmatprep.subr.mxu0 0.0
    %585 = vmatpush2.msra.mxu0 0.0
    %586 = vmatprep.subr.mxu0 0.0
    %587 = vmatpush2.msra.mxu0 0.0
    %588 = vmatprep.subr.mxu0 0.0
    %589 = vmatpush2.msra.mxu0 0.0
    %590 = vmatprep.mubr.f32.mxu0 0.0
    %591 = vmatmul.mubr.f32.gmra.mxu0 %v301
    %v592 = vpop.f32.mrf.mxu0
    %v593 = vadd.f32 0.0, %v592
    %v594 = vpop.f32.mrf.mxu0
    %595 = vmatprep.mubr.f32.mxu0 0.0
    %596 = vmatmul.mubr.f32.gmra.mxu0 %v302
    %v597 = vpop.f32.mrf.mxu0
    %v598 = vadd.f32 0.0, %v597
    %v599 = vpop.f32.mrf.mxu0
    %600 = vmatprep.mubr.f32.mxu0 0.0
    %601 = vmatmul.mubr.f32.gmra.mxu0 %v303
    %v602 = vpop.f32.mrf.mxu0
    %v603 = vadd.f32 0.0, %v602
    %v604 = vpop.f32.mrf.mxu0
    %605 = vmatprep.mubr.f32.mxu0 0.0
    %606 = vmatmul.mubr.f32.gmra.mxu0 %v304
    %v607 = vpop.f32.mrf.mxu0
    %v608 = vadd.f32 0.0, %v607
    %v609 = vpop.f32.mrf.mxu0
    %610 = vmatprep.mubr.f32.mxu0 0.0
    %611 = vmatmul.mubr.f32.gmra.mxu0 %v305
    %v612 = vpop.f32.mrf.mxu0
    %v613 = vadd.f32 0.0, %v612
    %v614 = vpop.f32.mrf.mxu0
    %615 = vmatprep.mubr.f32.mxu0 0.0
    %616 = vmatmul.mubr.f32.gmra.mxu0 %v306
    %v617 = vpop.f32.mrf.mxu0
    %v618 = vadd.f32 0.0, %v617
    %v619 = vpop.f32.mrf.mxu0
    %620 = vmatprep.mubr.f32.mxu0 0.0
    %621 = vmatmul.mubr.f32.gmra.mxu0 %v307
    %v622 = vpop.f32.mrf.mxu0
    %v623 = vadd.f32 0.0, %v622
    %v624 = vpop.f32.mrf.mxu0
    %625 = vmatprep.mubr.f32.mxu0 0.0
    %626 = vmatmul.mubr.f32.gmra.mxu0 %v308
    %v627 = vpop.f32.mrf.mxu0
    %v628 = vadd.f32 0.0, %v627
    %v629 = vpop.f32.mrf.mxu0
    %630 = vmatprep.mubr.f32.mxu0 0.0
    %631 = vmatmul.mubr.f32.gmra.mxu0 %v309
    %v632 = vpop.f32.mrf.mxu0
    %v633 = vadd.f32 0.0, %v632
    %v634 = vpop.f32.mrf.mxu0
    %635 = vmatprep.mubr.f32.mxu0 0.0
    %636 = vmatmul.mubr.f32.gmra.mxu0 %v310
    %v637 = vpop.f32.mrf.mxu0
    %v638 = vadd.f32 0.0, %v637
    %v639 = vpop.f32.mrf.mxu0
    %640 = vmatprep.mubr.f32.mxu0 0.0
    %641 = vmatmul.mubr.f32.gmra.mxu0 %v311
    %v642 = vpop.f32.mrf.mxu0
    %v643 = vadd.f32 0.0, %v642
    %v644 = vpop.f32.mrf.mxu0
    %645 = vmatprep.mubr.f32.mxu0 0.0
    %646 = vmatmul.mubr.f32.gmra.mxu0 %v312
    %v647 = vpop.f32.mrf.mxu0
    %v648 = vadd.f32 0.0, %v647
    %v649 = vpop.f32.mrf.mxu0
    %650 = vmatprep.mubr.f32.mxu0 0.0
    %651 = vmatmul.mubr.f32.gmra.mxu0 %v313
    %v652 = vpop.f32.mrf.mxu0
    %v653 = vadd.f32 0.0, %v652
    %v654 = vpop.f32.mrf.mxu0
    %655 = vmatprep.mubr.f32.mxu0 0.0
    %656 = vmatmul.mubr.f32.gmra.mxu0 %v314
    %v657 = vpop.f32.mrf.mxu0
    %v658 = vadd.f32 0.0, %v657
    %v659 = vpop.f32.mrf.mxu0
    %660 = vmatprep.mubr.f32.mxu0 0.0
    %661 = vmatmul.mubr.f32.gmra.mxu0 %v315
    %v662 = vpop.f32.mrf.mxu0
    %v663 = vadd.f32 0.0, %v662
    %v664 = vpop.f32.mrf.mxu0
    %665 = vmatprep.mubr.f32.mxu0 0.0
    %666 = vmatmul.mubr.f32.gmra.mxu0 %v316
    %v667 = vpop.f32.mrf.mxu0
    %v668 = vadd.f32 0.0, %v667
    %v669 = vpop.f32.mrf.mxu0
    %670 = vdwg.mxu0
    %671 = vmatprep.subr.mxu0 0.0
    %672 = vmatpush1.msra.mxu0 %v332
    %673 = vmatprep.subr.mxu0 0.0
    %674 = vmatpush1.msra.mxu0 %v331
    %675 = vmatprep.subr.mxu0 0.0
    %676 = vmatpush1.msra.mxu0 %v330
    %677 = vmatprep.subr.mxu0 0.0
    %678 = vmatpush1.msra.mxu0 %v329
    %679 = vmatprep.subr.mxu0 0.0
    %680 = vmatpush1.msra.mxu0 %v328
    %681 = vmatprep.subr.mxu0 0.0
    %682 = vmatpush1.msra.mxu0 %v327
    %683 = vmatprep.subr.mxu0 0.0
    %684 = vmatpush1.msra.mxu0 %v326
    %685 = vmatprep.subr.mxu0 0.0
    %686 = vmatpush1.msra.mxu0 %v325
    %687 = vmatprep.subr.mxu0 0.0
    %688 = vmatpush1.msra.mxu0 %v324
    %689 = vmatprep.subr.mxu0 0.0
    %690 = vmatpush1.msra.mxu0 %v323
    %691 = vmatprep.subr.mxu0 0.0
    %692 = vmatpush1.msra.mxu0 %v322
    %693 = vmatprep.subr.mxu0 0.0
    %694 = vmatpush1.msra.mxu0 %v321
    %695 = vmatprep.subr.mxu0 0.0
    %696 = vmatpush1.msra.mxu0 %v320
    %697 = vmatprep.subr.mxu0 0.0
    %698 = vmatpush1.msra.mxu0 %v319
    %699 = vmatprep.subr.mxu0 0.0
    %700 = vmatpush1.msra.mxu0 %v318
    %701 = vmatprep.subr.mxu0 0.0
    %702 = vmatpush1.msra.mxu0 %v317
    %703 = vmatprep.subr.mxu0 0.0
    %704 = vmatpush2.msra.mxu0 0.0
    %705 = vmatprep.subr.mxu0 0.0
    %706 = vmatpush2.msra.mxu0 0.0
    %707 = vmatprep.subr.mxu0 0.0
    %708 = vmatpush2.msra.mxu0 0.0
    %709 = vmatprep.subr.mxu0 0.0
    %710 = vmatpush2.msra.mxu0 0.0
    %711 = vmatprep.subr.mxu0 0.0
    %712 = vmatpush2.msra.mxu0 0.0
    %713 = vmatprep.subr.mxu0 0.0
    %714 = vmatpush2.msra.mxu0 0.0
    %715 = vmatprep.subr.mxu0 0.0
    %716 = vmatpush2.msra.mxu0 0.0
    %717 = vmatprep.subr.mxu0 0.0
    %718 = vmatpush2.msra.mxu0 0.0
    %719 = vmatprep.subr.mxu0 0.0
    %720 = vmatpush2.msra.mxu0 0.0
    %721 = vmatprep.subr.mxu0 0.0
    %722 = vmatpush2.msra.mxu0 0.0
    %723 = vmatprep.subr.mxu0 0.0
    %724 = vmatpush2.msra.mxu0 0.0
    %725 = vmatprep.subr.mxu0 0.0
    %726 = vmatpush2.msra.mxu0 0.0
    %727 = vmatprep.subr.mxu0 0.0
    %728 = vmatpush2.msra.mxu0 0.0
    %729 = vmatprep.subr.mxu0 0.0
    %730 = vmatpush2.msra.mxu0 0.0
    %731 = vmatprep.subr.mxu0 0.0
    %732 = vmatpush2.msra.mxu0 0.0
    %733 = vmatprep.subr.mxu0 0.0
    %734 = vmatpush2.msra.mxu0 0.0
    %735 = vmatprep.mubr.f32.mxu0 0.0
    %736 = vmatmul.mubr.f32.gmra.mxu0 %v510
    %v737 = vpop.f32.mrf.mxu0
    %v738 = vadd.f32 0.0, %v737
    %v739 = vpop.f32.mrf.mxu0
    %740 = vmatprep.mubr.f32.mxu0 0.0
    %741 = vmatmul.mubr.f32.gmra.mxu0 %v511
    %v742 = vpop.f32.mrf.mxu0
    %v743 = vadd.f32 0.0, %v742
    %v744 = vpop.f32.mrf.mxu0
    %745 = vmatprep.mubr.f32.mxu0 0.0
    %746 = vmatmul.mubr.f32.gmra.mxu0 %v512
    %v747 = vpop.f32.mrf.mxu0
    %v748 = vadd.f32 0.0, %v747
    %v749 = vpop.f32.mrf.mxu0
    %750 = vmatprep.mubr.f32.mxu0 0.0
    %751 = vmatmul.mubr.f32.gmra.mxu0 %v513
    %v752 = vpop.f32.mrf.mxu0
    %v753 = vadd.f32 0.0, %v752
    %v754 = vpop.f32.mrf.mxu0
    %755 = vmatprep.mubr.f32.mxu0 0.0
    %756 = vmatmul.mubr.f32.gmra.mxu0 %v514
    %v757 = vpop.f32.mrf.mxu0
    %v758 = vadd.f32 0.0, %v757
    %v759 = vpop.f32.mrf.mxu0
    %760 = vmatprep.mubr.f32.mxu0 0.0
    %761 = vmatmul.mubr.f32.gmra.mxu0 %v515
    %v762 = vpop.f32.mrf.mxu0
    %v763 = vadd.f32 0.0, %v762
    %v764 = vpop.f32.mrf.mxu0
    %765 = vmatprep.mubr.f32.mxu0 0.0
    %766 = vmatmul.mubr.f32.gmra.mxu0 %v516
    %v767 = vpop.f32.mrf.mxu0
    %v768 = vadd.f32 0.0, %v767
    %v769 = vpop.f32.mrf.mxu0
    %770 = vmatprep.mubr.f32.mxu0 0.0
    %771 = vmatmul.mubr.f32.gmra.mxu0 %v517
    %v772 = vpop.f32.mrf.mxu0
    %v773 = vadd.f32 0.0, %v772
    %v774 = vpop.f32.mrf.mxu0
    %775 = vmatprep.mubr.f32.mxu0 0.0
    %776 = vmatmul.mubr.f32.gmra.mxu0 %v518
    %v777 = vpop.f32.mrf.mxu0
    %v778 = vadd.f32 0.0, %v777
    %v779 = vpop.f32.mrf.mxu0
    %780 = vmatprep.mubr.f32.mxu0 0.0
    %781 = vmatmul.mubr.f32.gmra.mxu0 %v519
    %v782 = vpop.f32.mrf.mxu0
    %v783 = vadd.f32 0.0, %v782
    %v784 = vpop.f32.mrf.mxu0
    %785 = vmatprep.mubr.f32.mxu0 0.0
    %786 = vmatmul.mubr.f32.gmra.mxu0 %v520
    %v787 = vpop.f32.mrf.mxu0
    %v788 = vadd.f32 0.0, %v787
    %v789 = vpop.f32.mrf.mxu0
    %790 = vmatprep.mubr.f32.mxu0 0.0
    %791 = vmatmul.mubr.f32.gmra.mxu0 %v521
    %v792 = vpop.f32.mrf.mxu0
    %v793 = vadd.f32 0.0, %v792
    %v794 = vpop.f32.mrf.mxu0
    %795 = vmatprep.mubr.f32.mxu0 0.0
    %796 = vmatmul.mubr.f32.gmra.mxu0 %v522
    %v797 = vpop.f32.mrf.mxu0
    %v798 = vadd.f32 0.0, %v797
    %v799 = vpop.f32.mrf.mxu0
    %800 = vmatprep.mubr.f32.mxu0 0.0
    %801 = vmatmul.mubr.f32.gmra.mxu0 %v523
    %v802 = vpop.f32.mrf.mxu0
    %v803 = vadd.f32 0.0, %v802
    %v804 = vpop.f32.mrf.mxu0
    %805 = vmatprep.mubr.f32.mxu0 0.0
    %806 = vmatmul.mubr.f32.gmra.mxu0 %v524
    %v807 = vpop.f32.mrf.mxu0
    %v808 = vadd.f32 0.0, %v807
    %v809 = vpop.f32.mrf.mxu0
    %810 = vmatprep.mubr.f32.mxu0 0.0
    %811 = vmatmul.mubr.f32.gmra.mxu0 %v525
    %v812 = vpop.f32.mrf.mxu0
    %v813 = vadd.f32 0.0, %v812
    %v814 = vpop.f32.mrf.mxu0
    %815 = vdwg.mxu0
  $region10: #{fvd_loss.3} parent=0 // loop_footer
    %s300 = sadd.s32 1, %s296
  $region11: #{fvd_loss.3} parent=0 // loop_footer_branch
    %295 = sbr.rel target = $region7
  $region12: #{fvd_loss.3} parent=0 // loop_exit
    _
  %v816 = vrsqrt.pop %v277
  %v817 = vmul.f32 %v277, %v816
  %vm818 = vcmp.eq.f32.partialorder %v277, inf
  %v819 = vsel %vm818, %v277, %v817
  %vm820 = vcmp.eq.f32.partialorder %v277, 0.0
  %v821 = vand.u32 %v277, 2147483648
  %v822 = vsel %vm820, %v821, %v819
  %v823 = vrsqrt.pop %v822
  %v824 = vmul.f32 %v822, %v823
  %vm825 = vcmp.eq.f32.partialorder %v822, inf
  %v826 = vsel %vm825, %v822, %v824
  %vm827 = vcmp.eq.f32.partialorder %v822, 0.0
  %v828 = vand.u32 %v822, 2147483648
  %v829 = vsel %vm827, %v828, %v826
  %v830 = vmul.f32 %v301, %v829
  %v831 = vmul.f32 %v302, %v829
  %v832 = vmul.f32 %v303, %v829
  %v833 = vmul.f32 %v304, %v829
  %v834 = vmul.f32 %v305, %v829
  %v835 = vmul.f32 %v306, %v829
  %v836 = vmul.f32 %v307, %v829
  %v837 = vmul.f32 %v308, %v829
  %v838 = vmul.f32 %v309, %v829
  %v839 = vmul.f32 %v310, %v829
  %v840 = vmul.f32 %v311, %v829
  %v841 = vmul.f32 %v312, %v829
  %v842 = vmul.f32 %v313, %v829
  %v843 = vmul.f32 %v314, %v829
  %v844 = vmul.f32 %v315, %v829
  %v845 = vmul.f32 %v316, %v829
  %846 = vmatprep.subr.mxu0 0.0
  %847 = vmatpush1.msra.mxu0 %v235
  %848 = vmatprep.subr.mxu0 0.0
  %849 = vmatpush1.msra.mxu0 %v234
  %850 = vmatprep.subr.mxu0 0.0
  %851 = vmatpush1.msra.mxu0 %v233
  %852 = vmatprep.subr.mxu0 0.0
  %853 = vmatpush1.msra.mxu0 %v232
  %854 = vmatprep.subr.mxu0 0.0
  %855 = vmatpush1.msra.mxu0 %v231
  %856 = vmatprep.subr.mxu0 0.0
  %857 = vmatpush1.msra.mxu0 %v230
  %858 = vmatprep.subr.mxu0 0.0
  %859 = vmatpush1.msra.mxu0 %v229
  %860 = vmatprep.subr.mxu0 0.0
  %861 = vmatpush1.msra.mxu0 %v228
  %862 = vmatprep.subr.mxu0 0.0
  %863 = vmatpush1.msra.mxu0 %v227
  %864 = vmatprep.subr.mxu0 0.0
  %865 = vmatpush1.msra.mxu0 %v226
  %866 = vmatprep.subr.mxu0 0.0
  %867 = vmatpush1.msra.mxu0 %v225
  %868 = vmatprep.subr.mxu0 0.0
  %869 = vmatpush1.msra.mxu0 %v224
  %870 = vmatprep.subr.mxu0 0.0
  %871 = vmatpush1.msra.mxu0 %v223
  %872 = vmatprep.subr.mxu0 0.0
  %873 = vmatpush1.msra.mxu0 %v222
  %874 = vmatprep.subr.mxu0 0.0
  %875 = vmatpush1.msra.mxu0 %v221
  %876 = vmatprep.subr.mxu0 0.0
  %877 = vmatpush1.msra.mxu0 %v220
  %878 = vmatprep.subr.mxu0 0.0
  %879 = vmatpush2.msra.mxu0 0.0
  %880 = vmatprep.subr.mxu0 0.0
  %881 = vmatpush2.msra.mxu0 0.0
  %882 = vmatprep.subr.mxu0 0.0
  %883 = vmatpush2.msra.mxu0 0.0
  %884 = vmatprep.subr.mxu0 0.0
  %885 = vmatpush2.msra.mxu0 0.0
  %886 = vmatprep.subr.mxu0 0.0
  %887 = vmatpush2.msra.mxu0 0.0
  %888 = vmatprep.subr.mxu0 0.0
  %889 = vmatpush2.msra.mxu0 0.0
  %890 = vmatprep.subr.mxu0 0.0
  %891 = vmatpush2.msra.mxu0 0.0
  %892 = vmatprep.subr.mxu0 0.0
  %893 = vmatpush2.msra.mxu0 0.0
  %894 = vmatprep.subr.mxu0 0.0
  %895 = vmatpush2.msra.mxu0 0.0
  %896 = vmatprep.subr.mxu0 0.0
  %897 = vmatpush2.msra.mxu0 0.0
  %898 = vmatprep.subr.mxu0 0.0
  %899 = vmatpush2.msra.mxu0 0.0
  %900 = vmatprep.subr.mxu0 0.0
  %901 = vmatpush2.msra.mxu0 0.0
  %902 = vmatprep.subr.mxu0 0.0
  %903 = vmatpush2.msra.mxu0 0.0
  %904 = vmatprep.subr.mxu0 0.0
  %905 = vmatpush2.msra.mxu0 0.0
  %906 = vmatprep.subr.mxu0 0.0
  %907 = vmatpush2.msra.mxu0 0.0
  %908 = vmatprep.subr.mxu0 0.0
  %909 = vmatpush2.msra.mxu0 0.0
  %910 = vmatprep.mubr.f32.mxu0 0.0
  %911 = vmatmul.mubr.f32.gmra.mxu0 %v830
  %v912 = vpop.f32.mrf.mxu0
  %v913 = vadd.f32 0.0, %v912
  %v914 = vpop.f32.mrf.mxu0
  %915 = vmatprep.mubr.f32.mxu0 0.0
  %916 = vmatmul.mubr.f32.gmra.mxu0 %v831
  %v917 = vpop.f32.mrf.mxu0
  %v918 = vadd.f32 0.0, %v917
  %v919 = vpop.f32.mrf.mxu0
  %920 = vmatprep.mubr.f32.mxu0 0.0
  %921 = vmatmul.mubr.f32.gmra.mxu0 %v832
  %v922 = vpop.f32.mrf.mxu0
  %v923 = vadd.f32 0.0, %v922
  %v924 = vpop.f32.mrf.mxu0
  %925 = vmatprep.mubr.f32.mxu0 0.0
  %926 = vmatmul.mubr.f32.gmra.mxu0 %v833
  %v927 = vpop.f32.mrf.mxu0
  %v928 = vadd.f32 0.0, %v927
  %v929 = vpop.f32.mrf.mxu0
  %930 = vmatprep.mubr.f32.mxu0 0.0
  %931 = vmatmul.mubr.f32.gmra.mxu0 %v834
  %v932 = vpop.f32.mrf.mxu0
  %v933 = vadd.f32 0.0, %v932
  %v934 = vpop.f32.mrf.mxu0
  %935 = vmatprep.mubr.f32.mxu0 0.0
  %936 = vmatmul.mubr.f32.gmra.mxu0 %v835
  %v937 = vpop.f32.mrf.mxu0
  %v938 = vadd.f32 0.0, %v937
  %v939 = vpop.f32.mrf.mxu0
  %940 = vmatprep.mubr.f32.mxu0 0.0
  %941 = vmatmul.mubr.f32.gmra.mxu0 %v836
  %v942 = vpop.f32.mrf.mxu0
  %v943 = vadd.f32 0.0, %v942
  %v944 = vpop.f32.mrf.mxu0
  %945 = vmatprep.mubr.f32.mxu0 0.0
  %946 = vmatmul.mubr.f32.gmra.mxu0 %v837
  %v947 = vpop.f32.mrf.mxu0
  %v948 = vadd.f32 0.0, %v947
  %v949 = vpop.f32.mrf.mxu0
  %950 = vmatprep.mubr.f32.mxu0 0.0
  %951 = vmatmul.mubr.f32.gmra.mxu0 %v838
  %v952 = vpop.f32.mrf.mxu0
  %v953 = vadd.f32 0.0, %v952
  %v954 = vpop.f32.mrf.mxu0
  %955 = vmatprep.mubr.f32.mxu0 0.0
  %956 = vmatmul.mubr.f32.gmra.mxu0 %v839
  %v957 = vpop.f32.mrf.mxu0
  %v958 = vadd.f32 0.0, %v957
  %v959 = vpop.f32.mrf.mxu0
  %960 = vmatprep.mubr.f32.mxu0 0.0
  %961 = vmatmul.mubr.f32.gmra.mxu0 %v840
  %v962 = vpop.f32.mrf.mxu0
  %v963 = vadd.f32 0.0, %v962
  %v964 = vpop.f32.mrf.mxu0
  %965 = vmatprep.mubr.f32.mxu0 0.0
  %966 = vmatmul.mubr.f32.gmra.mxu0 %v841
  %v967 = vpop.f32.mrf.mxu0
  %v968 = vadd.f32 0.0, %v967
  %v969 = vpop.f32.mrf.mxu0
  %970 = vmatprep.mubr.f32.mxu0 0.0
  %971 = vmatmul.mubr.f32.gmra.mxu0 %v842
  %v972 = vpop.f32.mrf.mxu0
  %v973 = vadd.f32 0.0, %v972
  %v974 = vpop.f32.mrf.mxu0
  %975 = vmatprep.mubr.f32.mxu0 0.0
  %976 = vmatmul.mubr.f32.gmra.mxu0 %v843
  %v977 = vpop.f32.mrf.mxu0
  %v978 = vadd.f32 0.0, %v977
  %v979 = vpop.f32.mrf.mxu0
  %980 = vmatprep.mubr.f32.mxu0 0.0
  %981 = vmatmul.mubr.f32.gmra.mxu0 %v844
  %v982 = vpop.f32.mrf.mxu0
  %v983 = vadd.f32 0.0, %v982
  %v984 = vpop.f32.mrf.mxu0
  %985 = vmatprep.mubr.f32.mxu0 0.0
  %986 = vmatmul.mubr.f32.gmra.mxu0 %v845
  %v987 = vpop.f32.mrf.mxu0
  %v988 = vadd.f32 0.0, %v987
  %v989 = vpop.f32.mrf.mxu0
  %990 = vdwg.mxu0
  %991 = vmatprep.subr.mxu0 0.0
  %992 = vmatpush1.msra.mxu0 %v845
  %993 = vmatprep.subr.mxu0 0.0
  %994 = vmatpush1.msra.mxu0 %v844
  %995 = vmatprep.subr.mxu0 0.0
  %996 = vmatpush1.msra.mxu0 %v843
  %997 = vmatprep.subr.mxu0 0.0
  %998 = vmatpush1.msra.mxu0 %v842
  %999 = vmatprep.subr.mxu0 0.0
  %1000 = vmatpush1.msra.mxu0 %v841
  %1001 = vmatprep.subr.mxu0 0.0
  %1002 = vmatpush1.msra.mxu0 %v840
  %1003 = vmatprep.subr.mxu0 0.0
  %1004 = vmatpush1.msra.mxu0 %v839
  %1005 = vmatprep.subr.mxu0 0.0
  %1006 = vmatpush1.msra.mxu0 %v838
  %1007 = vmatprep.subr.mxu0 0.0
  %1008 = vmatpush1.msra.mxu0 %v837
  %1009 = vmatprep.subr.mxu0 0.0
  %1010 = vmatpush1.msra.mxu0 %v836
  %1011 = vmatprep.subr.mxu0 0.0
  %1012 = vmatpush1.msra.mxu0 %v835
  %1013 = vmatprep.subr.mxu0 0.0
  %1014 = vmatpush1.msra.mxu0 %v834
  %1015 = vmatprep.subr.mxu0 0.0
  %1016 = vmatpush1.msra.mxu0 %v833
  %1017 = vmatprep.subr.mxu0 0.0
  %1018 = vmatpush1.msra.mxu0 %v832
  %1019 = vmatprep.subr.mxu0 0.0
  %1020 = vmatpush1.msra.mxu0 %v831
  %1021 = vmatprep.subr.mxu0 0.0
  %1022 = vmatpush1.msra.mxu0 %v830
  %1023 = vmatprep.subr.mxu0 0.0
  %1024 = vmatpush2.msra.mxu0 0.0
  %1025 = vmatprep.subr.mxu0 0.0
  %1026 = vmatpush2.msra.mxu0 0.0
  %1027 = vmatprep.subr.mxu0 0.0
  %1028 = vmatpush2.msra.mxu0 0.0
  %1029 = vmatprep.subr.mxu0 0.0
  %1030 = vmatpush2.msra.mxu0 0.0
  %1031 = vmatprep.subr.mxu0 0.0
  %1032 = vmatpush2.msra.mxu0 0.0
  %1033 = vmatprep.subr.mxu0 0.0
  %1034 = vmatpush2.msra.mxu0 0.0
  %1035 = vmatprep.subr.mxu0 0.0
  %1036 = vmatpush2.msra.mxu0 0.0
  %1037 = vmatprep.subr.mxu0 0.0
  %1038 = vmatpush2.msra.mxu0 0.0
  %1039 = vmatprep.subr.mxu0 0.0
  %1040 = vmatpush2.msra.mxu0 0.0
  %1041 = vmatprep.subr.mxu0 0.0
  %1042 = vmatpush2.msra.mxu0 0.0
  %1043 = vmatprep.subr.mxu0 0.0
  %1044 = vmatpush2.msra.mxu0 0.0
  %1045 = vmatprep.subr.mxu0 0.0
  %1046 = vmatpush2.msra.mxu0 0.0
  %1047 = vmatprep.subr.mxu0 0.0
  %1048 = vmatpush2.msra.mxu0 0.0
  %1049 = vmatprep.subr.mxu0 0.0
  %1050 = vmatpush2.msra.mxu0 0.0
  %1051 = vmatprep.subr.mxu0 0.0
  %1052 = vmatpush2.msra.mxu0 0.0
  %1053 = vmatprep.subr.mxu0 0.0
  %1054 = vmatpush2.msra.mxu0 0.0
  %1055 = vmatprep.mubr.f32.mxu0 0.0
  %1056 = vmatmul.mubr.f32.gmra.mxu0 %v913
  %v1057 = vpop.f32.mrf.mxu0
  %v1058 = vadd.f32 0.0, %v1057
  %v1059 = vpop.f32.mrf.mxu0
  %1060 = vmatprep.mubr.f32.mxu0 0.0
  %1061 = vmatmul.mubr.f32.gmra.mxu0 %v918
  %v1062 = vpop.f32.mrf.mxu0
  %v1063 = vadd.f32 0.0, %v1062
  %v1064 = vpop.f32.mrf.mxu0
  %1065 = vmatprep.mubr.f32.mxu0 0.0
  %1066 = vmatmul.mubr.f32.gmra.mxu0 %v923
  %v1067 = vpop.f32.mrf.mxu0
  %v1068 = vadd.f32 0.0, %v1067
  %v1069 = vpop.f32.mrf.mxu0
  %1070 = vmatprep.mubr.f32.mxu0 0.0
  %1071 = vmatmul.mubr.f32.gmra.mxu0 %v928
  %v1072 = vpop.f32.mrf.mxu0
  %v1073 = vadd.f32 0.0, %v1072
  %v1074 = vpop.f32.mrf.mxu0
  %1075 = vmatprep.mubr.f32.mxu0 0.0
  %1076 = vmatmul.mubr.f32.gmra.mxu0 %v933
  %v1077 = vpop.f32.mrf.mxu0
  %v1078 = vadd.f32 0.0, %v1077
  %v1079 = vpop.f32.mrf.mxu0
  %1080 = vmatprep.mubr.f32.mxu0 0.0
  %1081 = vmatmul.mubr.f32.gmra.mxu0 %v938
  %v1082 = vpop.f32.mrf.mxu0
  %v1083 = vadd.f32 0.0, %v1082
  %v1084 = vpop.f32.mrf.mxu0
  %1085 = vmatprep.mubr.f32.mxu0 0.0
  %1086 = vmatmul.mubr.f32.gmra.mxu0 %v943
  %v1087 = vpop.f32.mrf.mxu0
  %v1088 = vadd.f32 0.0, %v1087
  %v1089 = vpop.f32.mrf.mxu0
  %1090 = vmatprep.mubr.f32.mxu0 0.0
  %1091 = vmatmul.mubr.f32.gmra.mxu0 %v948
  %v1092 = vpop.f32.mrf.mxu0
  %v1093 = vadd.f32 0.0, %v1092
  %v1094 = vpop.f32.mrf.mxu0
  %1095 = vmatprep.mubr.f32.mxu0 0.0
  %1096 = vmatmul.mubr.f32.gmra.mxu0 %v953
  %v1097 = vpop.f32.mrf.mxu0
  %v1098 = vadd.f32 0.0, %v1097
  %v1099 = vpop.f32.mrf.mxu0
  %1100 = vmatprep.mubr.f32.mxu0 0.0
  %1101 = vmatmul.mubr.f32.gmra.mxu0 %v958
  %v1102 = vpop.f32.mrf.mxu0
  %v1103 = vadd.f32 0.0, %v1102
  %v1104 = vpop.f32.mrf.mxu0
  %1105 = vmatprep.mubr.f32.mxu0 0.0
  %1106 = vmatmul.mubr.f32.gmra.mxu0 %v963
  %v1107 = vpop.f32.mrf.mxu0
  %v1108 = vadd.f32 0.0, %v1107
  %v1109 = vpop.f32.mrf.mxu0
  %1110 = vmatprep.mubr.f32.mxu0 0.0
  %1111 = vmatmul.mubr.f32.gmra.mxu0 %v968
  %v1112 = vpop.f32.mrf.mxu0
  %v1113 = vadd.f32 0.0, %v1112
  %v1114 = vpop.f32.mrf.mxu0
  %1115 = vmatprep.mubr.f32.mxu0 0.0
  %1116 = vmatmul.mubr.f32.gmra.mxu0 %v973
  %v1117 = vpop.f32.mrf.mxu0
  %v1118 = vadd.f32 0.0, %v1117
  %v1119 = vpop.f32.mrf.mxu0
  %1120 = vmatprep.mubr.f32.mxu0 0.0
  %1121 = vmatmul.mubr.f32.gmra.mxu0 %v978
  %v1122 = vpop.f32.mrf.mxu0
  %v1123 = vadd.f32 0.0, %v1122
  %v1124 = vpop.f32.mrf.mxu0
  %1125 = vmatprep.mubr.f32.mxu0 0.0
  %1126 = vmatmul.mubr.f32.gmra.mxu0 %v983
  %v1127 = vpop.f32.mrf.mxu0
  %v1128 = vadd.f32 0.0, %v1127
  %v1129 = vpop.f32.mrf.mxu0
  %1130 = vmatprep.mubr.f32.mxu0 0.0
  %1131 = vmatmul.mubr.f32.gmra.mxu0 %v988
  %v1132 = vpop.f32.mrf.mxu0
  %v1133 = vadd.f32 0.0, %v1132
  %v1134 = vpop.f32.mrf.mxu0
  %1135 = vdwg.mxu0
  %1136 = vxpose.xlu0.b32.start [1/16] %v1058, 128
  %1137 = vxpose.xlu0.b32.cont [2/16] %v1063, 128
  %1138 = vxpose.xlu0.b32.cont [3/16] %v1068, 128
  %1139 = vxpose.xlu0.b32.cont [4/16] %v1073, 128
  %1140 = vxpose.xlu0.b32.cont [5/16] %v1078, 128
  %1141 = vxpose.xlu0.b32.cont [6/16] %v1083, 128
  %1142 = vxpose.xlu0.b32.cont [7/16] %v1088, 128
  %1143 = vxpose.xlu0.b32.cont [8/16] %v1093, 128
  %1144 = vxpose.xlu0.b32.cont [9/16] %v1098, 128
  %1145 = vxpose.xlu0.b32.cont [10/16] %v1103, 128
  %1146 = vxpose.xlu0.b32.cont [11/16] %v1108, 128
  %1147 = vxpose.xlu0.b32.cont [12/16] %v1113, 128
  %1148 = vxpose.xlu0.b32.cont [13/16] %v1118, 128
  %1149 = vxpose.xlu0.b32.cont [14/16] %v1123, 128
  %1150 = vxpose.xlu0.b32.cont [15/16] %v1128, 128
  %1151 = vxpose.xlu0.b32.end [16/16] %v1133, 128
  %v1152 = vpop.trf.xlu0
  %v1153 = vpop.trf.xlu0
  %v1154 = vpop.trf.xlu0
  %v1155 = vpop.trf.xlu0
  %v1156 = vpop.trf.xlu0
  %v1157 = vpop.trf.xlu0
  %v1158 = vpop.trf.xlu0
  %v1159 = vpop.trf.xlu0
  %v1160 = vpop.trf.xlu0
  %v1161 = vpop.trf.xlu0
  %v1162 = vpop.trf.xlu0
  %v1163 = vpop.trf.xlu0
  %v1164 = vpop.trf.xlu0
  %v1165 = vpop.trf.xlu0
  %v1166 = vpop.trf.xlu0
  %v1167 = vpop.trf.xlu0
  %v1168 = vadd.f32 %v1058, %v1152
  %v1169 = vadd.f32 %v1063, %v1153
  %v1170 = vadd.f32 %v1068, %v1154
  %v1171 = vadd.f32 %v1073, %v1155
  %v1172 = vadd.f32 %v1078, %v1156
  %v1173 = vadd.f32 %v1083, %v1157
  %v1174 = vadd.f32 %v1088, %v1158
  %v1175 = vadd.f32 %v1093, %v1159
  %v1176 = vadd.f32 %v1098, %v1160
  %v1177 = vadd.f32 %v1103, %v1161
  %v1178 = vadd.f32 %v1108, %v1162
  %v1179 = vadd.f32 %v1113, %v1163
  %v1180 = vadd.f32 %v1118, %v1164
  %v1181 = vadd.f32 %v1123, %v1165
  %v1182 = vadd.f32 %v1128, %v1166
  %v1183 = vadd.f32 %v1133, %v1167
  %v1184 = vmul.f32 %v1168, 0.5
  %v1185 = vmul.f32 %v1169, 0.5
  %v1186 = vmul.f32 %v1170, 0.5
  %v1187 = vmul.f32 %v1171, 0.5
  %v1188 = vmul.f32 %v1172, 0.5
  %v1189 = vmul.f32 %v1173, 0.5
  %v1190 = vmul.f32 %v1174, 0.5
  %v1191 = vmul.f32 %v1175, 0.5
  %v1192 = vmul.f32 %v1176, 0.5
  %v1193 = vmul.f32 %v1177, 0.5
  %v1194 = vmul.f32 %v1178, 0.5
  %v1195 = vmul.f32 %v1179, 0.5
  %v1196 = vmul.f32 %v1180, 0.5
  %v1197 = vmul.f32 %v1181, 0.5
  %v1198 = vmul.f32 %v1182, 0.5
  %v1199 = vmul.f32 %v1183, 0.5
  %v1200 = vmul.f32 %v1184, %v1184
  %v1201 = vmul.f32 %v1185, %v1185
  %v1202 = vmul.f32 %v1186, %v1186
  %v1203 = vmul.f32 %v1187, %v1187
  %v1204 = vmul.f32 %v1188, %v1188
  %v1205 = vmul.f32 %v1189, %v1189
  %v1206 = vmul.f32 %v1190, %v1190
  %v1207 = vmul.f32 %v1191, %v1191
  %v1208 = vmul.f32 %v1192, %v1192
  %v1209 = vmul.f32 %v1193, %v1193
  %v1210 = vmul.f32 %v1194, %v1194
  %v1211 = vmul.f32 %v1195, %v1195
  %v1212 = vmul.f32 %v1196, %v1196
  %v1213 = vmul.f32 %v1197, %v1197
  %v1214 = vmul.f32 %v1198, %v1198
  %v1215 = vmul.f32 %v1199, %v1199
  %v1216 = vadd.f32 %v1200, %v1201
  %v1217 = vadd.f32 %v1216, %v1202
  %v1218 = vadd.f32 %v1217, %v1203
  %v1219 = vadd.f32 %v1218, %v1204
  %v1220 = vadd.f32 %v1219, %v1205
  %v1221 = vadd.f32 %v1220, %v1206
  %v1222 = vadd.f32 %v1221, %v1207
  %v1223 = vadd.f32 %v1222, %v1208
  %v1224 = vadd.f32 %v1223, %v1209
  %v1225 = vadd.f32 %v1224, %v1210
  %v1226 = vadd.f32 %v1225, %v1211
  %v1227 = vadd.f32 %v1226, %v1212
  %v1228 = vadd.f32 %v1227, %v1213
  %v1229 = vadd.f32 %v1228, %v1214
  %v1230 = vadd.f32 %v1229, %v1215
  %1231 = vadd.xlane.f32.xlu0 %v1230
  %v1232 = vpop.xlane.xlu0 %1231
  %v1233 = vrot.slane %v1232, 4
  %v1234 = vadd.f32 %v1232, %v1233
  %v1235 = vrot.slane %v1234, 2
  %v1236 = vadd.f32 %v1234, %v1235
  %v1237 = vrot.slane %v1236, 1
  %v1238 = vadd.f32 %v1236, %v1237
  %s1239 = vtos %v1238
  %v1240 = vstv %s1239
  %v1241 = vadd.f32 %v1240, 1e-12
  %v1242 = vrsqrt.pop %v1241
  %v1243 = vmul.f32 %v1184, %v1242
  %v1244 = vmul.f32 %v1185, %v1242
  %v1245 = vmul.f32 %v1186, %v1242
  %v1246 = vmul.f32 %v1187, %v1242
  %v1247 = vmul.f32 %v1188, %v1242
  %v1248 = vmul.f32 %v1189, %v1242
  %v1249 = vmul.f32 %v1190, %v1242
  %v1250 = vmul.f32 %v1191, %v1242
  %v1251 = vmul.f32 %v1192, %v1242
  %v1252 = vmul.f32 %v1193, %v1242
  %v1253 = vmul.f32 %v1194, %v1242
  %v1254 = vmul.f32 %v1195, %v1242
  %v1255 = vmul.f32 %v1196, %v1242
  %v1256 = vmul.f32 %v1197, %v1242
  %v1257 = vmul.f32 %v1198, %v1242
  %v1258 = vmul.f32 %v1199, %v1242
  loop: start=0, step=1, limit=20
  $region13: #{fvd_loss.3} parent=0 // loop_pre_header
    _
  $region14: #{fvd_loss.3} parent=0 // loop_header
    %s1260 = sphi 0, %s1264
    %p1261 = scmp.ge.s32.totalorder %s1260, 20
    %v1265 = vphi %v1243, %v1557
    %v1266 = vphi %v1244, %v1562
    %v1267 = vphi %v1245, %v1567
    %v1268 = vphi %v1246, %v1572
    %v1269 = vphi %v1247, %v1577
    %v1270 = vphi %v1248, %v1582
    %v1271 = vphi %v1249, %v1587
    %v1272 = vphi %v1250, %v1592
    %v1273 = vphi %v1251, %v1597
    %v1274 = vphi %v1252, %v1602
    %v1275 = vphi %v1253, %v1607
    %v1276 = vphi %v1254, %v1612
    %v1277 = vphi %v1255, %v1617
    %v1278 = vphi %v1256, %v1622
    %v1279 = vphi %v1257, %v1627
    %v1280 = vphi %v1258, %v1632
    %v1281 = vphi %v59, %v1702
    %v1282 = vphi %v60, %v1707
    %v1283 = vphi %v61, %v1712
    %v1284 = vphi %v62, %v1717
    %v1285 = vphi %v63, %v1722
    %v1286 = vphi %v64, %v1727
    %v1287 = vphi %v65, %v1732
    %v1288 = vphi %v66, %v1737
    %v1289 = vphi %v67, %v1742
    %v1290 = vphi %v68, %v1747
    %v1291 = vphi %v69, %v1752
    %v1292 = vphi %v70, %v1757
    %v1293 = vphi %v71, %v1762
    %v1294 = vphi %v72, %v1767
    %v1295 = vphi %v73, %v1772
    %v1296 = vphi %v74, %v1777
  $region15: #{fvd_loss.3} parent=0 // loop_header_branch
    %1263 = sbr.rel (%p1261) target = $region19
  $region16: #{fvd_loss.3} parent=0 // loop_body
    %v1297 = vmul.f32 %v59, 3.0
    %v1298 = vmul.f32 %v60, 3.0
    %v1299 = vmul.f32 %v61, 3.0
    %v1300 = vmul.f32 %v62, 3.0
    %v1301 = vmul.f32 %v63, 3.0
    %v1302 = vmul.f32 %v64, 3.0
    %v1303 = vmul.f32 %v65, 3.0
    %v1304 = vmul.f32 %v66, 3.0
    %v1305 = vmul.f32 %v67, 3.0
    %v1306 = vmul.f32 %v68, 3.0
    %v1307 = vmul.f32 %v69, 3.0
    %v1308 = vmul.f32 %v70, 3.0
    %v1309 = vmul.f32 %v71, 3.0
    %v1310 = vmul.f32 %v72, 3.0
    %v1311 = vmul.f32 %v73, 3.0
    %v1312 = vmul.f32 %v74, 3.0
    %1313 = vmatprep.subr.mxu0 0.0
    %1314 = vmatpush1.msra.mxu0 %v1280
    %1315 = vmatprep.subr.mxu0 0.0
    %1316 = vmatpush1.msra.mxu0 %v1279
    %1317 = vmatprep.subr.mxu0 0.0
    %1318 = vmatpush1.msra.mxu0 %v1278
    %1319 = vmatprep.subr.mxu0 0.0
    %1320 = vmatpush1.msra.mxu0 %v1277
    %1321 = vmatprep.subr.mxu0 0.0
    %1322 = vmatpush1.msra.mxu0 %v1276
    %1323 = vmatprep.subr.mxu0 0.0
    %1324 = vmatpush1.msra.mxu0 %v1275
    %1325 = vmatprep.subr.mxu0 0.0
    %1326 = vmatpush1.msra.mxu0 %v1274
    %1327 = vmatprep.subr.mxu0 0.0
    %1328 = vmatpush1.msra.mxu0 %v1273
    %1329 = vmatprep.subr.mxu0 0.0
    %1330 = vmatpush1.msra.mxu0 %v1272
    %1331 = vmatprep.subr.mxu0 0.0
    %1332 = vmatpush1.msra.mxu0 %v1271
    %1333 = vmatprep.subr.mxu0 0.0
    %1334 = vmatpush1.msra.mxu0 %v1270
    %1335 = vmatprep.subr.mxu0 0.0
    %1336 = vmatpush1.msra.mxu0 %v1269
    %1337 = vmatprep.subr.mxu0 0.0
    %1338 = vmatpush1.msra.mxu0 %v1268
    %1339 = vmatprep.subr.mxu0 0.0
    %1340 = vmatpush1.msra.mxu0 %v1267
    %1341 = vmatprep.subr.mxu0 0.0
    %1342 = vmatpush1.msra.mxu0 %v1266
    %1343 = vmatprep.subr.mxu0 0.0
    %1344 = vmatpush1.msra.mxu0 %v1265
    %1345 = vmatprep.subr.mxu0 0.0
    %1346 = vmatpush2.msra.mxu0 0.0
    %1347 = vmatprep.subr.mxu0 0.0
    %1348 = vmatpush2.msra.mxu0 0.0
    %1349 = vmatprep.subr.mxu0 0.0
    %1350 = vmatpush2.msra.mxu0 0.0
    %1351 = vmatprep.subr.mxu0 0.0
    %1352 = vmatpush2.msra.mxu0 0.0
    %1353 = vmatprep.subr.mxu0 0.0
    %1354 = vmatpush2.msra.mxu0 0.0
    %1355 = vmatprep.subr.mxu0 0.0
    %1356 = vmatpush2.msra.mxu0 0.0
    %1357 = vmatprep.subr.mxu0 0.0
    %1358 = vmatpush2.msra.mxu0 0.0
    %1359 = vmatprep.subr.mxu0 0.0
    %1360 = vmatpush2.msra.mxu0 0.0
    %1361 = vmatprep.subr.mxu0 0.0
    %1362 = vmatpush2.msra.mxu0 0.0
    %1363 = vmatprep.subr.mxu0 0.0
    %1364 = vmatpush2.msra.mxu0 0.0
    %1365 = vmatprep.subr.mxu0 0.0
    %1366 = vmatpush2.msra.mxu0 0.0
    %1367 = vmatprep.subr.mxu0 0.0
    %1368 = vmatpush2.msra.mxu0 0.0
    %1369 = vmatprep.subr.mxu0 0.0
    %1370 = vmatpush2.msra.mxu0 0.0
    %1371 = vmatprep.subr.mxu0 0.0
    %1372 = vmatpush2.msra.mxu0 0.0
    %1373 = vmatprep.subr.mxu0 0.0
    %1374 = vmatpush2.msra.mxu0 0.0
    %1375 = vmatprep.subr.mxu0 0.0
    %1376 = vmatpush2.msra.mxu0 0.0
    %1377 = vmatprep.mubr.f32.mxu0 0.0
    %1378 = vmatmul.mubr.f32.gmra.mxu0 %v1281
    %v1379 = vpop.f32.mrf.mxu0
    %v1380 = vadd.f32 0.0, %v1379
    %v1381 = vpop.f32.mrf.mxu0
    %1382 = vmatprep.mubr.f32.mxu0 0.0
    %1383 = vmatmul.mubr.f32.gmra.mxu0 %v1282
    %v1384 = vpop.f32.mrf.mxu0
    %v1385 = vadd.f32 0.0, %v1384
    %v1386 = vpop.f32.mrf.mxu0
    %1387 = vmatprep.mubr.f32.mxu0 0.0
    %1388 = vmatmul.mubr.f32.gmra.mxu0 %v1283
    %v1389 = vpop.f32.mrf.mxu0
    %v1390 = vadd.f32 0.0, %v1389
    %v1391 = vpop.f32.mrf.mxu0
    %1392 = vmatprep.mubr.f32.mxu0 0.0
    %1393 = vmatmul.mubr.f32.gmra.mxu0 %v1284
    %v1394 = vpop.f32.mrf.mxu0
    %v1395 = vadd.f32 0.0, %v1394
    %v1396 = vpop.f32.mrf.mxu0
    %1397 = vmatprep.mubr.f32.mxu0 0.0
    %1398 = vmatmul.mubr.f32.gmra.mxu0 %v1285
    %v1399 = vpop.f32.mrf.mxu0
    %v1400 = vadd.f32 0.0, %v1399
    %v1401 = vpop.f32.mrf.mxu0
    %1402 = vmatprep.mubr.f32.mxu0 0.0
    %1403 = vmatmul.mubr.f32.gmra.mxu0 %v1286
    %v1404 = vpop.f32.mrf.mxu0
    %v1405 = vadd.f32 0.0, %v1404
    %v1406 = vpop.f32.mrf.mxu0
    %1407 = vmatprep.mubr.f32.mxu0 0.0
    %1408 = vmatmul.mubr.f32.gmra.mxu0 %v1287
    %v1409 = vpop.f32.mrf.mxu0
    %v1410 = vadd.f32 0.0, %v1409
    %v1411 = vpop.f32.mrf.mxu0
    %1412 = vmatprep.mubr.f32.mxu0 0.0
    %1413 = vmatmul.mubr.f32.gmra.mxu0 %v1288
    %v1414 = vpop.f32.mrf.mxu0
    %v1415 = vadd.f32 0.0, %v1414
    %v1416 = vpop.f32.mrf.mxu0
    %1417 = vmatprep.mubr.f32.mxu0 0.0
    %1418 = vmatmul.mubr.f32.gmra.mxu0 %v1289
    %v1419 = vpop.f32.mrf.mxu0
    %v1420 = vadd.f32 0.0, %v1419
    %v1421 = vpop.f32.mrf.mxu0
    %1422 = vmatprep.mubr.f32.mxu0 0.0
    %1423 = vmatmul.mubr.f32.gmra.mxu0 %v1290
    %v1424 = vpop.f32.mrf.mxu0
    %v1425 = vadd.f32 0.0, %v1424
    %v1426 = vpop.f32.mrf.mxu0
    %1427 = vmatprep.mubr.f32.mxu0 0.0
    %1428 = vmatmul.mubr.f32.gmra.mxu0 %v1291
    %v1429 = vpop.f32.mrf.mxu0
    %v1430 = vadd.f32 0.0, %v1429
    %v1431 = vpop.f32.mrf.mxu0
    %1432 = vmatprep.mubr.f32.mxu0 0.0
    %1433 = vmatmul.mubr.f32.gmra.mxu0 %v1292
    %v1434 = vpop.f32.mrf.mxu0
    %v1435 = vadd.f32 0.0, %v1434
    %v1436 = vpop.f32.mrf.mxu0
    %1437 = vmatprep.mubr.f32.mxu0 0.0
    %1438 = vmatmul.mubr.f32.gmra.mxu0 %v1293
    %v1439 = vpop.f32.mrf.mxu0
    %v1440 = vadd.f32 0.0, %v1439
    %v1441 = vpop.f32.mrf.mxu0
    %1442 = vmatprep.mubr.f32.mxu0 0.0
    %1443 = vmatmul.mubr.f32.gmra.mxu0 %v1294
    %v1444 = vpop.f32.mrf.mxu0
    %v1445 = vadd.f32 0.0, %v1444
    %v1446 = vpop.f32.mrf.mxu0
    %1447 = vmatprep.mubr.f32.mxu0 0.0
    %1448 = vmatmul.mubr.f32.gmra.mxu0 %v1295
    %v1449 = vpop.f32.mrf.mxu0
    %v1450 = vadd.f32 0.0, %v1449
    %v1451 = vpop.f32.mrf.mxu0
    %1452 = vmatprep.mubr.f32.mxu0 0.0
    %1453 = vmatmul.mubr.f32.gmra.mxu0 %v1296
    %v1454 = vpop.f32.mrf.mxu0
    %v1455 = vadd.f32 0.0, %v1454
    %v1456 = vpop.f32.mrf.mxu0
    %1457 = vdwg.mxu0
    %v1458 = vsub.f32 %v1297, %v1380
    %v1459 = vsub.f32 %v1298, %v1385
    %v1460 = vsub.f32 %v1299, %v1390
    %v1461 = vsub.f32 %v1300, %v1395
    %v1462 = vsub.f32 %v1301, %v1400
    %v1463 = vsub.f32 %v1302, %v1405
    %v1464 = vsub.f32 %v1303, %v1410
    %v1465 = vsub.f32 %v1304, %v1415
    %v1466 = vsub.f32 %v1305, %v1420
    %v1467 = vsub.f32 %v1306, %v1425
    %v1468 = vsub.f32 %v1307, %v1430
    %v1469 = vsub.f32 %v1308, %v1435
    %v1470 = vsub.f32 %v1309, %v1440
    %v1471 = vsub.f32 %v1310, %v1445
    %v1472 = vsub.f32 %v1311, %v1450
    %v1473 = vsub.f32 %v1312, %v1455
    %v1474 = vmul.f32 %v1458, 0.5
    %v1475 = vmul.f32 %v1459, 0.5
    %v1476 = vmul.f32 %v1460, 0.5
    %v1477 = vmul.f32 %v1461, 0.5
    %v1478 = vmul.f32 %v1462, 0.5
    %v1479 = vmul.f32 %v1463, 0.5
    %v1480 = vmul.f32 %v1464, 0.5
    %v1481 = vmul.f32 %v1465, 0.5
    %v1482 = vmul.f32 %v1466, 0.5
    %v1483 = vmul.f32 %v1467, 0.5
    %v1484 = vmul.f32 %v1468, 0.5
    %v1485 = vmul.f32 %v1469, 0.5
    %v1486 = vmul.f32 %v1470, 0.5
    %v1487 = vmul.f32 %v1471, 0.5
    %v1488 = vmul.f32 %v1472, 0.5
    %v1489 = vmul.f32 %v1473, 0.5
    %1490 = vmatprep.subr.mxu0 0.0
    %1491 = vmatpush1.msra.mxu0 %v1489
    %1492 = vmatprep.subr.mxu0 0.0
    %1493 = vmatpush1.msra.mxu0 %v1488
    %1494 = vmatprep.subr.mxu0 0.0
    %1495 = vmatpush1.msra.mxu0 %v1487
    %1496 = vmatprep.subr.mxu0 0.0
    %1497 = vmatpush1.msra.mxu0 %v1486
    %1498 = vmatprep.subr.mxu0 0.0
    %1499 = vmatpush1.msra.mxu0 %v1485
    %1500 = vmatprep.subr.mxu0 0.0
    %1501 = vmatpush1.msra.mxu0 %v1484
    %1502 = vmatprep.subr.mxu0 0.0
    %1503 = vmatpush1.msra.mxu0 %v1483
    %1504 = vmatprep.subr.mxu0 0.0
    %1505 = vmatpush1.msra.mxu0 %v1482
    %1506 = vmatprep.subr.mxu0 0.0
    %1507 = vmatpush1.msra.mxu0 %v1481
    %1508 = vmatprep.subr.mxu0 0.0
    %1509 = vmatpush1.msra.mxu0 %v1480
    %1510 = vmatprep.subr.mxu0 0.0
    %1511 = vmatpush1.msra.mxu0 %v1479
    %1512 = vmatprep.subr.mxu0 0.0
    %1513 = vmatpush1.msra.mxu0 %v1478
    %1514 = vmatprep.subr.mxu0 0.0
    %1515 = vmatpush1.msra.mxu0 %v1477
    %1516 = vmatprep.subr.mxu0 0.0
    %1517 = vmatpush1.msra.mxu0 %v1476
    %1518 = vmatprep.subr.mxu0 0.0
    %1519 = vmatpush1.msra.mxu0 %v1475
    %1520 = vmatprep.subr.mxu0 0.0
    %1521 = vmatpush1.msra.mxu0 %v1474
    %1522 = vmatprep.subr.mxu0 0.0
    %1523 = vmatpush2.msra.mxu0 0.0
    %1524 = vmatprep.subr.mxu0 0.0
    %1525 = vmatpush2.msra.mxu0 0.0
    %1526 = vmatprep.subr.mxu0 0.0
    %1527 = vmatpush2.msra.mxu0 0.0
    %1528 = vmatprep.subr.mxu0 0.0
    %1529 = vmatpush2.msra.mxu0 0.0
    %1530 = vmatprep.subr.mxu0 0.0
    %1531 = vmatpush2.msra.mxu0 0.0
    %1532 = vmatprep.subr.mxu0 0.0
    %1533 = vmatpush2.msra.mxu0 0.0
    %1534 = vmatprep.subr.mxu0 0.0
    %1535 = vmatpush2.msra.mxu0 0.0
    %1536 = vmatprep.subr.mxu0 0.0
    %1537 = vmatpush2.msra.mxu0 0.0
    %1538 = vmatprep.subr.mxu0 0.0
    %1539 = vmatpush2.msra.mxu0 0.0
    %1540 = vmatprep.subr.mxu0 0.0
    %1541 = vmatpush2.msra.mxu0 0.0
    %1542 = vmatprep.subr.mxu0 0.0
    %1543 = vmatpush2.msra.mxu0 0.0
    %1544 = vmatprep.subr.mxu0 0.0
    %1545 = vmatpush2.msra.mxu0 0.0
    %1546 = vmatprep.subr.mxu0 0.0
    %1547 = vmatpush2.msra.mxu0 0.0
    %1548 = vmatprep.subr.mxu0 0.0
    %1549 = vmatpush2.msra.mxu0 0.0
    %1550 = vmatprep.subr.mxu0 0.0
    %1551 = vmatpush2.msra.mxu0 0.0
    %1552 = vmatprep.subr.mxu0 0.0
    %1553 = vmatpush2.msra.mxu0 0.0
    %1554 = vmatprep.mubr.f32.mxu0 0.0
    %1555 = vmatmul.mubr.f32.gmra.mxu0 %v1265
    %v1556 = vpop.f32.mrf.mxu0
    %v1557 = vadd.f32 0.0, %v1556
    %v1558 = vpop.f32.mrf.mxu0
    %1559 = vmatprep.mubr.f32.mxu0 0.0
    %1560 = vmatmul.mubr.f32.gmra.mxu0 %v1266
    %v1561 = vpop.f32.mrf.mxu0
    %v1562 = vadd.f32 0.0, %v1561
    %v1563 = vpop.f32.mrf.mxu0
    %1564 = vmatprep.mubr.f32.mxu0 0.0
    %1565 = vmatmul.mubr.f32.gmra.mxu0 %v1267
    %v1566 = vpop.f32.mrf.mxu0
    %v1567 = vadd.f32 0.0, %v1566
    %v1568 = vpop.f32.mrf.mxu0
    %1569 = vmatprep.mubr.f32.mxu0 0.0
    %1570 = vmatmul.mubr.f32.gmra.mxu0 %v1268
    %v1571 = vpop.f32.mrf.mxu0
    %v1572 = vadd.f32 0.0, %v1571
    %v1573 = vpop.f32.mrf.mxu0
    %1574 = vmatprep.mubr.f32.mxu0 0.0
    %1575 = vmatmul.mubr.f32.gmra.mxu0 %v1269
    %v1576 = vpop.f32.mrf.mxu0
    %v1577 = vadd.f32 0.0, %v1576
    %v1578 = vpop.f32.mrf.mxu0
    %1579 = vmatprep.mubr.f32.mxu0 0.0
    %1580 = vmatmul.mubr.f32.gmra.mxu0 %v1270
    %v1581 = vpop.f32.mrf.mxu0
    %v1582 = vadd.f32 0.0, %v1581
    %v1583 = vpop.f32.mrf.mxu0
    %1584 = vmatprep.mubr.f32.mxu0 0.0
    %1585 = vmatmul.mubr.f32.gmra.mxu0 %v1271
    %v1586 = vpop.f32.mrf.mxu0
    %v1587 = vadd.f32 0.0, %v1586
    %v1588 = vpop.f32.mrf.mxu0
    %1589 = vmatprep.mubr.f32.mxu0 0.0
    %1590 = vmatmul.mubr.f32.gmra.mxu0 %v1272
    %v1591 = vpop.f32.mrf.mxu0
    %v1592 = vadd.f32 0.0, %v1591
    %v1593 = vpop.f32.mrf.mxu0
    %1594 = vmatprep.mubr.f32.mxu0 0.0
    %1595 = vmatmul.mubr.f32.gmra.mxu0 %v1273
    %v1596 = vpop.f32.mrf.mxu0
    %v1597 = vadd.f32 0.0, %v1596
    %v1598 = vpop.f32.mrf.mxu0
    %1599 = vmatprep.mubr.f32.mxu0 0.0
    %1600 = vmatmul.mubr.f32.gmra.mxu0 %v1274
    %v1601 = vpop.f32.mrf.mxu0
    %v1602 = vadd.f32 0.0, %v1601
    %v1603 = vpop.f32.mrf.mxu0
    %1604 = vmatprep.mubr.f32.mxu0 0.0
    %1605 = vmatmul.mubr.f32.gmra.mxu0 %v1275
    %v1606 = vpop.f32.mrf.mxu0
    %v1607 = vadd.f32 0.0, %v1606
    %v1608 = vpop.f32.mrf.mxu0
    %1609 = vmatprep.mubr.f32.mxu0 0.0
    %1610 = vmatmul.mubr.f32.gmra.mxu0 %v1276
    %v1611 = vpop.f32.mrf.mxu0
    %v1612 = vadd.f32 0.0, %v1611
    %v1613 = vpop.f32.mrf.mxu0
    %1614 = vmatprep.mubr.f32.mxu0 0.0
    %1615 = vmatmul.mubr.f32.gmra.mxu0 %v1277
    %v1616 = vpop.f32.mrf.mxu0
    %v1617 = vadd.f32 0.0, %v1616
    %v1618 = vpop.f32.mrf.mxu0
    %1619 = vmatprep.mubr.f32.mxu0 0.0
    %1620 = vmatmul.mubr.f32.gmra.mxu0 %v1278
    %v1621 = vpop.f32.mrf.mxu0
    %v1622 = vadd.f32 0.0, %v1621
    %v1623 = vpop.f32.mrf.mxu0
    %1624 = vmatprep.mubr.f32.mxu0 0.0
    %1625 = vmatmul.mubr.f32.gmra.mxu0 %v1279
    %v1626 = vpop.f32.mrf.mxu0
    %v1627 = vadd.f32 0.0, %v1626
    %v1628 = vpop.f32.mrf.mxu0
    %1629 = vmatprep.mubr.f32.mxu0 0.0
    %1630 = vmatmul.mubr.f32.gmra.mxu0 %v1280
    %v1631 = vpop.f32.mrf.mxu0
    %v1632 = vadd.f32 0.0, %v1631
    %v1633 = vpop.f32.mrf.mxu0
    %1634 = vdwg.mxu0
    %1635 = vmatprep.subr.mxu0 0.0
    %1636 = vmatpush1.msra.mxu0 %v1296
    %1637 = vmatprep.subr.mxu0 0.0
    %1638 = vmatpush1.msra.mxu0 %v1295
    %1639 = vmatprep.subr.mxu0 0.0
    %1640 = vmatpush1.msra.mxu0 %v1294
    %1641 = vmatprep.subr.mxu0 0.0
    %1642 = vmatpush1.msra.mxu0 %v1293
    %1643 = vmatprep.subr.mxu0 0.0
    %1644 = vmatpush1.msra.mxu0 %v1292
    %1645 = vmatprep.subr.mxu0 0.0
    %1646 = vmatpush1.msra.mxu0 %v1291
    %1647 = vmatprep.subr.mxu0 0.0
    %1648 = vmatpush1.msra.mxu0 %v1290
    %1649 = vmatprep.subr.mxu0 0.0
    %1650 = vmatpush1.msra.mxu0 %v1289
    %1651 = vmatprep.subr.mxu0 0.0
    %1652 = vmatpush1.msra.mxu0 %v1288
    %1653 = vmatprep.subr.mxu0 0.0
    %1654 = vmatpush1.msra.mxu0 %v1287
    %1655 = vmatprep.subr.mxu0 0.0
    %1656 = vmatpush1.msra.mxu0 %v1286
    %1657 = vmatprep.subr.mxu0 0.0
    %1658 = vmatpush1.msra.mxu0 %v1285
    %1659 = vmatprep.subr.mxu0 0.0
    %1660 = vmatpush1.msra.mxu0 %v1284
    %1661 = vmatprep.subr.mxu0 0.0
    %1662 = vmatpush1.msra.mxu0 %v1283
    %1663 = vmatprep.subr.mxu0 0.0
    %1664 = vmatpush1.msra.mxu0 %v1282
    %1665 = vmatprep.subr.mxu0 0.0
    %1666 = vmatpush1.msra.mxu0 %v1281
    %1667 = vmatprep.subr.mxu0 0.0
    %1668 = vmatpush2.msra.mxu0 0.0
    %1669 = vmatprep.subr.mxu0 0.0
    %1670 = vmatpush2.msra.mxu0 0.0
    %1671 = vmatprep.subr.mxu0 0.0
    %1672 = vmatpush2.msra.mxu0 0.0
    %1673 = vmatprep.subr.mxu0 0.0
    %1674 = vmatpush2.msra.mxu0 0.0
    %1675 = vmatprep.subr.mxu0 0.0
    %1676 = vmatpush2.msra.mxu0 0.0
    %1677 = vmatprep.subr.mxu0 0.0
    %1678 = vmatpush2.msra.mxu0 0.0
    %1679 = vmatprep.subr.mxu0 0.0
    %1680 = vmatpush2.msra.mxu0 0.0
    %1681 = vmatprep.subr.mxu0 0.0
    %1682 = vmatpush2.msra.mxu0 0.0
    %1683 = vmatprep.subr.mxu0 0.0
    %1684 = vmatpush2.msra.mxu0 0.0
    %1685 = vmatprep.subr.mxu0 0.0
    %1686 = vmatpush2.msra.mxu0 0.0
    %1687 = vmatprep.subr.mxu0 0.0
    %1688 = vmatpush2.msra.mxu0 0.0
    %1689 = vmatprep.subr.mxu0 0.0
    %1690 = vmatpush2.msra.mxu0 0.0
    %1691 = vmatprep.subr.mxu0 0.0
    %1692 = vmatpush2.msra.mxu0 0.0
    %1693 = vmatprep.subr.mxu0 0.0
    %1694 = vmatpush2.msra.mxu0 0.0
    %1695 = vmatprep.subr.mxu0 0.0
    %1696 = vmatpush2.msra.mxu0 0.0
    %1697 = vmatprep.subr.mxu0 0.0
    %1698 = vmatpush2.msra.mxu0 0.0
    %1699 = vmatprep.mubr.f32.mxu0 0.0
    %1700 = vmatmul.mubr.f32.gmra.mxu0 %v1474
    %v1701 = vpop.f32.mrf.mxu0
    %v1702 = vadd.f32 0.0, %v1701
    %v1703 = vpop.f32.mrf.mxu0
    %1704 = vmatprep.mubr.f32.mxu0 0.0
    %1705 = vmatmul.mubr.f32.gmra.mxu0 %v1475
    %v1706 = vpop.f32.mrf.mxu0
    %v1707 = vadd.f32 0.0, %v1706
    %v1708 = vpop.f32.mrf.mxu0
    %1709 = vmatprep.mubr.f32.mxu0 0.0
    %1710 = vmatmul.mubr.f32.gmra.mxu0 %v1476
    %v1711 = vpop.f32.mrf.mxu0
    %v1712 = vadd.f32 0.0, %v1711
    %v1713 = vpop.f32.mrf.mxu0
    %1714 = vmatprep.mubr.f32.mxu0 0.0
    %1715 = vmatmul.mubr.f32.gmra.mxu0 %v1477
    %v1716 = vpop.f32.mrf.mxu0
    %v1717 = vadd.f32 0.0, %v1716
    %v1718 = vpop.f32.mrf.mxu0
    %1719 = vmatprep.mubr.f32.mxu0 0.0
    %1720 = vmatmul.mubr.f32.gmra.mxu0 %v1478
    %v1721 = vpop.f32.mrf.mxu0
    %v1722 = vadd.f32 0.0, %v1721
    %v1723 = vpop.f32.mrf.mxu0
    %1724 = vmatprep.mubr.f32.mxu0 0.0
    %1725 = vmatmul.mubr.f32.gmra.mxu0 %v1479
    %v1726 = vpop.f32.mrf.mxu0
    %v1727 = vadd.f32 0.0, %v1726
    %v1728 = vpop.f32.mrf.mxu0
    %1729 = vmatprep.mubr.f32.mxu0 0.0
    %1730 = vmatmul.mubr.f32.gmra.mxu0 %v1480
    %v1731 = vpop.f32.mrf.mxu0
    %v1732 = vadd.f32 0.0, %v1731
    %v1733 = vpop.f32.mrf.mxu0
    %1734 = vmatprep.mubr.f32.mxu0 0.0
    %1735 = vmatmul.mubr.f32.gmra.mxu0 %v1481
    %v1736 = vpop.f32.mrf.mxu0
    %v1737 = vadd.f32 0.0, %v1736
    %v1738 = vpop.f32.mrf.mxu0
    %1739 = vmatprep.mubr.f32.mxu0 0.0
    %1740 = vmatmul.mubr.f32.gmra.mxu0 %v1482
    %v1741 = vpop.f32.mrf.mxu0
    %v1742 = vadd.f32 0.0, %v1741
    %v1743 = vpop.f32.mrf.mxu0
    %1744 = vmatprep.mubr.f32.mxu0 0.0
    %1745 = vmatmul.mubr.f32.gmra.mxu0 %v1483
    %v1746 = vpop.f32.mrf.mxu0
    %v1747 = vadd.f32 0.0, %v1746
    %v1748 = vpop.f32.mrf.mxu0
    %1749 = vmatprep.mubr.f32.mxu0 0.0
    %1750 = vmatmul.mubr.f32.gmra.mxu0 %v1484
    %v1751 = vpop.f32.mrf.mxu0
    %v1752 = vadd.f32 0.0, %v1751
    %v1753 = vpop.f32.mrf.mxu0
    %1754 = vmatprep.mubr.f32.mxu0 0.0
    %1755 = vmatmul.mubr.f32.gmra.mxu0 %v1485
    %v1756 = vpop.f32.mrf.mxu0
    %v1757 = vadd.f32 0.0, %v1756
    %v1758 = vpop.f32.mrf.mxu0
    %1759 = vmatprep.mubr.f32.mxu0 0.0
    %1760 = vmatmul.mubr.f32.gmra.mxu0 %v1486
    %v1761 = vpop.f32.mrf.mxu0
    %v1762 = vadd.f32 0.0, %v1761
    %v1763 = vpop.f32.mrf.mxu0
    %1764 = vmatprep.mubr.f32.mxu0 0.0
    %1765 = vmatmul.mubr.f32.gmra.mxu0 %v1487
    %v1766 = vpop.f32.mrf.mxu0
    %v1767 = vadd.f32 0.0, %v1766
    %v1768 = vpop.f32.mrf.mxu0
    %1769 = vmatprep.mubr.f32.mxu0 0.0
    %1770 = vmatmul.mubr.f32.gmra.mxu0 %v1488
    %v1771 = vpop.f32.mrf.mxu0
    %v1772 = vadd.f32 0.0, %v1771
    %v1773 = vpop.f32.mrf.mxu0
    %1774 = vmatprep.mubr.f32.mxu0 0.0
    %1775 = vmatmul.mubr.f32.gmra.mxu0 %v1489
    %v1776 = vpop.f32.mrf.mxu0
    %v1777 = vadd.f32 0.0, %v1776
    %v1778 = vpop.f32.mrf.mxu0
    %1779 = vdwg.mxu0
  $region17: #{fvd_loss.3} parent=0 // loop_footer
    %s1264 = sadd.s32 1, %s1260
  $region18: #{fvd_loss.3} parent=0 // loop_footer_branch
    %1259 = sbr.rel target = $region14
  $region19: #{fvd_loss.3} parent=0 // loop_exit
    _
  %v1780 = vrsqrt.pop %v1241
  %v1781 = vmul.f32 %v1241, %v1780
  %vm1782 = vcmp.eq.f32.partialorder %v1241, inf
  %v1783 = vsel %vm1782, %v1241, %v1781
  %vm1784 = vcmp.eq.f32.partialorder %v1241, 0.0
  %v1785 = vand.u32 %v1241, 2147483648
  %v1786 = vsel %vm1784, %v1785, %v1783
  %v1787 = vrsqrt.pop %v1786
  %v1788 = vmul.f32 %v1786, %v1787
  %vm1789 = vcmp.eq.f32.partialorder %v1786, inf
  %v1790 = vsel %vm1789, %v1786, %v1788
  %vm1791 = vcmp.eq.f32.partialorder %v1786, 0.0
  %v1792 = vand.u32 %v1786, 2147483648
  %v1793 = vsel %vm1791, %v1792, %v1790
  %v1794 = vmul.f32 %v1265, %v1793
  %v1795 = vmul.f32 %v1266, %v1793
  %v1796 = vmul.f32 %v1267, %v1793
  %v1797 = vmul.f32 %v1268, %v1793
  %v1798 = vmul.f32 %v1269, %v1793
  %v1799 = vmul.f32 %v1270, %v1793
  %v1800 = vmul.f32 %v1271, %v1793
  %v1801 = vmul.f32 %v1272, %v1793
  %v1802 = vmul.f32 %v1273, %v1793
  %v1803 = vmul.f32 %v1274, %v1793
  %v1804 = vmul.f32 %v1275, %v1793
  %v1805 = vmul.f32 %v1276, %v1793
  %v1806 = vmul.f32 %v1277, %v1793
  %v1807 = vmul.f32 %v1278, %v1793
  %v1808 = vmul.f32 %v1279, %v1793
  %v1809 = vmul.f32 %v1280, %v1793
  %1810 = vst [vmem:[%s1] sm:$0xff] %v1794
  %1811 = vst [vmem:[%s1 + $0x8] sm:$0xff] %v1795
  %1812 = vst [vmem:[%s1 + $0x10] sm:$0xff] %v1796
  %1813 = vst [vmem:[%s1 + $0x18] sm:$0xff] %v1797
  %1814 = vst [vmem:[%s1 + $0x20] sm:$0xff] %v1798
  %1815 = vst [vmem:[%s1 + $0x28] sm:$0xff] %v1799
  %1816 = vst [vmem:[%s1 + $0x30] sm:$0xff] %v1800
  %1817 = vst [vmem:[%s1 + $0x38] sm:$0xff] %v1801
  %1818 = vst [vmem:[%s1 + $0x40] sm:$0xff] %v1802
  %1819 = vst [vmem:[%s1 + $0x48] sm:$0xff] %v1803
  %1820 = vst [vmem:[%s1 + $0x50] sm:$0xff] %v1804
  %1821 = vst [vmem:[%s1 + $0x58] sm:$0xff] %v1805
  %1822 = vst [vmem:[%s1 + $0x60] sm:$0xff] %v1806
  %1823 = vst [vmem:[%s1 + $0x68] sm:$0xff] %v1807
  %1824 = vst [vmem:[%s1 + $0x70] sm:$0xff] %v1808
  %1825 = vst [vmem:[%s1 + $0x78] sm:$0xff] %v1809
  // Predicated region
  $region20: #{fvd_loss.3} parent=0 // pred_check
    _
  $region21: #{fvd_loss.3} parent=0 // pred_check_branch
    %1827 = sbr.rel (0) target = $region23
  $region22: #{fvd_loss.3} parent=0 // pred_region
    _
  $region23: #{fvd_loss.3} parent=0 // pred_fallthru
    _
  // Predicated region
  $region24: #{fvd_loss.3} parent=0 // pred_check
    _
  $region25: #{fvd_loss.3} parent=0 // pred_check_branch
    %1829 = sbr.rel (0) target = $region27
  $region26: #{fvd_loss.3} parent=0 // pred_region
    _
  $region27: #{fvd_loss.3} parent=0 // pred_fallthru
    _

// kernel: fvd_loss.2
$region0: #{fvd_loss.2}
  #allocation0 [shape = 'u32[]', space=smem, size = 0x4, offset = 0x4, fixed_abs, tag = 'smem constant byte address 0x4 - core index']
  #allocation1 [shape = 'u32[144,128]{1,0:T(1,128)}', space=vmem, size = 0x12000, scoped, tag = 'internal scratch']
  %s0 = inlined_call_operand.vmem [shape: bf16[16,3072], index: 0, kind: input, shape index: {}]
  %s1 = inlined_call_operand.vmem [shape: bf16[3072,128], index: 1, kind: input, shape index: {}]
  %s2 = inlined_call_operand.vmem [shape: f32[1,128], index: 2, kind: input, shape index: {}]
  %s3 = inlined_call_operand.vmem [shape: f32[2,128], index: 3, kind: output, shape index: {0}]
  %s4 = inlined_call_operand.vmem [shape: f32[2,128,128], index: 4, kind: output, shape index: {1}]
  %5 = xla_tuple %s3, %s4
  %s6 = sld [smem:[#allocation0]]
  $region30: #{fvd_loss.2} parent=0
    _
  %s8 = ssub.s32 1, %s6
  %s9 = scalar_select 0, %s8, %s6
  // Predicated region
  $region2: #{fvd_loss.2} parent=0 // pred_check
    _
  $region3: #{fvd_loss.2} parent=0 // pred_check_branch
    %11 = sbr.rel (0) target = $region5
  $region4: #{fvd_loss.2} parent=0 // pred_region
    _
  $region5: #{fvd_loss.2} parent=0 // pred_fallthru
    _
  // Predicated region
  $region6: #{fvd_loss.2} parent=0 // pred_check
    _
  $region7: #{fvd_loss.2} parent=0 // pred_check_branch
    %13 = sbr.rel (0) target = $region9
  $region8: #{fvd_loss.2} parent=0 // pred_region
    _
  $region9: #{fvd_loss.2} parent=0 // pred_fallthru
    _
  // Predicated region
  $region10: #{fvd_loss.2} parent=0 // pred_check
    _
  $region11: #{fvd_loss.2} parent=0 // pred_check_branch
    %15 = sbr.rel (0) target = $region13
  $region12: #{fvd_loss.2} parent=0 // pred_region
    _
  $region13: #{fvd_loss.2} parent=0 // pred_fallthru
    _
  %v17 = vld [vmem:[%s0] sm:$0xff]
  %v18 = vld [vmem:[%s0 + $0x8] sm:$0xff]
  %v19 = vld [vmem:[%s0 + $0x10] sm:$0xff]
  %v20 = vld [vmem:[%s0 + $0x18] sm:$0xff]
  %v21 = vld [vmem:[%s0 + $0x20] sm:$0xff]
  %v22 = vld [vmem:[%s0 + $0x28] sm:$0xff]
  %v23 = vld [vmem:[%s0 + $0x30] sm:$0xff]
  %v24 = vld [vmem:[%s0 + $0x38] sm:$0xff]
  %v25 = vld [vmem:[%s0 + $0x40] sm:$0xff]
  %v26 = vld [vmem:[%s0 + $0x48] sm:$0xff]
  %v27 = vld [vmem:[%s0 + $0x50] sm:$0xff]
  %v28 = vld [vmem:[%s0 + $0x58] sm:$0xff]
  %v29 = vld [vmem:[%s0 + $0x60] sm:$0xff]
  %v30 = vld [vmem:[%s0 + $0x68] sm:$0xff]
  %v31 = vld [vmem:[%s0 + $0x70] sm:$0xff]
  %v32 = vld [vmem:[%s0 + $0x78] sm:$0xff]
  %v33 = vld [vmem:[%s0 + $0x80] sm:$0xff]
  %v34 = vld [vmem:[%s0 + $0x88] sm:$0xff]
  %v35 = vld [vmem:[%s0 + $0x90] sm:$0xff]
  %v36 = vld [vmem:[%s0 + $0x98] sm:$0xff]
  %v37 = vld [vmem:[%s0 + $0xa0] sm:$0xff]
  %v38 = vld [vmem:[%s0 + $0xa8] sm:$0xff]
  %v39 = vld [vmem:[%s0 + $0xb0] sm:$0xff]
  %v40 = vld [vmem:[%s0 + $0xb8] sm:$0xff]
  %v41 = vld [vmem:[%s1] sm:$0xf]
  %v42 = vld [vmem:[%s1 + $0x4] sm:$0xf]
  %v43 = vld [vmem:[%s1 + $0x8] sm:$0xf]
  %v44 = vld [vmem:[%s1 + $0xc] sm:$0xf]
  %v45 = vld [vmem:[%s1 + $0x10] sm:$0xf]
  %v46 = vld [vmem:[%s1 + $0x14] sm:$0xf]
  %v47 = vld [vmem:[%s1 + $0x18] sm:$0xf]
  %v48 = vld [vmem:[%s1 + $0x1c] sm:$0xf]
  %v49 = vld [vmem:[%s1 + $0x20] sm:$0xf]
  %v50 = vld [vmem:[%s1 + $0x24] sm:$0xf]
  %v51 = vld [vmem:[%s1 + $0x28] sm:$0xf]
  %v52 = vld [vmem:[%s1 + $0x2c] sm:$0xf]
  %v53 = vld [vmem:[%s1 + $0x30] sm:$0xf]
  %v54 = vld [vmem:[%s1 + $0x34] sm:$0xf]
  %v55 = vld [vmem:[%s1 + $0x38] sm:$0xf]
  %v56 = vld [vmem:[%s1 + $0x3c] sm:$0xf]
  %v57 = vld [vmem:[%s1 + $0x40] sm:$0xf]
  %v58 = vld [vmem:[%s1 + $0x44] sm:$0xf]
  %v59 = vld [vmem:[%s1 + $0x48] sm:$0xf]
  %v60 = vld [vmem:[%s1 + $0x4c] sm:$0xf]
  %v61 = vld [vmem:[%s1 + $0x50] sm:$0xf]
  %v62 = vld [vmem:[%s1 + $0x54] sm:$0xf]
  %v63 = vld [vmem:[%s1 + $0x58] sm:$0xf]
  %v64 = vld [vmem:[%s1 + $0x5c] sm:$0xf]
  %v65 = vld [vmem:[%s1 + $0x60] sm:$0xf]
  %v66 = vld [vmem:[%s1 + $0x64] sm:$0xf]
  %v67 = vld [vmem:[%s1 + $0x68] sm:$0xf]
  %v68 = vld [vmem:[%s1 + $0x6c] sm:$0xf]
  %v69 = vld [vmem:[%s1 + $0x70] sm:$0xf]
  %v70 = vld [vmem:[%s1 + $0x74] sm:$0xf]
  %v71 = vld [vmem:[%s1 + $0x78] sm:$0xf]
  %v72 = vld [vmem:[%s1 + $0x7c] sm:$0xf]
  %v73 = vld [vmem:[%s1 + $0x80] sm:$0xf]
  %v74 = vld [vmem:[%s1 + $0x84] sm:$0xf]
  %v75 = vld [vmem:[%s1 + $0x88] sm:$0xf]
  %v76 = vld [vmem:[%s1 + $0x8c] sm:$0xf]
  %v77 = vld [vmem:[%s1 + $0x90] sm:$0xf]
  %v78 = vld [vmem:[%s1 + $0x94] sm:$0xf]
  %v79 = vld [vmem:[%s1 + $0x98] sm:$0xf]
  %v80 = vld [vmem:[%s1 + $0x9c] sm:$0xf]
  %v81 = vld [vmem:[%s1 + $0xa0] sm:$0xf]
  %v82 = vld [vmem:[%s1 + $0xa4] sm:$0xf]
  %v83 = vld [vmem:[%s1 + $0xa8] sm:$0xf]
  %v84 = vld [vmem:[%s1 + $0xac] sm:$0xf]
  %v85 = vld [vmem:[%s1 + $0xb0] sm:$0xf]
  %v86 = vld [vmem:[%s1 + $0xb4] sm:$0xf]
  %v87 = vld [vmem:[%s1 + $0xb8] sm:$0xf]
  %v88 = vld [vmem:[%s1 + $0xbc] sm:$0xf]
  %v89 = vld [vmem:[%s1 + $0xc0] sm:$0xf]
  %v90 = vld [vmem:[%s1 + $0xc4] sm:$0xf]
  %v91 = vld [vmem:[%s1 + $0xc8] sm:$0xf]
  %v92 = vld [vmem:[%s1 + $0xcc] sm:$0xf]
  %v93 = vld [vmem:[%s1 + $0xd0] sm:$0xf]
  %v94 = vld [vmem:[%s1 + $0xd4] sm:$0xf]
  %v95 = vld [vmem:[%s1 + $0xd8] sm:$0xf]
  %v96 = vld [vmem:[%s1 + $0xdc] sm:$0xf]
  %v97 = vld [vmem:[%s1 + $0xe0] sm:$0xf]
  %v98 = vld [vmem:[%s1 + $0xe4] sm:$0xf]
  %v99 = vld [vmem:[%s1 + $0xe8] sm:$0xf]
  %v100 = vld [vmem:[%s1 + $0xec] sm:$0xf]
  %v101 = vld [vmem:[%s1 + $0xf0] sm:$0xf]
  %v102 = vld [vmem:[%s1 + $0xf4] sm:$0xf]
  %v103 = vld [vmem:[%s1 + $0xf8] sm:$0xf]
  %v104 = vld [vmem:[%s1 + $0xfc] sm:$0xf]
  %v105 = vld [vmem:[%s1 + $0x100] sm:$0xf]
  %v106 = vld [vmem:[%s1 + $0x104] sm:$0xf]
  %v107 = vld [vmem:[%s1 + $0x108] sm:$0xf]
  %v108 = vld [vmem:[%s1 + $0x10c] sm:$0xf]
  %v109 = vld [vmem:[%s1 + $0x110] sm:$0xf]
  %v110 = vld [vmem:[%s1 + $0x114] sm:$0xf]
  %v111 = vld [vmem:[%s1 + $0x118] sm:$0xf]
  %v112 = vld [vmem:[%s1 + $0x11c] sm:$0xf]
  %v113 = vld [vmem:[%s1 + $0x120] sm:$0xf]
  %v114 = vld [vmem:[%s1 + $0x124] sm:$0xf]
  %v115 = vld [vmem:[%s1 + $0x128] sm:$0xf]
  %v116 = vld [vmem:[%s1 + $0x12c] sm:$0xf]
  %v117 = vld [vmem:[%s1 + $0x130] sm:$0xf]
  %v118 = vld [vmem:[%s1 + $0x134] sm:$0xf]
  %v119 = vld [vmem:[%s1 + $0x138] sm:$0xf]
  %v120 = vld [vmem:[%s1 + $0x13c] sm:$0xf]
  %v121 = vld [vmem:[%s1 + $0x140] sm:$0xf]
  %v122 = vld [vmem:[%s1 + $0x144] sm:$0xf]
  %v123 = vld [vmem:[%s1 + $0x148] sm:$0xf]
  %v124 = vld [vmem:[%s1 + $0x14c] sm:$0xf]
  %v125 = vld [vmem:[%s1 + $0x150] sm:$0xf]
  %v126 = vld [vmem:[%s1 + $0x154] sm:$0xf]
  %v127 = vld [vmem:[%s1 + $0x158] sm:$0xf]
  %v128 = vld [vmem:[%s1 + $0x15c] sm:$0xf]
  %v129 = vld [vmem:[%s1 + $0x160] sm:$0xf]
  %v130 = vld [vmem:[%s1 + $0x164] sm:$0xf]
  %v131 = vld [vmem:[%s1 + $0x168] sm:$0xf]
  %v132 = vld [vmem:[%s1 + $0x16c] sm:$0xf]
  %v133 = vld [vmem:[%s1 + $0x170] sm:$0xf]
  %v134 = vld [vmem:[%s1 + $0x174] sm:$0xf]
  %v135 = vld [vmem:[%s1 + $0x178] sm:$0xf]
  %v136 = vld [vmem:[%s1 + $0x17c] sm:$0xf]
  %v137 = vld [vmem:[%s1 + $0x180] sm:$0xf]
  %v138 = vld [vmem:[%s1 + $0x184] sm:$0xf]
  %v139 = vld [vmem:[%s1 + $0x188] sm:$0xf]
  %v140 = vld [vmem:[%s1 + $0x18c] sm:$0xf]
  %v141 = vld [vmem:[%s1 + $0x190] sm:$0xf]
  %v142 = vld [vmem:[%s1 + $0x194] sm:$0xf]
  %v143 = vld [vmem:[%s1 + $0x198] sm:$0xf]
  %v144 = vld [vmem:[%s1 + $0x19c] sm:$0xf]
  %v145 = vld [vmem:[%s1 + $0x1a0] sm:$0xf]
  %v146 = vld [vmem:[%s1 + $0x1a4] sm:$0xf]
  %v147 = vld [vmem:[%s1 + $0x1a8] sm:$0xf]
  %v148 = vld [vmem:[%s1 + $0x1ac] sm:$0xf]
  %v149 = vld [vmem:[%s1 + $0x1b0] sm:$0xf]
  %v150 = vld [vmem:[%s1 + $0x1b4] sm:$0xf]
  %v151 = vld [vmem:[%s1 + $0x1b8] sm:$0xf]
  %v152 = vld [vmem:[%s1 + $0x1bc] sm:$0xf]
  %v153 = vld [vmem:[%s1 + $0x1c0] sm:$0xf]
  %v154 = vld [vmem:[%s1 + $0x1c4] sm:$0xf]
  %v155 = vld [vmem:[%s1 + $0x1c8] sm:$0xf]
  %v156 = vld [vmem:[%s1 + $0x1cc] sm:$0xf]
  %v157 = vld [vmem:[%s1 + $0x1d0] sm:$0xf]
  %v158 = vld [vmem:[%s1 + $0x1d4] sm:$0xf]
  %v159 = vld [vmem:[%s1 + $0x1d8] sm:$0xf]
  %v160 = vld [vmem:[%s1 + $0x1dc] sm:$0xf]
  %v161 = vld [vmem:[%s1 + $0x1e0] sm:$0xf]
  %v162 = vld [vmem:[%s1 + $0x1e4] sm:$0xf]
  %v163 = vld [vmem:[%s1 + $0x1e8] sm:$0xf]
  %v164 = vld [vmem:[%s1 + $0x1ec] sm:$0xf]
  %v165 = vld [vmem:[%s1 + $0x1f0] sm:$0xf]
  %v166 = vld [vmem:[%s1 + $0x1f4] sm:$0xf]
  %v167 = vld [vmem:[%s1 + $0x1f8] sm:$0xf]
  %v168 = vld [vmem:[%s1 + $0x1fc] sm:$0xf]
  %v169 = vld [vmem:[%s1 + $0x200] sm:$0xf]
  %v170 = vld [vmem:[%s1 + $0x204] sm:$0xf]
  %v171 = vld [vmem:[%s1 + $0x208] sm:$0xf]
  %v172 = vld [vmem:[%s1 + $0x20c] sm:$0xf]
  %v173 = vld [vmem:[%s1 + $0x210] sm:$0xf]
  %v174 = vld [vmem:[%s1 + $0x214] sm:$0xf]
  %v175 = vld [vmem:[%s1 + $0x218] sm:$0xf]
  %v176 = vld [vmem:[%s1 + $0x21c] sm:$0xf]
  %v177 = vld [vmem:[%s1 + $0x220] sm:$0xf]
  %v178 = vld [vmem:[%s1 + $0x224] sm:$0xf]
  %v179 = vld [vmem:[%s1 + $0x228] sm:$0xf]
  %v180 = vld [vmem:[%s1 + $0x22c] sm:$0xf]
  %v181 = vld [vmem:[%s1 + $0x230] sm:$0xf]
  %v182 = vld [vmem:[%s1 + $0x234] sm:$0xf]
  %v183 = vld [vmem:[%s1 + $0x238] sm:$0xf]
  %v184 = vld [vmem:[%s1 + $0x23c] sm:$0xf]
  %v185 = vld [vmem:[%s1 + $0x240] sm:$0xf]
  %v186 = vld [vmem:[%s1 + $0x244] sm:$0xf]
  %v187 = vld [vmem:[%s1 + $0x248] sm:$0xf]
  %v188 = vld [vmem:[%s1 + $0x24c] sm:$0xf]
  %v189 = vld [vmem:[%s1 + $0x250] sm:$0xf]
  %v190 = vld [vmem:[%s1 + $0x254] sm:$0xf]
  %v191 = vld [vmem:[%s1 + $0x258] sm:$0xf]
  %v192 = vld [vmem:[%s1 + $0x25c] sm:$0xf]
  %v193 = vld [vmem:[%s1 + $0x260] sm:$0xf]
  %v194 = vld [vmem:[%s1 + $0x264] sm:$0xf]
  %v195 = vld [vmem:[%s1 + $0x268] sm:$0xf]
  %v196 = vld [vmem:[%s1 + $0x26c] sm:$0xf]
  %v197 = vld [vmem:[%s1 + $0x270] sm:$0xf]
  %v198 = vld [vmem:[%s1 + $0x274] sm:$0xf]
  %v199 = vld [vmem:[%s1 + $0x278] sm:$0xf]
  %v200 = vld [vmem:[%s1 + $0x27c] sm:$0xf]
  %v201 = vld [vmem:[%s1 + $0x280] sm:$0xf]
  %v202 = vld [vmem:[%s1 + $0x284] sm:$0xf]
  %v203 = vld [vmem:[%s1 + $0x288] sm:$0xf]
  %v204 = vld [vmem:[%s1 + $0x28c] sm:$0xf]
  %v205 = vld [vmem:[%s1 + $0x290] sm:$0xf]
  %v206 = vld [vmem:[%s1 + $0x294] sm:$0xf]
  %v207 = vld [vmem:[%s1 + $0x298] sm:$0xf]
  %v208 = vld [vmem:[%s1 + $0x29c] sm:$0xf]
  %v209 = vld [vmem:[%s1 + $0x2a0] sm:$0xf]
  %v210 = vld [vmem:[%s1 + $0x2a4] sm:$0xf]
  %v211 = vld [vmem:[%s1 + $0x2a8] sm:$0xf]
  %v212 = vld [vmem:[%s1 + $0x2ac] sm:$0xf]
  %v213 = vld [vmem:[%s1 + $0x2b0] sm:$0xf]
  %v214 = vld [vmem:[%s1 + $0x2b4] sm:$0xf]
  %v215 = vld [vmem:[%s1 + $0x2b8] sm:$0xf]
  %v216 = vld [vmem:[%s1 + $0x2bc] sm:$0xf]
  %v217 = vld [vmem:[%s1 + $0x2c0] sm:$0xf]
  %v218 = vld [vmem:[%s1 + $0x2c4] sm:$0xf]
  %v219 = vld [vmem:[%s1 + $0x2c8] sm:$0xf]
  %v220 = vld [vmem:[%s1 + $0x2cc] sm:$0xf]
  %v221 = vld [vmem:[%s1 + $0x2d0] sm:$0xf]
  %v222 = vld [vmem:[%s1 + $0x2d4] sm:$0xf]
  %v223 = vld [vmem:[%s1 + $0x2d8] sm:$0xf]
  %v224 = vld [vmem:[%s1 + $0x2dc] sm:$0xf]
  %v225 = vld [vmem:[%s1 + $0x2e0] sm:$0xf]
  %v226 = vld [vmem:[%s1 + $0x2e4] sm:$0xf]
  %v227 = vld [vmem:[%s1 + $0x2e8] sm:$0xf]
  %v228 = vld [vmem:[%s1 + $0x2ec] sm:$0xf]
  %v229 = vld [vmem:[%s1 + $0x2f0] sm:$0xf]
  %v230 = vld [vmem:[%s1 + $0x2f4] sm:$0xf]
  %v231 = vld [vmem:[%s1 + $0x2f8] sm:$0xf]
  %v232 = vld [vmem:[%s1 + $0x2fc] sm:$0xf]
  %v233 = vld [vmem:[%s1 + $0x300] sm:$0xf]
  %v234 = vld [vmem:[%s1 + $0x304] sm:$0xf]
  %v235 = vld [vmem:[%s1 + $0x308] sm:$0xf]
  %v236 = vld [vmem:[%s1 + $0x30c] sm:$0xf]
  %v237 = vld [vmem:[%s1 + $0x310] sm:$0xf]
  %v238 = vld [vmem:[%s1 + $0x314] sm:$0xf]
  %v239 = vld [vmem:[%s1 + $0x318] sm:$0xf]
  %v240 = vld [vmem:[%s1 + $0x31c] sm:$0xf]
  %v241 = vld [vmem:[%s1 + $0x320] sm:$0xf]
  %v242 = vld [vmem:[%s1 + $0x324] sm:$0xf]
  %v243 = vld [vmem:[%s1 + $0x328] sm:$0xf]
  %v244 = vld [vmem:[%s1 + $0x32c] sm:$0xf]
  %v245 = vld [vmem:[%s1 + $0x330] sm:$0xf]
  %v246 = vld [vmem:[%s1 + $0x334] sm:$0xf]
  %v247 = vld [vmem:[%s1 + $0x338] sm:$0xf]
  %v248 = vld [vmem:[%s1 + $0x33c] sm:$0xf]
  %v249 = vld [vmem:[%s1 + $0x340] sm:$0xf]
  %v250 = vld [vmem:[%s1 + $0x344] sm:$0xf]
  %v251 = vld [vmem:[%s1 + $0x348] sm:$0xf]
  %v252 = vld [vmem:[%s1 + $0x34c] sm:$0xf]
  %v253 = vld [vmem:[%s1 + $0x350] sm:$0xf]
  %v254 = vld [vmem:[%s1 + $0x354] sm:$0xf]
  %v255 = vld [vmem:[%s1 + $0x358] sm:$0xf]
  %v256 = vld [vmem:[%s1 + $0x35c] sm:$0xf]
  %v257 = vld [vmem:[%s1 + $0x360] sm:$0xf]
  %v258 = vld [vmem:[%s1 + $0x364] sm:$0xf]
  %v259 = vld [vmem:[%s1 + $0x368] sm:$0xf]
  %v260 = vld [vmem:[%s1 + $0x36c] sm:$0xf]
  %v261 = vld [vmem:[%s1 + $0x370] sm:$0xf]
  %v262 = vld [vmem:[%s1 + $0x374] sm:$0xf]
  %v263 = vld [vmem:[%s1 + $0x378] sm:$0xf]
  %v264 = vld [vmem:[%s1 + $0x37c] sm:$0xf]
  %v265 = vld [vmem:[%s1 + $0x380] sm:$0xf]
  %v266 = vld [vmem:[%s1 + $0x384] sm:$0xf]
  %v267 = vld [vmem:[%s1 + $0x388] sm:$0xf]
  %v268 = vld [vmem:[%s1 + $0x38c] sm:$0xf]
  %v269 = vld [vmem:[%s1 + $0x390] sm:$0xf]
  %v270 = vld [vmem:[%s1 + $0x394] sm:$0xf]
  %v271 = vld [vmem:[%s1 + $0x398] sm:$0xf]
  %v272 = vld [vmem:[%s1 + $0x39c] sm:$0xf]
  %v273 = vld [vmem:[%s1 + $0x3a0] sm:$0xf]
  %v274 = vld [vmem:[%s1 + $0x3a4] sm:$0xf]
  %v275 = vld [vmem:[%s1 + $0x3a8] sm:$0xf]
  %v276 = vld [vmem:[%s1 + $0x3ac] sm:$0xf]
  %v277 = vld [vmem:[%s1 + $0x3b0] sm:$0xf]
  %v278 = vld [vmem:[%s1 + $0x3b4] sm:$0xf]
  %v279 = vld [vmem:[%s1 + $0x3b8] sm:$0xf]
  %v280 = vld [vmem:[%s1 + $0x3bc] sm:$0xf]
  %v281 = vld [vmem:[%s1 + $0x3c0] sm:$0xf]
  %v282 = vld [vmem:[%s1 + $0x3c4] sm:$0xf]
  %v283 = vld [vmem:[%s1 + $0x3c8] sm:$0xf]
  %v284 = vld [vmem:[%s1 + $0x3cc] sm:$0xf]
  %v285 = vld [vmem:[%s1 + $0x3d0] sm:$0xf]
  %v286 = vld [vmem:[%s1 + $0x3d4] sm:$0xf]
  %v287 = vld [vmem:[%s1 + $0x3d8] sm:$0xf]
  %v288 = vld [vmem:[%s1 + $0x3dc] sm:$0xf]
  %v289 = vld [vmem:[%s1 + $0x3e0] sm:$0xf]
  %v290 = vld [vmem:[%s1 + $0x3e4] sm:$0xf]
  %v291 = vld [vmem:[%s1 + $0x3e8] sm:$0xf]
  %v292 = vld [vmem:[%s1 + $0x3ec] sm:$0xf]
  %v293 = vld [vmem:[%s1 + $0x3f0] sm:$0xf]
  %v294 = vld [vmem:[%s1 + $0x3f4] sm:$0xf]
  %v295 = vld [vmem:[%s1 + $0x3f8] sm:$0xf]
  %v296 = vld [vmem:[%s1 + $0x3fc] sm:$0xf]
  %v297 = vld [vmem:[%s1 + $0x400] sm:$0xf]
  %v298 = vld [vmem:[%s1 + $0x404] sm:$0xf]
  %v299 = vld [vmem:[%s1 + $0x408] sm:$0xf]
  %v300 = vld [vmem:[%s1 + $0x40c] sm:$0xf]
  %v301 = vld [vmem:[%s1 + $0x410] sm:$0xf]
  %v302 = vld [vmem:[%s1 + $0x414] sm:$0xf]
  %v303 = vld [vmem:[%s1 + $0x418] sm:$0xf]
  %v304 = vld [vmem:[%s1 + $0x41c] sm:$0xf]
  %v305 = vld [vmem:[%s1 + $0x420] sm:$0xf]
  %v306 = vld [vmem:[%s1 + $0x424] sm:$0xf]
  %v307 = vld [vmem:[%s1 + $0x428] sm:$0xf]
  %v308 = vld [vmem:[%s1 + $0x42c] sm:$0xf]
  %v309 = vld [vmem:[%s1 + $0x430] sm:$0xf]
  %v310 = vld [vmem:[%s1 + $0x434] sm:$0xf]
  %v311 = vld [vmem:[%s1 + $0x438] sm:$0xf]
  %v312 = vld [vmem:[%s1 + $0x43c] sm:$0xf]
  %v313 = vld [vmem:[%s1 + $0x440] sm:$0xf]
  %v314 = vld [vmem:[%s1 + $0x444] sm:$0xf]
  %v315 = vld [vmem:[%s1 + $0x448] sm:$0xf]
  %v316 = vld [vmem:[%s1 + $0x44c] sm:$0xf]
  %v317 = vld [vmem:[%s1 + $0x450] sm:$0xf]
  %v318 = vld [vmem:[%s1 + $0x454] sm:$0xf]
  %v319 = vld [vmem:[%s1 + $0x458] sm:$0xf]
  %v320 = vld [vmem:[%s1 + $0x45c] sm:$0xf]
  %v321 = vld [vmem:[%s1 + $0x460] sm:$0xf]
  %v322 = vld [vmem:[%s1 + $0x464] sm:$0xf]
  %v323 = vld [vmem:[%s1 + $0x468] sm:$0xf]
  %v324 = vld [vmem:[%s1 + $0x46c] sm:$0xf]
  %v325 = vld [vmem:[%s1 + $0x470] sm:$0xf]
  %v326 = vld [vmem:[%s1 + $0x474] sm:$0xf]
  %v327 = vld [vmem:[%s1 + $0x478] sm:$0xf]
  %v328 = vld [vmem:[%s1 + $0x47c] sm:$0xf]
  %v329 = vld [vmem:[%s1 + $0x480] sm:$0xf]
  %v330 = vld [vmem:[%s1 + $0x484] sm:$0xf]
  %v331 = vld [vmem:[%s1 + $0x488] sm:$0xf]
  %v332 = vld [vmem:[%s1 + $0x48c] sm:$0xf]
  %v333 = vld [vmem:[%s1 + $0x490] sm:$0xf]
  %v334 = vld [vmem:[%s1 + $0x494] sm:$0xf]
  %v335 = vld [vmem:[%s1 + $0x498] sm:$0xf]
  %v336 = vld [vmem:[%s1 + $0x49c] sm:$0xf]
  %v337 = vld [vmem:[%s1 + $0x4a0] sm:$0xf]
  %v338 = vld [vmem:[%s1 + $0x4a4] sm:$0xf]
  %v339 = vld [vmem:[%s1 + $0x4a8] sm:$0xf]
  %v340 = vld [vmem:[%s1 + $0x4ac] sm:$0xf]
  %v341 = vld [vmem:[%s1 + $0x4b0] sm:$0xf]
  %v342 = vld [vmem:[%s1 + $0x4b4] sm:$0xf]
  %v343 = vld [vmem:[%s1 + $0x4b8] sm:$0xf]
  %v344 = vld [vmem:[%s1 + $0x4bc] sm:$0xf]
  %v345 = vld [vmem:[%s1 + $0x4c0] sm:$0xf]
  %v346 = vld [vmem:[%s1 + $0x4c4] sm:$0xf]
  %v347 = vld [vmem:[%s1 + $0x4c8] sm:$0xf]
  %v348 = vld [vmem:[%s1 + $0x4cc] sm:$0xf]
  %v349 = vld [vmem:[%s1 + $0x4d0] sm:$0xf]
  %v350 = vld [vmem:[%s1 + $0x4d4] sm:$0xf]
  %v351 = vld [vmem:[%s1 + $0x4d8] sm:$0xf]
  %v352 = vld [vmem:[%s1 + $0x4dc] sm:$0xf]
  %v353 = vld [vmem:[%s1 + $0x4e0] sm:$0xf]
  %v354 = vld [vmem:[%s1 + $0x4e4] sm:$0xf]
  %v355 = vld [vmem:[%s1 + $0x4e8] sm:$0xf]
  %v356 = vld [vmem:[%s1 + $0x4ec] sm:$0xf]
  %v357 = vld [vmem:[%s1 + $0x4f0] sm:$0xf]
  %v358 = vld [vmem:[%s1 + $0x4f4] sm:$0xf]
  %v359 = vld [vmem:[%s1 + $0x4f8] sm:$0xf]
  %v360 = vld [vmem:[%s1 + $0x4fc] sm:$0xf]
  %v361 = vld [vmem:[%s1 + $0x500] sm:$0xf]
  %v362 = vld [vmem:[%s1 + $0x504] sm:$0xf]
  %v363 = vld [vmem:[%s1 + $0x508] sm:$0xf]
  %v364 = vld [vmem:[%s1 + $0x50c] sm:$0xf]
  %v365 = vld [vmem:[%s1 + $0x510] sm:$0xf]
  %v366 = vld [vmem:[%s1 + $0x514] sm:$0xf]
  %v367 = vld [vmem:[%s1 + $0x518] sm:$0xf]
  %v368 = vld [vmem:[%s1 + $0x51c] sm:$0xf]
  %v369 = vld [vmem:[%s1 + $0x520] sm:$0xf]
  %v370 = vld [vmem:[%s1 + $0x524] sm:$0xf]
  %v371 = vld [vmem:[%s1 + $0x528] sm:$0xf]
  %v372 = vld [vmem:[%s1 + $0x52c] sm:$0xf]
  %v373 = vld [vmem:[%s1 + $0x530] sm:$0xf]
  %v374 = vld [vmem:[%s1 + $0x534] sm:$0xf]
  %v375 = vld [vmem:[%s1 + $0x538] sm:$0xf]
  %v376 = vld [vmem:[%s1 + $0x53c] sm:$0xf]
  %v377 = vld [vmem:[%s1 + $0x540] sm:$0xf]
  %v378 = vld [vmem:[%s1 + $0x544] sm:$0xf]
  %v379 = vld [vmem:[%s1 + $0x548] sm:$0xf]
  %v380 = vld [vmem:[%s1 + $0x54c] sm:$0xf]
  %v381 = vld [vmem:[%s1 + $0x550] sm:$0xf]
  %v382 = vld [vmem:[%s1 + $0x554] sm:$0xf]
  %v383 = vld [vmem:[%s1 + $0x558] sm:$0xf]
  %v384 = vld [vmem:[%s1 + $0x55c] sm:$0xf]
  %v385 = vld [vmem:[%s1 + $0x560] sm:$0xf]
  %v386 = vld [vmem:[%s1 + $0x564] sm:$0xf]
  %v387 = vld [vmem:[%s1 + $0x568] sm:$0xf]
  %v388 = vld [vmem:[%s1 + $0x56c] sm:$0xf]
  %v389 = vld [vmem:[%s1 + $0x570] sm:$0xf]
  %v390 = vld [vmem:[%s1 + $0x574] sm:$0xf]
  %v391 = vld [vmem:[%s1 + $0x578] sm:$0xf]
  %v392 = vld [vmem:[%s1 + $0x57c] sm:$0xf]
  %v393 = vld [vmem:[%s1 + $0x580] sm:$0xf]
  %v394 = vld [vmem:[%s1 + $0x584] sm:$0xf]
  %v395 = vld [vmem:[%s1 + $0x588] sm:$0xf]
  %v396 = vld [vmem:[%s1 + $0x58c] sm:$0xf]
  %v397 = vld [vmem:[%s1 + $0x590] sm:$0xf]
  %v398 = vld [vmem:[%s1 + $0x594] sm:$0xf]
  %v399 = vld [vmem:[%s1 + $0x598] sm:$0xf]
  %v400 = vld [vmem:[%s1 + $0x59c] sm:$0xf]
  %v401 = vld [vmem:[%s1 + $0x5a0] sm:$0xf]
  %v402 = vld [vmem:[%s1 + $0x5a4] sm:$0xf]
  %v403 = vld [vmem:[%s1 + $0x5a8] sm:$0xf]
  %v404 = vld [vmem:[%s1 + $0x5ac] sm:$0xf]
  %v405 = vld [vmem:[%s1 + $0x5b0] sm:$0xf]
  %v406 = vld [vmem:[%s1 + $0x5b4] sm:$0xf]
  %v407 = vld [vmem:[%s1 + $0x5b8] sm:$0xf]
  %v408 = vld [vmem:[%s1 + $0x5bc] sm:$0xf]
  %v409 = vld [vmem:[%s1 + $0x5c0] sm:$0xf]
  %v410 = vld [vmem:[%s1 + $0x5c4] sm:$0xf]
  %v411 = vld [vmem:[%s1 + $0x5c8] sm:$0xf]
  %v412 = vld [vmem:[%s1 + $0x5cc] sm:$0xf]
  %v413 = vld [vmem:[%s1 + $0x5d0] sm:$0xf]
  %v414 = vld [vmem:[%s1 + $0x5d4] sm:$0xf]
  %v415 = vld [vmem:[%s1 + $0x5d8] sm:$0xf]
  %v416 = vld [vmem:[%s1 + $0x5dc] sm:$0xf]
  %v417 = vld [vmem:[%s1 + $0x5e0] sm:$0xf]
  %v418 = vld [vmem:[%s1 + $0x5e4] sm:$0xf]
  %v419 = vld [vmem:[%s1 + $0x5e8] sm:$0xf]
  %v420 = vld [vmem:[%s1 + $0x5ec] sm:$0xf]
  %v421 = vld [vmem:[%s1 + $0x5f0] sm:$0xf]
  %v422 = vld [vmem:[%s1 + $0x5f4] sm:$0xf]
  %v423 = vld [vmem:[%s1 + $0x5f8] sm:$0xf]
  %v424 = vld [vmem:[%s1 + $0x5fc] sm:$0xf]
  %v425 = vld [vmem:[%s2] sm:$0x1]
  %v427 = vlaneseq
  %v428 = vshrl.u32 %v427, 7
  %v429 = vsub.s32 0, %v428
  %v430 = vrot.slane %v425, %v429
  %v456 = vunpack.c.l.b16 %v17
  %v457 = vunpack.c.h.b16 %v17
  %v458 = vunpack.c.l.b16 %v18
  %v459 = vunpack.c.h.b16 %v18
  %v460 = vunpack.c.l.b16 %v19
  %v461 = vunpack.c.h.b16 %v19
  %v462 = vunpack.c.l.b16 %v20
  %v463 = vunpack.c.h.b16 %v20
  %v464 = vunpack.c.l.b16 %v21
  %v465 = vunpack.c.h.b16 %v21
  %v466 = vunpack.c.l.b16 %v22
  %v467 = vunpack.c.h.b16 %v22
  %v468 = vunpack.c.l.b16 %v23
  %v469 = vunpack.c.h.b16 %v23
  %v470 = vunpack.c.l.b16 %v24
  %v471 = vunpack.c.h.b16 %v24
  %v472 = vunpack.c.l.b16 %v25
  %v473 = vunpack.c.h.b16 %v25
  %v474 = vunpack.c.l.b16 %v26
  %v475 = vunpack.c.h.b16 %v26
  %v476 = vunpack.c.l.b16 %v27
  %v477 = vunpack.c.h.b16 %v27
  %v478 = vunpack.c.l.b16 %v28
  %v479 = vunpack.c.h.b16 %v28
  %v480 = vunpack.c.l.b16 %v29
  %v481 = vunpack.c.h.b16 %v29
  %v482 = vunpack.c.l.b16 %v30
  %v483 = vunpack.c.h.b16 %v30
  %v484 = vunpack.c.l.b16 %v31
  %v485 = vunpack.c.h.b16 %v31
  %v486 = vunpack.c.l.b16 %v32
  %v487 = vunpack.c.h.b16 %v32
  %v488 = vunpack.c.l.b16 %v33
  %v489 = vunpack.c.h.b16 %v33
  %v490 = vunpack.c.l.b16 %v34
  %v491 = vunpack.c.h.b16 %v34
  %v492 = vunpack.c.l.b16 %v35
  %v493 = vunpack.c.h.b16 %v35
  %v494 = vunpack.c.l.b16 %v36
  %v495 = vunpack.c.h.b16 %v36
  %v496 = vunpack.c.l.b16 %v37
  %v497 = vunpack.c.h.b16 %v37
  %v498 = vunpack.c.l.b16 %v38
  %v499 = vunpack.c.h.b16 %v38
  %v500 = vunpack.c.l.b16 %v39
  %v501 = vunpack.c.h.b16 %v39
  %v502 = vunpack.c.l.b16 %v40
  %v503 = vunpack.c.h.b16 %v40
  %v504 = vpack.c.b16 %v480, %v456
  %v505 = vpack.c.b16 %v481, %v457
  %v506 = vpack.c.b16 %v482, %v458
  %v507 = vpack.c.b16 %v483, %v459
  %v508 = vpack.c.b16 %v484, %v460
  %v509 = vpack.c.b16 %v485, %v461
  %v510 = vpack.c.b16 %v486, %v462
  %v511 = vpack.c.b16 %v487, %v463
  %v512 = vpack.c.b16 %v488, %v464
  %v513 = vpack.c.b16 %v489, %v465
  %v514 = vpack.c.b16 %v490, %v466
  %v515 = vpack.c.b16 %v491, %v467
  %v516 = vpack.c.b16 %v492, %v468
  %v517 = vpack.c.b16 %v493, %v469
  %v518 = vpack.c.b16 %v494, %v470
  %v519 = vpack.c.b16 %v495, %v471
  %v520 = vpack.c.b16 %v496, %v472
  %v521 = vpack.c.b16 %v497, %v473
  %v522 = vpack.c.b16 %v498, %v474
  %v523 = vpack.c.b16 %v499, %v475
  %v524 = vpack.c.b16 %v500, %v476
  %v525 = vpack.c.b16 %v501, %v477
  %v526 = vpack.c.b16 %v502, %v478
  %v527 = vpack.c.b16 %v503, %v479
  %v936 = vunpack.c.l.b16 %v41
  %v937 = vunpack.c.l.b16 %v42
  %v938 = vunpack.c.l.b16 %v43
  %v939 = vunpack.c.l.b16 %v44
  %v940 = vunpack.c.l.b16 %v45
  %v941 = vunpack.c.l.b16 %v46
  %v942 = vunpack.c.l.b16 %v47
  %v943 = vunpack.c.l.b16 %v48
  %v944 = vunpack.c.l.b16 %v49
  %v945 = vunpack.c.l.b16 %v50
  %v946 = vunpack.c.l.b16 %v51
  %v947 = vunpack.c.l.b16 %v52
  %v948 = vunpack.c.l.b16 %v53
  %v949 = vunpack.c.l.b16 %v54
  %v950 = vunpack.c.l.b16 %v55
  %v951 = vunpack.c.l.b16 %v56
  %v952 = vunpack.c.l.b16 %v57
  %v953 = vunpack.c.l.b16 %v58
  %v954 = vunpack.c.l.b16 %v59
  %v955 = vunpack.c.l.b16 %v60
  %v956 = vunpack.c.l.b16 %v61
  %v957 = vunpack.c.l.b16 %v62
  %v958 = vunpack.c.l.b16 %v63
  %v959 = vunpack.c.l.b16 %v64
  %v960 = vunpack.c.l.b16 %v65
  %v961 = vunpack.c.l.b16 %v66
  %v962 = vunpack.c.l.b16 %v67
  %v963 = vunpack.c.l.b16 %v68
  %v964 = vunpack.c.l.b16 %v69
  %v965 = vunpack.c.l.b16 %v70
  %v966 = vunpack.c.l.b16 %v71
  %v967 = vunpack.c.l.b16 %v72
  %v968 = vunpack.c.l.b16 %v73
  %v969 = vunpack.c.l.b16 %v74
  %v970 = vunpack.c.l.b16 %v75
  %v971 = vunpack.c.l.b16 %v76
  %v972 = vunpack.c.l.b16 %v77
  %v973 = vunpack.c.l.b16 %v78
  %v974 = vunpack.c.l.b16 %v79
  %v975 = vunpack.c.l.b16 %v80
  %v976 = vunpack.c.l.b16 %v81
  %v977 = vunpack.c.l.b16 %v82
  %v978 = vunpack.c.l.b16 %v83
  %v979 = vunpack.c.l.b16 %v84
  %v980 = vunpack.c.l.b16 %v85
  %v981 = vunpack.c.l.b16 %v86
  %v982 = vunpack.c.l.b16 %v87
  %v983 = vunpack.c.l.b16 %v88
  %v984 = vunpack.c.l.b16 %v89
  %v985 = vunpack.c.l.b16 %v90
  %v986 = vunpack.c.l.b16 %v91
  %v987 = vunpack.c.l.b16 %v92
  %v988 = vunpack.c.l.b16 %v93
  %v989 = vunpack.c.l.b16 %v94
  %v990 = vunpack.c.l.b16 %v95
  %v991 = vunpack.c.l.b16 %v96
  %v992 = vunpack.c.l.b16 %v97
  %v993 = vunpack.c.l.b16 %v98
  %v994 = vunpack.c.l.b16 %v99
  %v995 = vunpack.c.l.b16 %v100
  %v996 = vunpack.c.l.b16 %v101
  %v997 = vunpack.c.l.b16 %v102
  %v998 = vunpack.c.l.b16 %v103
  %v999 = vunpack.c.l.b16 %v104
  %v1000 = vunpack.c.l.b16 %v105
  %v1001 = vunpack.c.l.b16 %v106
  %v1002 = vunpack.c.l.b16 %v107
  %v1003 = vunpack.c.l.b16 %v108
  %v1004 = vunpack.c.l.b16 %v109
  %v1005 = vunpack.c.l.b16 %v110
  %v1006 = vunpack.c.l.b16 %v111
  %v1007 = vunpack.c.l.b16 %v112
  %v1008 = vunpack.c.l.b16 %v113
  %v1009 = vunpack.c.l.b16 %v114
  %v1010 = vunpack.c.l.b16 %v115
  %v1011 = vunpack.c.l.b16 %v116
  %v1012 = vunpack.c.l.b16 %v117
  %v1013 = vunpack.c.l.b16 %v118
  %v1014 = vunpack.c.l.b16 %v119
  %v1015 = vunpack.c.l.b16 %v120
  %v1016 = vunpack.c.l.b16 %v121
  %v1017 = vunpack.c.l.b16 %v122
  %v1018 = vunpack.c.l.b16 %v123
  %v1019 = vunpack.c.l.b16 %v124
  %v1020 = vunpack.c.l.b16 %v125
  %v1021 = vunpack.c.l.b16 %v126
  %v1022 = vunpack.c.l.b16 %v127
  %v1023 = vunpack.c.l.b16 %v128
  %v1024 = vunpack.c.l.b16 %v129
  %v1025 = vunpack.c.l.b16 %v130
  %v1026 = vunpack.c.l.b16 %v131
  %v1027 = vunpack.c.l.b16 %v132
  %v1028 = vunpack.c.l.b16 %v133
  %v1029 = vunpack.c.l.b16 %v134
  %v1030 = vunpack.c.l.b16 %v135
  %v1031 = vunpack.c.l.b16 %v136
  %v1032 = vunpack.c.l.b16 %v137
  %v1033 = vunpack.c.l.b16 %v138
  %v1034 = vunpack.c.l.b16 %v139
  %v1035 = vunpack.c.l.b16 %v140
  %v1036 = vunpack.c.l.b16 %v141
  %v1037 = vunpack.c.l.b16 %v142
  %v1038 = vunpack.c.l.b16 %v143
  %v1039 = vunpack.c.l.b16 %v144
  %v1040 = vunpack.c.l.b16 %v145
  %v1041 = vunpack.c.l.b16 %v146
  %v1042 = vunpack.c.l.b16 %v147
  %v1043 = vunpack.c.l.b16 %v148
  %v1044 = vunpack.c.l.b16 %v149
  %v1045 = vunpack.c.l.b16 %v150
  %v1046 = vunpack.c.l.b16 %v151
  %v1047 = vunpack.c.l.b16 %v152
  %v1048 = vunpack.c.l.b16 %v153
  %v1049 = vunpack.c.l.b16 %v154
  %v1050 = vunpack.c.l.b16 %v155
  %v1051 = vunpack.c.l.b16 %v156
  %v1052 = vunpack.c.l.b16 %v157
  %v1053 = vunpack.c.l.b16 %v158
  %v1054 = vunpack.c.l.b16 %v159
  %v1055 = vunpack.c.l.b16 %v160
  %v1056 = vunpack.c.l.b16 %v161
  %v1057 = vunpack.c.l.b16 %v162
  %v1058 = vunpack.c.l.b16 %v163
  %v1059 = vunpack.c.l.b16 %v164
  %v1060 = vunpack.c.l.b16 %v165
  %v1061 = vunpack.c.l.b16 %v166
  %v1062 = vunpack.c.l.b16 %v167
  %v1063 = vunpack.c.l.b16 %v168
  %v1064 = vunpack.c.l.b16 %v169
  %v1065 = vunpack.c.l.b16 %v170
  %v1066 = vunpack.c.l.b16 %v171
  %v1067 = vunpack.c.l.b16 %v172
  %v1068 = vunpack.c.l.b16 %v173
  %v1069 = vunpack.c.l.b16 %v174
  %v1070 = vunpack.c.l.b16 %v175
  %v1071 = vunpack.c.l.b16 %v176
  %v1072 = vunpack.c.l.b16 %v177
  %v1073 = vunpack.c.l.b16 %v178
  %v1074 = vunpack.c.l.b16 %v179
  %v1075 = vunpack.c.l.b16 %v180
  %v1076 = vunpack.c.l.b16 %v181
  %v1077 = vunpack.c.l.b16 %v182
  %v1078 = vunpack.c.l.b16 %v183
  %v1079 = vunpack.c.l.b16 %v184
  %v1080 = vunpack.c.l.b16 %v185
  %v1081 = vunpack.c.l.b16 %v186
  %v1082 = vunpack.c.l.b16 %v187
  %v1083 = vunpack.c.l.b16 %v188
  %v1084 = vunpack.c.l.b16 %v189
  %v1085 = vunpack.c.l.b16 %v190
  %v1086 = vunpack.c.l.b16 %v191
  %v1087 = vunpack.c.l.b16 %v192
  %v1088 = vunpack.c.l.b16 %v193
  %v1089 = vunpack.c.l.b16 %v194
  %v1090 = vunpack.c.l.b16 %v195
  %v1091 = vunpack.c.l.b16 %v196
  %v1092 = vunpack.c.l.b16 %v197
  %v1093 = vunpack.c.l.b16 %v198
  %v1094 = vunpack.c.l.b16 %v199
  %v1095 = vunpack.c.l.b16 %v200
  %v1096 = vunpack.c.l.b16 %v201
  %v1097 = vunpack.c.l.b16 %v202
  %v1098 = vunpack.c.l.b16 %v203
  %v1099 = vunpack.c.l.b16 %v204
  %v1100 = vunpack.c.l.b16 %v205
  %v1101 = vunpack.c.l.b16 %v206
  %v1102 = vunpack.c.l.b16 %v207
  %v1103 = vunpack.c.l.b16 %v208
  %v1104 = vunpack.c.l.b16 %v209
  %v1105 = vunpack.c.l.b16 %v210
  %v1106 = vunpack.c.l.b16 %v211
  %v1107 = vunpack.c.l.b16 %v212
  %v1108 = vunpack.c.l.b16 %v213
  %v1109 = vunpack.c.l.b16 %v214
  %v1110 = vunpack.c.l.b16 %v215
  %v1111 = vunpack.c.l.b16 %v216
  %v1112 = vunpack.c.l.b16 %v217
  %v1113 = vunpack.c.l.b16 %v218
  %v1114 = vunpack.c.l.b16 %v219
  %v1115 = vunpack.c.l.b16 %v220
  %v1116 = vunpack.c.l.b16 %v221
  %v1117 = vunpack.c.l.b16 %v222
  %v1118 = vunpack.c.l.b16 %v223
  %v1119 = vunpack.c.l.b16 %v224
  %v1120 = vunpack.c.l.b16 %v225
  %v1121 = vunpack.c.l.b16 %v226
  %v1122 = vunpack.c.l.b16 %v227
  %v1123 = vunpack.c.l.b16 %v228
  %v1124 = vunpack.c.l.b16 %v229
  %v1125 = vunpack.c.l.b16 %v230
  %v1126 = vunpack.c.l.b16 %v231
  %v1127 = vunpack.c.l.b16 %v232
  %v1128 = vunpack.c.l.b16 %v233
  %v1129 = vunpack.c.l.b16 %v234
  %v1130 = vunpack.c.l.b16 %v235
  %v1131 = vunpack.c.l.b16 %v236
  %v1132 = vunpack.c.l.b16 %v237
  %v1133 = vunpack.c.l.b16 %v238
  %v1134 = vunpack.c.l.b16 %v239
  %v1135 = vunpack.c.l.b16 %v240
  %v1136 = vunpack.c.l.b16 %v241
  %v1137 = vunpack.c.l.b16 %v242
  %v1138 = vunpack.c.l.b16 %v243
  %v1139 = vunpack.c.l.b16 %v244
  %v1140 = vunpack.c.l.b16 %v245
  %v1141 = vunpack.c.l.b16 %v246
  %v1142 = vunpack.c.l.b16 %v247
  %v1143 = vunpack.c.l.b16 %v248
  %v1144 = vunpack.c.l.b16 %v249
  %v1145 = vunpack.c.l.b16 %v250
  %v1146 = vunpack.c.l.b16 %v251
  %v1147 = vunpack.c.l.b16 %v252
  %v1148 = vunpack.c.l.b16 %v253
  %v1149 = vunpack.c.l.b16 %v254
  %v1150 = vunpack.c.l.b16 %v255
  %v1151 = vunpack.c.l.b16 %v256
  %v1152 = vunpack.c.l.b16 %v257
  %v1153 = vunpack.c.l.b16 %v258
  %v1154 = vunpack.c.l.b16 %v259
  %v1155 = vunpack.c.l.b16 %v260
  %v1156 = vunpack.c.l.b16 %v261
  %v1157 = vunpack.c.l.b16 %v262
  %v1158 = vunpack.c.l.b16 %v263
  %v1159 = vunpack.c.l.b16 %v264
  %v1160 = vunpack.c.l.b16 %v265
  %v1161 = vunpack.c.l.b16 %v266
  %v1162 = vunpack.c.l.b16 %v267
  %v1163 = vunpack.c.l.b16 %v268
  %v1164 = vunpack.c.l.b16 %v269
  %v1165 = vunpack.c.l.b16 %v270
  %v1166 = vunpack.c.l.b16 %v271
  %v1167 = vunpack.c.l.b16 %v272
  %v1168 = vunpack.c.l.b16 %v273
  %v1169 = vunpack.c.l.b16 %v274
  %v1170 = vunpack.c.l.b16 %v275
  %v1171 = vunpack.c.l.b16 %v276
  %v1172 = vunpack.c.l.b16 %v277
  %v1173 = vunpack.c.l.b16 %v278
  %v1174 = vunpack.c.l.b16 %v279
  %v1175 = vunpack.c.l.b16 %v280
  %v1176 = vunpack.c.l.b16 %v281
  %v1177 = vunpack.c.l.b16 %v282
  %v1178 = vunpack.c.l.b16 %v283
  %v1179 = vunpack.c.l.b16 %v284
  %v1180 = vunpack.c.l.b16 %v285
  %v1181 = vunpack.c.l.b16 %v286
  %v1182 = vunpack.c.l.b16 %v287
  %v1183 = vunpack.c.l.b16 %v288
  %v1184 = vunpack.c.l.b16 %v289
  %v1185 = vunpack.c.l.b16 %v290
  %v1186 = vunpack.c.l.b16 %v291
  %v1187 = vunpack.c.l.b16 %v292
  %v1188 = vunpack.c.l.b16 %v293
  %v1189 = vunpack.c.l.b16 %v294
  %v1190 = vunpack.c.l.b16 %v295
  %v1191 = vunpack.c.l.b16 %v296
  %v1192 = vunpack.c.l.b16 %v297
  %v1193 = vunpack.c.l.b16 %v298
  %v1194 = vunpack.c.l.b16 %v299
  %v1195 = vunpack.c.l.b16 %v300
  %v1196 = vunpack.c.l.b16 %v301
  %v1197 = vunpack.c.l.b16 %v302
  %v1198 = vunpack.c.l.b16 %v303
  %v1199 = vunpack.c.l.b16 %v304
  %v1200 = vunpack.c.l.b16 %v305
  %v1201 = vunpack.c.l.b16 %v306
  %v1202 = vunpack.c.l.b16 %v307
  %v1203 = vunpack.c.l.b16 %v308
  %v1204 = vunpack.c.l.b16 %v309
  %v1205 = vunpack.c.l.b16 %v310
  %v1206 = vunpack.c.l.b16 %v311
  %v1207 = vunpack.c.l.b16 %v312
  %v1208 = vunpack.c.l.b16 %v313
  %v1209 = vunpack.c.l.b16 %v314
  %v1210 = vunpack.c.l.b16 %v315
  %v1211 = vunpack.c.l.b16 %v316
  %v1212 = vunpack.c.l.b16 %v317
  %v1213 = vunpack.c.l.b16 %v318
  %v1214 = vunpack.c.l.b16 %v319
  %v1215 = vunpack.c.l.b16 %v320
  %v1216 = vunpack.c.l.b16 %v321
  %v1217 = vunpack.c.l.b16 %v322
  %v1218 = vunpack.c.l.b16 %v323
  %v1219 = vunpack.c.l.b16 %v324
  %v1220 = vunpack.c.l.b16 %v325
  %v1221 = vunpack.c.l.b16 %v326
  %v1222 = vunpack.c.l.b16 %v327
  %v1223 = vunpack.c.l.b16 %v328
  %v1224 = vunpack.c.l.b16 %v329
  %v1225 = vunpack.c.l.b16 %v330
  %v1226 = vunpack.c.l.b16 %v331
  %v1227 = vunpack.c.l.b16 %v332
  %v1228 = vunpack.c.l.b16 %v333
  %v1229 = vunpack.c.l.b16 %v334
  %v1230 = vunpack.c.l.b16 %v335
  %v1231 = vunpack.c.l.b16 %v336
  %v1232 = vunpack.c.l.b16 %v337
  %v1233 = vunpack.c.l.b16 %v338
  %v1234 = vunpack.c.l.b16 %v339
  %v1235 = vunpack.c.l.b16 %v340
  %v1236 = vunpack.c.l.b16 %v341
  %v1237 = vunpack.c.l.b16 %v342
  %v1238 = vunpack.c.l.b16 %v343
  %v1239 = vunpack.c.l.b16 %v344
  %v1240 = vunpack.c.l.b16 %v345
  %v1241 = vunpack.c.l.b16 %v346
  %v1242 = vunpack.c.l.b16 %v347
  %v1243 = vunpack.c.l.b16 %v348
  %v1244 = vunpack.c.l.b16 %v349
  %v1245 = vunpack.c.l.b16 %v350
  %v1246 = vunpack.c.l.b16 %v351
  %v1247 = vunpack.c.l.b16 %v352
  %v1248 = vunpack.c.l.b16 %v353
  %v1249 = vunpack.c.l.b16 %v354
  %v1250 = vunpack.c.l.b16 %v355
  %v1251 = vunpack.c.l.b16 %v356
  %v1252 = vunpack.c.l.b16 %v357
  %v1253 = vunpack.c.l.b16 %v358
  %v1254 = vunpack.c.l.b16 %v359
  %v1255 = vunpack.c.l.b16 %v360
  %v1256 = vunpack.c.l.b16 %v361
  %v1257 = vunpack.c.l.b16 %v362
  %v1258 = vunpack.c.l.b16 %v363
  %v1259 = vunpack.c.l.b16 %v364
  %v1260 = vunpack.c.l.b16 %v365
  %v1261 = vunpack.c.l.b16 %v366
  %v1262 = vunpack.c.l.b16 %v367
  %v1263 = vunpack.c.l.b16 %v368
  %v1264 = vunpack.c.l.b16 %v369
  %v1265 = vunpack.c.l.b16 %v370
  %v1266 = vunpack.c.l.b16 %v371
  %v1267 = vunpack.c.l.b16 %v372
  %v1268 = vunpack.c.l.b16 %v373
  %v1269 = vunpack.c.l.b16 %v374
  %v1270 = vunpack.c.l.b16 %v375
  %v1271 = vunpack.c.l.b16 %v376
  %v1272 = vunpack.c.l.b16 %v377
  %v1273 = vunpack.c.l.b16 %v378
  %v1274 = vunpack.c.l.b16 %v379
  %v1275 = vunpack.c.l.b16 %v380
  %v1276 = vunpack.c.l.b16 %v381
  %v1277 = vunpack.c.l.b16 %v382
  %v1278 = vunpack.c.l.b16 %v383
  %v1279 = vunpack.c.l.b16 %v384
  %v1280 = vunpack.c.l.b16 %v385
  %v1281 = vunpack.c.l.b16 %v386
  %v1282 = vunpack.c.l.b16 %v387
  %v1283 = vunpack.c.l.b16 %v388
  %v1284 = vunpack.c.l.b16 %v389
  %v1285 = vunpack.c.l.b16 %v390
  %v1286 = vunpack.c.l.b16 %v391
  %v1287 = vunpack.c.l.b16 %v392
  %v1288 = vunpack.c.l.b16 %v393
  %v1289 = vunpack.c.l.b16 %v394
  %v1290 = vunpack.c.l.b16 %v395
  %v1291 = vunpack.c.l.b16 %v396
  %v1292 = vunpack.c.l.b16 %v397
  %v1293 = vunpack.c.l.b16 %v398
  %v1294 = vunpack.c.l.b16 %v399
  %v1295 = vunpack.c.l.b16 %v400
  %v1296 = vunpack.c.l.b16 %v401
  %v1297 = vunpack.c.l.b16 %v402
  %v1298 = vunpack.c.l.b16 %v403
  %v1299 = vunpack.c.l.b16 %v404
  %v1300 = vunpack.c.l.b16 %v405
  %v1301 = vunpack.c.l.b16 %v406
  %v1302 = vunpack.c.l.b16 %v407
  %v1303 = vunpack.c.l.b16 %v408
  %v1304 = vunpack.c.l.b16 %v409
  %v1305 = vunpack.c.l.b16 %v410
  %v1306 = vunpack.c.l.b16 %v411
  %v1307 = vunpack.c.l.b16 %v412
  %v1308 = vunpack.c.l.b16 %v413
  %v1309 = vunpack.c.l.b16 %v414
  %v1310 = vunpack.c.l.b16 %v415
  %v1311 = vunpack.c.l.b16 %v416
  %v1312 = vunpack.c.l.b16 %v417
  %v1313 = vunpack.c.l.b16 %v418
  %v1314 = vunpack.c.l.b16 %v419
  %v1315 = vunpack.c.l.b16 %v420
  %v1316 = vunpack.c.l.b16 %v421
  %v1317 = vunpack.c.l.b16 %v422
  %v1318 = vunpack.c.l.b16 %v423
  %v1319 = vunpack.c.l.b16 %v424
  %v1320 = vpack.c.b16 %v937, %v936
  %v1321 = vpack.c.b16 %v939, %v938
  %v1322 = vpack.c.b16 %v941, %v940
  %v1323 = vpack.c.b16 %v943, %v942
  %v1324 = vpack.c.b16 %v945, %v944
  %v1325 = vpack.c.b16 %v947, %v946
  %v1326 = vpack.c.b16 %v949, %v948
  %v1327 = vpack.c.b16 %v951, %v950
  %v1328 = vpack.c.b16 %v953, %v952
  %v1329 = vpack.c.b16 %v955, %v954
  %v1330 = vpack.c.b16 %v957, %v956
  %v1331 = vpack.c.b16 %v959, %v958
  %v1332 = vpack.c.b16 %v961, %v960
  %v1333 = vpack.c.b16 %v963, %v962
  %v1334 = vpack.c.b16 %v965, %v964
  %v1335 = vpack.c.b16 %v967, %v966
  %v1336 = vpack.c.b16 %v969, %v968
  %v1337 = vpack.c.b16 %v971, %v970
  %v1338 = vpack.c.b16 %v973, %v972
  %v1339 = vpack.c.b16 %v975, %v974
  %v1340 = vpack.c.b16 %v977, %v976
  %v1341 = vpack.c.b16 %v979, %v978
  %v1342 = vpack.c.b16 %v981, %v980
  %v1343 = vpack.c.b16 %v983, %v982
  %v1344 = vpack.c.b16 %v985, %v984
  %v1345 = vpack.c.b16 %v987, %v986
  %v1346 = vpack.c.b16 %v989, %v988
  %v1347 = vpack.c.b16 %v991, %v990
  %v1348 = vpack.c.b16 %v993, %v992
  %v1349 = vpack.c.b16 %v995, %v994
  %v1350 = vpack.c.b16 %v997, %v996
  %v1351 = vpack.c.b16 %v999, %v998
  %v1352 = vpack.c.b16 %v1001, %v1000
  %v1353 = vpack.c.b16 %v1003, %v1002
  %v1354 = vpack.c.b16 %v1005, %v1004
  %v1355 = vpack.c.b16 %v1007, %v1006
  %v1356 = vpack.c.b16 %v1009, %v1008
  %v1357 = vpack.c.b16 %v1011, %v1010
  %v1358 = vpack.c.b16 %v1013, %v1012
  %v1359 = vpack.c.b16 %v1015, %v1014
  %v1360 = vpack.c.b16 %v1017, %v1016
  %v1361 = vpack.c.b16 %v1019, %v1018
  %v1362 = vpack.c.b16 %v1021, %v1020
  %v1363 = vpack.c.b16 %v1023, %v1022
  %v1364 = vpack.c.b16 %v1025, %v1024
  %v1365 = vpack.c.b16 %v1027, %v1026
  %v1366 = vpack.c.b16 %v1029, %v1028
  %v1367 = vpack.c.b16 %v1031, %v1030
  %v1368 = vpack.c.b16 %v1033, %v1032
  %v1369 = vpack.c.b16 %v1035, %v1034
  %v1370 = vpack.c.b16 %v1037, %v1036
  %v1371 = vpack.c.b16 %v1039, %v1038
  %v1372 = vpack.c.b16 %v1041, %v1040
  %v1373 = vpack.c.b16 %v1043, %v1042
  %v1374 = vpack.c.b16 %v1045, %v1044
  %v1375 = vpack.c.b16 %v1047, %v1046
  %v1376 = vpack.c.b16 %v1049, %v1048
  %v1377 = vpack.c.b16 %v1051, %v1050
  %v1378 = vpack.c.b16 %v1053, %v1052
  %v1379 = vpack.c.b16 %v1055, %v1054
  %v1380 = vpack.c.b16 %v1057, %v1056
  %v1381 = vpack.c.b16 %v1059, %v1058
  %v1382 = vpack.c.b16 %v1061, %v1060
  %v1383 = vpack.c.b16 %v1063, %v1062
  %v1384 = vpack.c.b16 %v1065, %v1064
  %v1385 = vpack.c.b16 %v1067, %v1066
  %v1386 = vpack.c.b16 %v1069, %v1068
  %v1387 = vpack.c.b16 %v1071, %v1070
  %v1388 = vpack.c.b16 %v1073, %v1072
  %v1389 = vpack.c.b16 %v1075, %v1074
  %v1390 = vpack.c.b16 %v1077, %v1076
  %v1391 = vpack.c.b16 %v1079, %v1078
  %v1392 = vpack.c.b16 %v1081, %v1080
  %v1393 = vpack.c.b16 %v1083, %v1082
  %v1394 = vpack.c.b16 %v1085, %v1084
  %v1395 = vpack.c.b16 %v1087, %v1086
  %v1396 = vpack.c.b16 %v1089, %v1088
  %v1397 = vpack.c.b16 %v1091, %v1090
  %v1398 = vpack.c.b16 %v1093, %v1092
  %v1399 = vpack.c.b16 %v1095, %v1094
  %v1400 = vpack.c.b16 %v1097, %v1096
  %v1401 = vpack.c.b16 %v1099, %v1098
  %v1402 = vpack.c.b16 %v1101, %v1100
  %v1403 = vpack.c.b16 %v1103, %v1102
  %v1404 = vpack.c.b16 %v1105, %v1104
  %v1405 = vpack.c.b16 %v1107, %v1106
  %v1406 = vpack.c.b16 %v1109, %v1108
  %v1407 = vpack.c.b16 %v1111, %v1110
  %v1408 = vpack.c.b16 %v1113, %v1112
  %v1409 = vpack.c.b16 %v1115, %v1114
  %v1410 = vpack.c.b16 %v1117, %v1116
  %v1411 = vpack.c.b16 %v1119, %v1118
  %v1412 = vpack.c.b16 %v1121, %v1120
  %v1413 = vpack.c.b16 %v1123, %v1122
  %v1414 = vpack.c.b16 %v1125, %v1124
  %v1415 = vpack.c.b16 %v1127, %v1126
  %v1416 = vpack.c.b16 %v1129, %v1128
  %v1417 = vpack.c.b16 %v1131, %v1130
  %v1418 = vpack.c.b16 %v1133, %v1132
  %v1419 = vpack.c.b16 %v1135, %v1134
  %v1420 = vpack.c.b16 %v1137, %v1136
  %v1421 = vpack.c.b16 %v1139, %v1138
  %v1422 = vpack.c.b16 %v1141, %v1140
  %v1423 = vpack.c.b16 %v1143, %v1142
  %v1424 = vpack.c.b16 %v1145, %v1144
  %v1425 = vpack.c.b16 %v1147, %v1146
  %v1426 = vpack.c.b16 %v1149, %v1148
  %v1427 = vpack.c.b16 %v1151, %v1150
  %v1428 = vpack.c.b16 %v1153, %v1152
  %v1429 = vpack.c.b16 %v1155, %v1154
  %v1430 = vpack.c.b16 %v1157, %v1156
  %v1431 = vpack.c.b16 %v1159, %v1158
  %v1432 = vpack.c.b16 %v1161, %v1160
  %v1433 = vpack.c.b16 %v1163, %v1162
  %v1434 = vpack.c.b16 %v1165, %v1164
  %v1435 = vpack.c.b16 %v1167, %v1166
  %v1436 = vpack.c.b16 %v1169, %v1168
  %v1437 = vpack.c.b16 %v1171, %v1170
  %v1438 = vpack.c.b16 %v1173, %v1172
  %v1439 = vpack.c.b16 %v1175, %v1174
  %v1440 = vpack.c.b16 %v1177, %v1176
  %v1441 = vpack.c.b16 %v1179, %v1178
  %v1442 = vpack.c.b16 %v1181, %v1180
  %v1443 = vpack.c.b16 %v1183, %v1182
  %v1444 = vpack.c.b16 %v1185, %v1184
  %v1445 = vpack.c.b16 %v1187, %v1186
  %v1446 = vpack.c.b16 %v1189, %v1188
  %v1447 = vpack.c.b16 %v1191, %v1190
  %v1448 = vpack.c.b16 %v1193, %v1192
  %v1449 = vpack.c.b16 %v1195, %v1194
  %v1450 = vpack.c.b16 %v1197, %v1196
  %v1451 = vpack.c.b16 %v1199, %v1198
  %v1452 = vpack.c.b16 %v1201, %v1200
  %v1453 = vpack.c.b16 %v1203, %v1202
  %v1454 = vpack.c.b16 %v1205, %v1204
  %v1455 = vpack.c.b16 %v1207, %v1206
  %v1456 = vpack.c.b16 %v1209, %v1208
  %v1457 = vpack.c.b16 %v1211, %v1210
  %v1458 = vpack.c.b16 %v1213, %v1212
  %v1459 = vpack.c.b16 %v1215, %v1214
  %v1460 = vpack.c.b16 %v1217, %v1216
  %v1461 = vpack.c.b16 %v1219, %v1218
  %v1462 = vpack.c.b16 %v1221, %v1220
  %v1463 = vpack.c.b16 %v1223, %v1222
  %v1464 = vpack.c.b16 %v1225, %v1224
  %v1465 = vpack.c.b16 %v1227, %v1226
  %v1466 = vpack.c.b16 %v1229, %v1228
  %v1467 = vpack.c.b16 %v1231, %v1230
  %v1468 = vpack.c.b16 %v1233, %v1232
  %v1469 = vpack.c.b16 %v1235, %v1234
  %v1470 = vpack.c.b16 %v1237, %v1236
  %v1471 = vpack.c.b16 %v1239, %v1238
  %v1472 = vpack.c.b16 %v1241, %v1240
  %v1473 = vpack.c.b16 %v1243, %v1242
  %v1474 = vpack.c.b16 %v1245, %v1244
  %v1475 = vpack.c.b16 %v1247, %v1246
  %v1476 = vpack.c.b16 %v1249, %v1248
  %v1477 = vpack.c.b16 %v1251, %v1250
  %v1478 = vpack.c.b16 %v1253, %v1252
  %v1479 = vpack.c.b16 %v1255, %v1254
  %v1480 = vpack.c.b16 %v1257, %v1256
  %v1481 = vpack.c.b16 %v1259, %v1258
  %v1482 = vpack.c.b16 %v1261, %v1260
  %v1483 = vpack.c.b16 %v1263, %v1262
  %v1484 = vpack.c.b16 %v1265, %v1264
  %v1485 = vpack.c.b16 %v1267, %v1266
  %v1486 = vpack.c.b16 %v1269, %v1268
  %v1487 = vpack.c.b16 %v1271, %v1270
  %v1488 = vpack.c.b16 %v1273, %v1272
  %v1489 = vpack.c.b16 %v1275, %v1274
  %v1490 = vpack.c.b16 %v1277, %v1276
  %v1491 = vpack.c.b16 %v1279, %v1278
  %v1492 = vpack.c.b16 %v1281, %v1280
  %v1493 = vpack.c.b16 %v1283, %v1282
  %v1494 = vpack.c.b16 %v1285, %v1284
  %v1495 = vpack.c.b16 %v1287, %v1286
  %v1496 = vpack.c.b16 %v1289, %v1288
  %v1497 = vpack.c.b16 %v1291, %v1290
  %v1498 = vpack.c.b16 %v1293, %v1292
  %v1499 = vpack.c.b16 %v1295, %v1294
  %v1500 = vpack.c.b16 %v1297, %v1296
  %v1501 = vpack.c.b16 %v1299, %v1298
  %v1502 = vpack.c.b16 %v1301, %v1300
  %v1503 = vpack.c.b16 %v1303, %v1302
  %v1504 = vpack.c.b16 %v1305, %v1304
  %v1505 = vpack.c.b16 %v1307, %v1306
  %v1506 = vpack.c.b16 %v1309, %v1308
  %v1507 = vpack.c.b16 %v1311, %v1310
  %v1508 = vpack.c.b16 %v1313, %v1312
  %v1509 = vpack.c.b16 %v1315, %v1314
  %v1510 = vpack.c.b16 %v1317, %v1316
  %v1511 = vpack.c.b16 %v1319, %v1318
  %1704 = vmatprep.subr.bf16.mxu0 0
  %1705 = vmatpush1.bf16.msra.mxu0 %v1327
  %1706 = vmatprep.subr.bf16.mxu0 0
  %1707 = vmatpush1.bf16.msra.mxu0 %v1326
  %1708 = vmatprep.subr.bf16.mxu0 0
  %1709 = vmatpush1.bf16.msra.mxu0 %v1325
  %1710 = vmatprep.subr.bf16.mxu0 0
  %1711 = vmatpush1.bf16.msra.mxu0 %v1324
  %1712 = vmatprep.subr.bf16.mxu0 0
  %1713 = vmatpush1.bf16.msra.mxu0 %v1323
  %1714 = vmatprep.subr.bf16.mxu0 0
  %1715 = vmatpush1.bf16.msra.mxu0 %v1322
  %1716 = vmatprep.subr.bf16.mxu0 0
  %1717 = vmatpush1.bf16.msra.mxu0 %v1321
  %1718 = vmatprep.subr.bf16.mxu0 0
  %1719 = vmatpush1.bf16.msra.mxu0 %v1320
  %1720 = vmatprep.subr.bf16.mxu0 0
  %1721 = vmatpush2.bf16.msra.mxu0 %v1335
  %1722 = vmatprep.subr.bf16.mxu0 0
  %1723 = vmatpush2.bf16.msra.mxu0 %v1334
  %1724 = vmatprep.subr.bf16.mxu0 0
  %1725 = vmatpush2.bf16.msra.mxu0 %v1333
  %1726 = vmatprep.subr.bf16.mxu0 0
  %1727 = vmatpush2.bf16.msra.mxu0 %v1332
  %1728 = vmatprep.subr.bf16.mxu0 0
  %1729 = vmatpush2.bf16.msra.mxu0 %v1331
  %1730 = vmatprep.subr.bf16.mxu0 0
  %1731 = vmatpush2.bf16.msra.mxu0 %v1330
  %1732 = vmatprep.subr.bf16.mxu0 0
  %1733 = vmatpush2.bf16.msra.mxu0 %v1329
  %1734 = vmatprep.subr.bf16.mxu0 0
  %1735 = vmatpush2.bf16.msra.mxu0 %v1328
  %1736 = vmatprep.mubr.bf16.mxu0 %v505
  %1737 = vmatmul.mubr.bf16.gmra.mxu0 %v504
  %v1738 = vpop.f32.mrf.mxu0
  %v1739 = vadd.f32 %v430, %v1738
  %v1740 = vpop.f32.mrf.mxu0
  %v1741 = vpop.f32.mrf.mxu0
  %v1742 = vadd.f32 %v430, %v1741
  %v1743 = vpop.f32.mrf.mxu0
  %1744 = vdwg.mxu0
  %1745 = vmatprep.subr.bf16.mxu0 0
  %1746 = vmatpush1.bf16.msra.mxu0 %v1343
  %1747 = vmatprep.subr.bf16.mxu0 0
  %1748 = vmatpush1.bf16.msra.mxu0 %v1342
  %1749 = vmatprep.subr.bf16.mxu0 0
  %1750 = vmatpush1.bf16.msra.mxu0 %v1341
  %1751 = vmatprep.subr.bf16.mxu0 0
  %1752 = vmatpush1.bf16.msra.mxu0 %v1340
  %1753 = vmatprep.subr.bf16.mxu0 0
  %1754 = vmatpush1.bf16.msra.mxu0 %v1339
  %1755 = vmatprep.subr.bf16.mxu0 0
  %1756 = vmatpush1.bf16.msra.mxu0 %v1338
  %1757 = vmatprep.subr.bf16.mxu0 0
  %1758 = vmatpush1.bf16.msra.mxu0 %v1337
  %1759 = vmatprep.subr.bf16.mxu0 0
  %1760 = vmatpush1.bf16.msra.mxu0 %v1336
  %1761 = vmatprep.subr.bf16.mxu0 0
  %1762 = vmatpush2.bf16.msra.mxu0 %v1351
  %1763 = vmatprep.subr.bf16.mxu0 0
  %1764 = vmatpush2.bf16.msra.mxu0 %v1350
  %1765 = vmatprep.subr.bf16.mxu0 0
  %1766 = vmatpush2.bf16.msra.mxu0 %v1349
  %1767 = vmatprep.subr.bf16.mxu0 0
  %1768 = vmatpush2.bf16.msra.mxu0 %v1348
  %1769 = vmatprep.subr.bf16.mxu0 0
  %1770 = vmatpush2.bf16.msra.mxu0 %v1347
  %1771 = vmatprep.subr.bf16.mxu0 0
  %1772 = vmatpush2.bf16.msra.mxu0 %v1346
  %1773 = vmatprep.subr.bf16.mxu0 0
  %1774 = vmatpush2.bf16.msra.mxu0 %v1345
  %1775 = vmatprep.subr.bf16.mxu0 0
  %1776 = vmatpush2.bf16.msra.mxu0 %v1344
  %1777 = vmatprep.mubr.bf16.mxu0 %v507
  %1778 = vmatmul.mubr.bf16.gmra.mxu0 %v506
  %v1779 = vpop.f32.mrf.mxu0
  %v1780 = vadd.f32 %v1739, %v1779
  %v1781 = vpop.f32.mrf.mxu0
  %v1782 = vpop.f32.mrf.mxu0
  %v1783 = vadd.f32 %v1742, %v1782
  %v1784 = vpop.f32.mrf.mxu0
  %1785 = vdwg.mxu0
  %1786 = vmatprep.subr.bf16.mxu0 0
  %1787 = vmatpush1.bf16.msra.mxu0 %v1359
  %1788 = vmatprep.subr.bf16.mxu0 0
  %1789 = vmatpush1.bf16.msra.mxu0 %v1358
  %1790 = vmatprep.subr.bf16.mxu0 0
  %1791 = vmatpush1.bf16.msra.mxu0 %v1357
  %1792 = vmatprep.subr.bf16.mxu0 0
  %1793 = vmatpush1.bf16.msra.mxu0 %v1356
  %1794 = vmatprep.subr.bf16.mxu0 0
  %1795 = vmatpush1.bf16.msra.mxu0 %v1355
  %1796 = vmatprep.subr.bf16.mxu0 0
  %1797 = vmatpush1.bf16.msra.mxu0 %v1354
  %1798 = vmatprep.subr.bf16.mxu0 0
  %1799 = vmatpush1.bf16.msra.mxu0 %v1353
  %1800 = vmatprep.subr.bf16.mxu0 0
  %1801 = vmatpush1.bf16.msra.mxu0 %v1352
  %1802 = vmatprep.subr.bf16.mxu0 0
  %1803 = vmatpush2.bf16.msra.mxu0 %v1367
  %1804 = vmatprep.subr.bf16.mxu0 0
  %1805 = vmatpush2.bf16.msra.mxu0 %v1366
  %1806 = vmatprep.subr.bf16.mxu0 0
  %1807 = vmatpush2.bf16.msra.mxu0 %v1365
  %1808 = vmatprep.subr.bf16.mxu0 0
  %1809 = vmatpush2.bf16.msra.mxu0 %v1364
  %1810 = vmatprep.subr.bf16.mxu0 0
  %1811 = vmatpush2.bf16.msra.mxu0 %v1363
  %1812 = vmatprep.subr.bf16.mxu0 0
  %1813 = vmatpush2.bf16.msra.mxu0 %v1362
  %1814 = vmatprep.subr.bf16.mxu0 0
  %1815 = vmatpush2.bf16.msra.mxu0 %v1361
  %1816 = vmatprep.subr.bf16.mxu0 0
  %1817 = vmatpush2.bf16.msra.mxu0 %v1360
  %1818 = vmatprep.mubr.bf16.mxu0 %v509
  %1819 = vmatmul.mubr.bf16.gmra.mxu0 %v508
  %v1820 = vpop.f32.mrf.mxu0
  %v1821 = vadd.f32 %v1780, %v1820
  %v1822 = vpop.f32.mrf.mxu0
  %v1823 = vpop.f32.mrf.mxu0
  %v1824 = vadd.f32 %v1783, %v1823
  %v1825 = vpop.f32.mrf.mxu0
  %1826 = vdwg.mxu0
  %1827 = vmatprep.subr.bf16.mxu0 0
  %1828 = vmatpush1.bf16.msra.mxu0 %v1375
  %1829 = vmatprep.subr.bf16.mxu0 0
  %1830 = vmatpush1.bf16.msra.mxu0 %v1374
  %1831 = vmatprep.subr.bf16.mxu0 0
  %1832 = vmatpush1.bf16.msra.mxu0 %v1373
  %1833 = vmatprep.subr.bf16.mxu0 0
  %1834 = vmatpush1.bf16.msra.mxu0 %v1372
  %1835 = vmatprep.subr.bf16.mxu0 0
  %1836 = vmatpush1.bf16.msra.mxu0 %v1371
  %1837 = vmatprep.subr.bf16.mxu0 0
  %1838 = vmatpush1.bf16.msra.mxu0 %v1370
  %1839 = vmatprep.subr.bf16.mxu0 0
  %1840 = vmatpush1.bf16.msra.mxu0 %v1369
  %1841 = vmatprep.subr.bf16.mxu0 0
  %1842 = vmatpush1.bf16.msra.mxu0 %v1368
  %1843 = vmatprep.subr.bf16.mxu0 0
  %1844 = vmatpush2.bf16.msra.mxu0 %v1383
  %1845 = vmatprep.subr.bf16.mxu0 0
  %1846 = vmatpush2.bf16.msra.mxu0 %v1382
  %1847 = vmatprep.subr.bf16.mxu0 0
  %1848 = vmatpush2.bf16.msra.mxu0 %v1381
  %1849 = vmatprep.subr.bf16.mxu0 0
  %1850 = vmatpush2.bf16.msra.mxu0 %v1380
  %1851 = vmatprep.subr.bf16.mxu0 0
  %1852 = vmatpush2.bf16.msra.mxu0 %v1379
  %1853 = vmatprep.subr.bf16.mxu0 0
  %1854 = vmatpush2.bf16.msra.mxu0 %v1378
  %1855 = vmatprep.subr.bf16.mxu0 0
  %1856 = vmatpush2.bf16.msra.mxu0 %v1377
  %1857 = vmatprep.subr.bf16.mxu0 0
  %1858 = vmatpush2.bf16.msra.mxu0 %v1376
  %1859 = vmatprep.mubr.bf16.mxu0 %v511
  %1860 = vmatmul.mubr.bf16.gmra.mxu0 %v510
  %v1861 = vpop.f32.mrf.mxu0
  %v1862 = vadd.f32 %v1821, %v1861
  %v1863 = vpop.f32.mrf.mxu0
  %v1864 = vpop.f32.mrf.mxu0
  %v1865 = vadd.f32 %v1824, %v1864
  %v1866 = vpop.f32.mrf.mxu0
  %1867 = vdwg.mxu0
  %1868 = vmatprep.subr.bf16.mxu0 0
  %1869 = vmatpush1.bf16.msra.mxu0 %v1391
  %1870 = vmatprep.subr.bf16.mxu0 0
  %1871 = vmatpush1.bf16.msra.mxu0 %v1390
  %1872 = vmatprep.subr.bf16.mxu0 0
  %1873 = vmatpush1.bf16.msra.mxu0 %v1389
  %1874 = vmatprep.subr.bf16.mxu0 0
  %1875 = vmatpush1.bf16.msra.mxu0 %v1388
  %1876 = vmatprep.subr.bf16.mxu0 0
  %1877 = vmatpush1.bf16.msra.mxu0 %v1387
  %1878 = vmatprep.subr.bf16.mxu0 0
  %1879 = vmatpush1.bf16.msra.mxu0 %v1386
  %1880 = vmatprep.subr.bf16.mxu0 0
  %1881 = vmatpush1.bf16.msra.mxu0 %v1385
  %1882 = vmatprep.subr.bf16.mxu0 0
  %1883 = vmatpush1.bf16.msra.mxu0 %v1384
  %1884 = vmatprep.subr.bf16.mxu0 0
  %1885 = vmatpush2.bf16.msra.mxu0 %v1399
  %1886 = vmatprep.subr.bf16.mxu0 0
  %1887 = vmatpush2.bf16.msra.mxu0 %v1398
  %1888 = vmatprep.subr.bf16.mxu0 0
  %1889 = vmatpush2.bf16.msra.mxu0 %v1397
  %1890 = vmatprep.subr.bf16.mxu0 0
  %1891 = vmatpush2.bf16.msra.mxu0 %v1396
  %1892 = vmatprep.subr.bf16.mxu0 0
  %1893 = vmatpush2.bf16.msra.mxu0 %v1395
  %1894 = vmatprep.subr.bf16.mxu0 0
  %1895 = vmatpush2.bf16.msra.mxu0 %v1394
  %1896 = vmatprep.subr.bf16.mxu0 0
  %1897 = vmatpush2.bf16.msra.mxu0 %v1393
  %1898 = vmatprep.subr.bf16.mxu0 0
  %1899 = vmatpush2.bf16.msra.mxu0 %v1392
  %1900 = vmatprep.mubr.bf16.mxu0 %v513
  %1901 = vmatmul.mubr.bf16.gmra.mxu0 %v512
  %v1902 = vpop.f32.mrf.mxu0
  %v1903 = vadd.f32 %v1862, %v1902
  %v1904 = vpop.f32.mrf.mxu0
  %v1905 = vpop.f32.mrf.mxu0
  %v1906 = vadd.f32 %v1865, %v1905
  %v1907 = vpop.f32.mrf.mxu0
  %1908 = vdwg.mxu0
  %1909 = vmatprep.subr.bf16.mxu0 0
  %1910 = vmatpush1.bf16.msra.mxu0 %v1407
  %1911 = vmatprep.subr.bf16.mxu0 0
  %1912 = vmatpush1.bf16.msra.mxu0 %v1406
  %1913 = vmatprep.subr.bf16.mxu0 0
  %1914 = vmatpush1.bf16.msra.mxu0 %v1405
  %1915 = vmatprep.subr.bf16.mxu0 0
  %1916 = vmatpush1.bf16.msra.mxu0 %v1404
  %1917 = vmatprep.subr.bf16.mxu0 0
  %1918 = vmatpush1.bf16.msra.mxu0 %v1403
  %1919 = vmatprep.subr.bf16.mxu0 0
  %1920 = vmatpush1.bf16.msra.mxu0 %v1402
  %1921 = vmatprep.subr.bf16.mxu0 0
  %1922 = vmatpush1.bf16.msra.mxu0 %v1401
  %1923 = vmatprep.subr.bf16.mxu0 0
  %1924 = vmatpush1.bf16.msra.mxu0 %v1400
  %1925 = vmatprep.subr.bf16.mxu0 0
  %1926 = vmatpush2.bf16.msra.mxu0 %v1415
  %1927 = vmatprep.subr.bf16.mxu0 0
  %1928 = vmatpush2.bf16.msra.mxu0 %v1414
  %1929 = vmatprep.subr.bf16.mxu0 0
  %1930 = vmatpush2.bf16.msra.mxu0 %v1413
  %1931 = vmatprep.subr.bf16.mxu0 0
  %1932 = vmatpush2.bf16.msra.mxu0 %v1412
  %1933 = vmatprep.subr.bf16.mxu0 0
  %1934 = vmatpush2.bf16.msra.mxu0 %v1411
  %1935 = vmatprep.subr.bf16.mxu0 0
  %1936 = vmatpush2.bf16.msra.mxu0 %v1410
  %1937 = vmatprep.subr.bf16.mxu0 0
  %1938 = vmatpush2.bf16.msra.mxu0 %v1409
  %1939 = vmatprep.subr.bf16.mxu0 0
  %1940 = vmatpush2.bf16.msra.mxu0 %v1408
  %1941 = vmatprep.mubr.bf16.mxu0 %v515
  %1942 = vmatmul.mubr.bf16.gmra.mxu0 %v514
  %v1943 = vpop.f32.mrf.mxu0
  %v1944 = vadd.f32 %v1903, %v1943
  %v1945 = vpop.f32.mrf.mxu0
  %v1946 = vpop.f32.mrf.mxu0
  %v1947 = vadd.f32 %v1906, %v1946
  %v1948 = vpop.f32.mrf.mxu0
  %1949 = vdwg.mxu0
  %1950 = vmatprep.subr.bf16.mxu0 0
  %1951 = vmatpush1.bf16.msra.mxu0 %v1423
  %1952 = vmatprep.subr.bf16.mxu0 0
  %1953 = vmatpush1.bf16.msra.mxu0 %v1422
  %1954 = vmatprep.subr.bf16.mxu0 0
  %1955 = vmatpush1.bf16.msra.mxu0 %v1421
  %1956 = vmatprep.subr.bf16.mxu0 0
  %1957 = vmatpush1.bf16.msra.mxu0 %v1420
  %1958 = vmatprep.subr.bf16.mxu0 0
  %1959 = vmatpush1.bf16.msra.mxu0 %v1419
  %1960 = vmatprep.subr.bf16.mxu0 0
  %1961 = vmatpush1.bf16.msra.mxu0 %v1418
  %1962 = vmatprep.subr.bf16.mxu0 0
  %1963 = vmatpush1.bf16.msra.mxu0 %v1417
  %1964 = vmatprep.subr.bf16.mxu0 0
  %1965 = vmatpush1.bf16.msra.mxu0 %v1416
  %1966 = vmatprep.subr.bf16.mxu0 0
  %1967 = vmatpush2.bf16.msra.mxu0 %v1431
  %1968 = vmatprep.subr.bf16.mxu0 0
  %1969 = vmatpush2.bf16.msra.mxu0 %v1430
  %1970 = vmatprep.subr.bf16.mxu0 0
  %1971 = vmatpush2.bf16.msra.mxu0 %v1429
  %1972 = vmatprep.subr.bf16.mxu0 0
  %1973 = vmatpush2.bf16.msra.mxu0 %v1428
  %1974 = vmatprep.subr.bf16.mxu0 0
  %1975 = vmatpush2.bf16.msra.mxu0 %v1427
  %1976 = vmatprep.subr.bf16.mxu0 0
  %1977 = vmatpush2.bf16.msra.mxu0 %v1426
  %1978 = vmatprep.subr.bf16.mxu0 0
  %1979 = vmatpush2.bf16.msra.mxu0 %v1425
  %1980 = vmatprep.subr.bf16.mxu0 0
  %1981 = vmatpush2.bf16.msra.mxu0 %v1424
  %1982 = vmatprep.mubr.bf16.mxu0 %v517
  %1983 = vmatmul.mubr.bf16.gmra.mxu0 %v516
  %v1984 = vpop.f32.mrf.mxu0
  %v1985 = vadd.f32 %v1944, %v1984
  %v1986 = vpop.f32.mrf.mxu0
  %v1987 = vpop.f32.mrf.mxu0
  %v1988 = vadd.f32 %v1947, %v1987
  %v1989 = vpop.f32.mrf.mxu0
  %1990 = vdwg.mxu0
  %1991 = vmatprep.subr.bf16.mxu0 0
  %1992 = vmatpush1.bf16.msra.mxu0 %v1439
  %1993 = vmatprep.subr.bf16.mxu0 0
  %1994 = vmatpush1.bf16.msra.mxu0 %v1438
  %1995 = vmatprep.subr.bf16.mxu0 0
  %1996 = vmatpush1.bf16.msra.mxu0 %v1437
  %1997 = vmatprep.subr.bf16.mxu0 0
  %1998 = vmatpush1.bf16.msra.mxu0 %v1436
  %1999 = vmatprep.subr.bf16.mxu0 0
  %2000 = vmatpush1.bf16.msra.mxu0 %v1435
  %2001 = vmatprep.subr.bf16.mxu0 0
  %2002 = vmatpush1.bf16.msra.mxu0 %v1434
  %2003 = vmatprep.subr.bf16.mxu0 0
  %2004 = vmatpush1.bf16.msra.mxu0 %v1433
  %2005 = vmatprep.subr.bf16.mxu0 0
  %2006 = vmatpush1.bf16.msra.mxu0 %v1432
  %2007 = vmatprep.subr.bf16.mxu0 0
  %2008 = vmatpush2.bf16.msra.mxu0 %v1447
  %2009 = vmatprep.subr.bf16.mxu0 0
  %2010 = vmatpush2.bf16.msra.mxu0 %v1446
  %2011 = vmatprep.subr.bf16.mxu0 0
  %2012 = vmatpush2.bf16.msra.mxu0 %v1445
  %2013 = vmatprep.subr.bf16.mxu0 0
  %2014 = vmatpush2.bf16.msra.mxu0 %v1444
  %2015 = vmatprep.subr.bf16.mxu0 0
  %2016 = vmatpush2.bf16.msra.mxu0 %v1443
  %2017 = vmatprep.subr.bf16.mxu0 0
  %2018 = vmatpush2.bf16.msra.mxu0 %v1442
  %2019 = vmatprep.subr.bf16.mxu0 0
  %2020 = vmatpush2.bf16.msra.mxu0 %v1441
  %2021 = vmatprep.subr.bf16.mxu0 0
  %2022 = vmatpush2.bf16.msra.mxu0 %v1440
  %2023 = vmatprep.mubr.bf16.mxu0 %v519
  %2024 = vmatmul.mubr.bf16.gmra.mxu0 %v518
  %v2025 = vpop.f32.mrf.mxu0
  %v2026 = vadd.f32 %v1985, %v2025
  %v2027 = vpop.f32.mrf.mxu0
  %v2028 = vpop.f32.mrf.mxu0
  %v2029 = vadd.f32 %v1988, %v2028
  %v2030 = vpop.f32.mrf.mxu0
  %2031 = vdwg.mxu0
  %2032 = vmatprep.subr.bf16.mxu0 0
  %2033 = vmatpush1.bf16.msra.mxu0 %v1455
  %2034 = vmatprep.subr.bf16.mxu0 0
  %2035 = vmatpush1.bf16.msra.mxu0 %v1454
  %2036 = vmatprep.subr.bf16.mxu0 0
  %2037 = vmatpush1.bf16.msra.mxu0 %v1453
  %2038 = vmatprep.subr.bf16.mxu0 0
  %2039 = vmatpush1.bf16.msra.mxu0 %v1452
  %2040 = vmatprep.subr.bf16.mxu0 0
  %2041 = vmatpush1.bf16.msra.mxu0 %v1451
  %2042 = vmatprep.subr.bf16.mxu0 0
  %2043 = vmatpush1.bf16.msra.mxu0 %v1450
  %2044 = vmatprep.subr.bf16.mxu0 0
  %2045 = vmatpush1.bf16.msra.mxu0 %v1449
  %2046 = vmatprep.subr.bf16.mxu0 0
  %2047 = vmatpush1.bf16.msra.mxu0 %v1448
  %2048 = vmatprep.subr.bf16.mxu0 0
  %2049 = vmatpush2.bf16.msra.mxu0 %v1463
  %2050 = vmatprep.subr.bf16.mxu0 0
  %2051 = vmatpush2.bf16.msra.mxu0 %v1462
  %2052 = vmatprep.subr.bf16.mxu0 0
  %2053 = vmatpush2.bf16.msra.mxu0 %v1461
  %2054 = vmatprep.subr.bf16.mxu0 0
  %2055 = vmatpush2.bf16.msra.mxu0 %v1460
  %2056 = vmatprep.subr.bf16.mxu0 0
  %2057 = vmatpush2.bf16.msra.mxu0 %v1459
  %2058 = vmatprep.subr.bf16.mxu0 0
  %2059 = vmatpush2.bf16.msra.mxu0 %v1458
  %2060 = vmatprep.subr.bf16.mxu0 0
  %2061 = vmatpush2.bf16.msra.mxu0 %v1457
  %2062 = vmatprep.subr.bf16.mxu0 0
  %2063 = vmatpush2.bf16.msra.mxu0 %v1456
  %2064 = vmatprep.mubr.bf16.mxu0 %v521
  %2065 = vmatmul.mubr.bf16.gmra.mxu0 %v520
  %v2066 = vpop.f32.mrf.mxu0
  %v2067 = vadd.f32 %v2026, %v2066
  %v2068 = vpop.f32.mrf.mxu0
  %v2069 = vpop.f32.mrf.mxu0
  %v2070 = vadd.f32 %v2029, %v2069
  %v2071 = vpop.f32.mrf.mxu0
  %2072 = vdwg.mxu0
  %2073 = vmatprep.subr.bf16.mxu0 0
  %2074 = vmatpush1.bf16.msra.mxu0 %v1471
  %2075 = vmatprep.subr.bf16.mxu0 0
  %2076 = vmatpush1.bf16.msra.mxu0 %v1470
  %2077 = vmatprep.subr.bf16.mxu0 0
  %2078 = vmatpush1.bf16.msra.mxu0 %v1469
  %2079 = vmatprep.subr.bf16.mxu0 0
  %2080 = vmatpush1.bf16.msra.mxu0 %v1468
  %2081 = vmatprep.subr.bf16.mxu0 0
  %2082 = vmatpush1.bf16.msra.mxu0 %v1467
  %2083 = vmatprep.subr.bf16.mxu0 0
  %2084 = vmatpush1.bf16.msra.mxu0 %v1466
  %2085 = vmatprep.subr.bf16.mxu0 0
  %2086 = vmatpush1.bf16.msra.mxu0 %v1465
  %2087 = vmatprep.subr.bf16.mxu0 0
  %2088 = vmatpush1.bf16.msra.mxu0 %v1464
  %2089 = vmatprep.subr.bf16.mxu0 0
  %2090 = vmatpush2.bf16.msra.mxu0 %v1479
  %2091 = vmatprep.subr.bf16.mxu0 0
  %2092 = vmatpush2.bf16.msra.mxu0 %v1478
  %2093 = vmatprep.subr.bf16.mxu0 0
  %2094 = vmatpush2.bf16.msra.mxu0 %v1477
  %2095 = vmatprep.subr.bf16.mxu0 0
  %2096 = vmatpush2.bf16.msra.mxu0 %v1476
  %2097 = vmatprep.subr.bf16.mxu0 0
  %2098 = vmatpush2.bf16.msra.mxu0 %v1475
  %2099 = vmatprep.subr.bf16.mxu0 0
  %2100 = vmatpush2.bf16.msra.mxu0 %v1474
  %2101 = vmatprep.subr.bf16.mxu0 0
  %2102 = vmatpush2.bf16.msra.mxu0 %v1473
  %2103 = vmatprep.subr.bf16.mxu0 0
  %2104 = vmatpush2.bf16.msra.mxu0 %v1472
  %2105 = vmatprep.mubr.bf16.mxu0 %v523
  %2106 = vmatmul.mubr.bf16.gmra.mxu0 %v522
  %v2107 = vpop.f32.mrf.mxu0
  %v2108 = vadd.f32 %v2067, %v2107
  %v2109 = vpop.f32.mrf.mxu0
  %v2110 = vpop.f32.mrf.mxu0
  %v2111 = vadd.f32 %v2070, %v2110
  %v2112 = vpop.f32.mrf.mxu0
  %2113 = vdwg.mxu0
  %2114 = vmatprep.subr.bf16.mxu0 0
  %2115 = vmatpush1.bf16.msra.mxu0 %v1487
  %2116 = vmatprep.subr.bf16.mxu0 0
  %2117 = vmatpush1.bf16.msra.mxu0 %v1486
  %2118 = vmatprep.subr.bf16.mxu0 0
  %2119 = vmatpush1.bf16.msra.mxu0 %v1485
  %2120 = vmatprep.subr.bf16.mxu0 0
  %2121 = vmatpush1.bf16.msra.mxu0 %v1484
  %2122 = vmatprep.subr.bf16.mxu0 0
  %2123 = vmatpush1.bf16.msra.mxu0 %v1483
  %2124 = vmatprep.subr.bf16.mxu0 0
  %2125 = vmatpush1.bf16.msra.mxu0 %v1482
  %2126 = vmatprep.subr.bf16.mxu0 0
  %2127 = vmatpush1.bf16.msra.mxu0 %v1481
  %2128 = vmatprep.subr.bf16.mxu0 0
  %2129 = vmatpush1.bf16.msra.mxu0 %v1480
  %2130 = vmatprep.subr.bf16.mxu0 0
  %2131 = vmatpush2.bf16.msra.mxu0 %v1495
  %2132 = vmatprep.subr.bf16.mxu0 0
  %2133 = vmatpush2.bf16.msra.mxu0 %v1494
  %2134 = vmatprep.subr.bf16.mxu0 0
  %2135 = vmatpush2.bf16.msra.mxu0 %v1493
  %2136 = vmatprep.subr.bf16.mxu0 0
  %2137 = vmatpush2.bf16.msra.mxu0 %v1492
  %2138 = vmatprep.subr.bf16.mxu0 0
  %2139 = vmatpush2.bf16.msra.mxu0 %v1491
  %2140 = vmatprep.subr.bf16.mxu0 0
  %2141 = vmatpush2.bf16.msra.mxu0 %v1490
  %2142 = vmatprep.subr.bf16.mxu0 0
  %2143 = vmatpush2.bf16.msra.mxu0 %v1489
  %2144 = vmatprep.subr.bf16.mxu0 0
  %2145 = vmatpush2.bf16.msra.mxu0 %v1488
  %2146 = vmatprep.mubr.bf16.mxu0 %v525
  %2147 = vmatmul.mubr.bf16.gmra.mxu0 %v524
  %v2148 = vpop.f32.mrf.mxu0
  %v2149 = vadd.f32 %v2108, %v2148
  %v2150 = vpop.f32.mrf.mxu0
  %v2151 = vpop.f32.mrf.mxu0
  %v2152 = vadd.f32 %v2111, %v2151
  %v2153 = vpop.f32.mrf.mxu0
  %2154 = vdwg.mxu0
  %2155 = vmatprep.subr.bf16.mxu0 0
  %2156 = vmatpush1.bf16.msra.mxu0 %v1503
  %2157 = vmatprep.subr.bf16.mxu0 0
  %2158 = vmatpush1.bf16.msra.mxu0 %v1502
  %2159 = vmatprep.subr.bf16.mxu0 0
  %2160 = vmatpush1.bf16.msra.mxu0 %v1501
  %2161 = vmatprep.subr.bf16.mxu0 0
  %2162 = vmatpush1.bf16.msra.mxu0 %v1500
  %2163 = vmatprep.subr.bf16.mxu0 0
  %2164 = vmatpush1.bf16.msra.mxu0 %v1499
  %2165 = vmatprep.subr.bf16.mxu0 0
  %2166 = vmatpush1.bf16.msra.mxu0 %v1498
  %2167 = vmatprep.subr.bf16.mxu0 0
  %2168 = vmatpush1.bf16.msra.mxu0 %v1497
  %2169 = vmatprep.subr.bf16.mxu0 0
  %2170 = vmatpush1.bf16.msra.mxu0 %v1496
  %2171 = vmatprep.subr.bf16.mxu0 0
  %2172 = vmatpush2.bf16.msra.mxu0 %v1511
  %2173 = vmatprep.subr.bf16.mxu0 0
  %2174 = vmatpush2.bf16.msra.mxu0 %v1510
  %2175 = vmatprep.subr.bf16.mxu0 0
  %2176 = vmatpush2.bf16.msra.mxu0 %v1509
  %2177 = vmatprep.subr.bf16.mxu0 0
  %2178 = vmatpush2.bf16.msra.mxu0 %v1508
  %2179 = vmatprep.subr.bf16.mxu0 0
  %2180 = vmatpush2.bf16.msra.mxu0 %v1507
  %2181 = vmatprep.subr.bf16.mxu0 0
  %2182 = vmatpush2.bf16.msra.mxu0 %v1506
  %2183 = vmatprep.subr.bf16.mxu0 0
  %2184 = vmatpush2.bf16.msra.mxu0 %v1505
  %2185 = vmatprep.subr.bf16.mxu0 0
  %2186 = vmatpush2.bf16.msra.mxu0 %v1504
  %2187 = vmatprep.mubr.bf16.mxu0 %v527
  %2188 = vmatmul.mubr.bf16.gmra.mxu0 %v526
  %v2189 = vpop.f32.mrf.mxu0
  %v2190 = vadd.f32 %v2149, %v2189
  %v2191 = vpop.f32.mrf.mxu0
  %v2192 = vpop.f32.mrf.mxu0
  %v2193 = vadd.f32 %v2152, %v2192
  %v2194 = vpop.f32.mrf.mxu0
  %2195 = vdwg.mxu0
  %v2196 = vrot.slane %v2190, 4
  %v2197 = vadd.f32 %v2190, %v2196
  %v2198 = vrot.slane %v2197, 2
  %v2199 = vadd.f32 %v2197, %v2198
  %v2200 = vrot.slane %v2199, 1
  %v2201 = vadd.f32 %v2199, %v2200
  %v2202 = vrcp.pop 8.0
  %v2203 = vmul.f32 %v2201, %v2202
  %v2204 = vsub.f32 %v2190, %v2203
  %2205 = vxpose.xlu0.b32.start [1/16] %v2204, 128
  %2206 = vxpose.xlu0.b32.cont [2/16] 0.0, 128
  %2207 = vxpose.xlu0.b32.cont [3/16] 0.0, 128
  %2208 = vxpose.xlu0.b32.cont [4/16] 0.0, 128
  %2209 = vxpose.xlu0.b32.cont [5/16] 0.0, 128
  %2210 = vxpose.xlu0.b32.cont [6/16] 0.0, 128
  %2211 = vxpose.xlu0.b32.cont [7/16] 0.0, 128
  %2212 = vxpose.xlu0.b32.cont [8/16] 0.0, 128
  %2213 = vxpose.xlu0.b32.cont [9/16] 0.0, 128
  %2214 = vxpose.xlu0.b32.cont [10/16] 0.0, 128
  %2215 = vxpose.xlu0.b32.cont [11/16] 0.0, 128
  %2216 = vxpose.xlu0.b32.cont [12/16] 0.0, 128
  %2217 = vxpose.xlu0.b32.cont [13/16] 0.0, 128
  %2218 = vxpose.xlu0.b32.cont [14/16] 0.0, 128
  %2219 = vxpose.xlu0.b32.cont [15/16] 0.0, 128
  %2220 = vxpose.xlu0.b32.end [16/16] 0.0, 128
  %v2221 = vpop.trf.xlu0
  %v2222 = vpop.trf.xlu0
  %v2223 = vpop.trf.xlu0
  %v2224 = vpop.trf.xlu0
  %v2225 = vpop.trf.xlu0
  %v2226 = vpop.trf.xlu0
  %v2227 = vpop.trf.xlu0
  %v2228 = vpop.trf.xlu0
  %v2229 = vpop.trf.xlu0
  %v2230 = vpop.trf.xlu0
  %v2231 = vpop.trf.xlu0
  %v2232 = vpop.trf.xlu0
  %v2233 = vpop.trf.xlu0
  %v2234 = vpop.trf.xlu0
  %v2235 = vpop.trf.xlu0
  %v2236 = vpop.trf.xlu0
  %vm2237 = vcmask 64512
  %v2239 = vsel %vm2237, %v2221, 0
  %v2242 = vsel %vm2237, %v2222, 0
  %v2245 = vsel %vm2237, %v2223, 0
  %v2248 = vsel %vm2237, %v2224, 0
  %v2251 = vsel %vm2237, %v2225, 0
  %v2254 = vsel %vm2237, %v2226, 0
  %v2257 = vsel %vm2237, %v2227, 0
  %v2260 = vsel %vm2237, %v2228, 0
  %v2263 = vsel %vm2237, %v2229, 0
  %v2266 = vsel %vm2237, %v2230, 0
  %v2269 = vsel %vm2237, %v2231, 0
  %v2272 = vsel %vm2237, %v2232, 0
  %v2275 = vsel %vm2237, %v2233, 0
  %v2278 = vsel %vm2237, %v2234, 0
  %v2281 = vsel %vm2237, %v2235, 0
  %v2284 = vsel %vm2237, %v2236, 0
  %2286 = vmatprep.subr.mxu0 0.0
  %2287 = vmatpush1.msra.mxu0 0.0
  %2288 = vmatprep.subr.mxu0 0.0
  %2289 = vmatpush1.msra.mxu0 0.0
  %2290 = vmatprep.subr.mxu0 0.0
  %2291 = vmatpush1.msra.mxu0 0.0
  %2292 = vmatprep.subr.mxu0 0.0
  %2293 = vmatpush1.msra.mxu0 0.0
  %2294 = vmatprep.subr.mxu0 0.0
  %2295 = vmatpush1.msra.mxu0 0.0
  %2296 = vmatprep.subr.mxu0 0.0
  %2297 = vmatpush1.msra.mxu0 0.0
  %2298 = vmatprep.subr.mxu0 0.0
  %2299 = vmatpush1.msra.mxu0 0.0
  %2300 = vmatprep.subr.mxu0 0.0
  %2301 = vmatpush1.msra.mxu0 0.0
  %2302 = vmatprep.subr.mxu0 0.0
  %2303 = vmatpush1.msra.mxu0 0.0
  %2304 = vmatprep.subr.mxu0 0.0
  %2305 = vmatpush1.msra.mxu0 0.0
  %2306 = vmatprep.subr.mxu0 0.0
  %2307 = vmatpush1.msra.mxu0 0.0
  %2308 = vmatprep.subr.mxu0 0.0
  %2309 = vmatpush1.msra.mxu0 0.0
  %2310 = vmatprep.subr.mxu0 0.0
  %2311 = vmatpush1.msra.mxu0 0.0
  %2312 = vmatprep.subr.mxu0 0.0
  %2313 = vmatpush1.msra.mxu0 0.0
  %2314 = vmatprep.subr.mxu0 0.0
  %2315 = vmatpush1.msra.mxu0 0.0
  %2316 = vmatprep.subr.mxu0 0.0
  %2317 = vmatpush1.msra.mxu0 %v2204
  %2318 = vmatprep.subr.mxu0 0.0
  %2319 = vmatpush2.msra.mxu0 0.0
  %2320 = vmatprep.subr.mxu0 0.0
  %2321 = vmatpush2.msra.mxu0 0.0
  %2322 = vmatprep.subr.mxu0 0.0
  %2323 = vmatpush2.msra.mxu0 0.0
  %2324 = vmatprep.subr.mxu0 0.0
  %2325 = vmatpush2.msra.mxu0 0.0
  %2326 = vmatprep.subr.mxu0 0.0
  %2327 = vmatpush2.msra.mxu0 0.0
  %2328 = vmatprep.subr.mxu0 0.0
  %2329 = vmatpush2.msra.mxu0 0.0
  %2330 = vmatprep.subr.mxu0 0.0
  %2331 = vmatpush2.msra.mxu0 0.0
  %2332 = vmatprep.subr.mxu0 0.0
  %2333 = vmatpush2.msra.mxu0 0.0
  %2334 = vmatprep.subr.mxu0 0.0
  %2335 = vmatpush2.msra.mxu0 0.0
  %2336 = vmatprep.subr.mxu0 0.0
  %2337 = vmatpush2.msra.mxu0 0.0
  %2338 = vmatprep.subr.mxu0 0.0
  %2339 = vmatpush2.msra.mxu0 0.0
  %2340 = vmatprep.subr.mxu0 0.0
  %2341 = vmatpush2.msra.mxu0 0.0
  %2342 = vmatprep.subr.mxu0 0.0
  %2343 = vmatpush2.msra.mxu0 0.0
  %2344 = vmatprep.subr.mxu0 0.0
  %2345 = vmatpush2.msra.mxu0 0.0
  %2346 = vmatprep.subr.mxu0 0.0
  %2347 = vmatpush2.msra.mxu0 0.0
  %2348 = vmatprep.subr.mxu0 0.0
  %2349 = vmatpush2.msra.mxu0 0.0
  %2350 = vmatprep.mubr.f32.mxu0 0.0
  %2351 = vmatmul.mubr.f32.gmra.mxu0 %v2239
  %v2352 = vpop.f32.mrf.mxu0
  %v2353 = vadd.f32 0.0, %v2352
  %v2354 = vpop.f32.mrf.mxu0
  %2355 = vmatprep.mubr.f32.mxu0 0.0
  %2356 = vmatmul.mubr.f32.gmra.mxu0 %v2242
  %v2357 = vpop.f32.mrf.mxu0
  %v2358 = vadd.f32 0.0, %v2357
  %v2359 = vpop.f32.mrf.mxu0
  %2360 = vmatprep.mubr.f32.mxu0 0.0
  %2361 = vmatmul.mubr.f32.gmra.mxu0 %v2245
  %v2362 = vpop.f32.mrf.mxu0
  %v2363 = vadd.f32 0.0, %v2362
  %v2364 = vpop.f32.mrf.mxu0
  %2365 = vmatprep.mubr.f32.mxu0 0.0
  %2366 = vmatmul.mubr.f32.gmra.mxu0 %v2248
  %v2367 = vpop.f32.mrf.mxu0
  %v2368 = vadd.f32 0.0, %v2367
  %v2369 = vpop.f32.mrf.mxu0
  %2370 = vmatprep.mubr.f32.mxu0 0.0
  %2371 = vmatmul.mubr.f32.gmra.mxu0 %v2251
  %v2372 = vpop.f32.mrf.mxu0
  %v2373 = vadd.f32 0.0, %v2372
  %v2374 = vpop.f32.mrf.mxu0
  %2375 = vmatprep.mubr.f32.mxu0 0.0
  %2376 = vmatmul.mubr.f32.gmra.mxu0 %v2254
  %v2377 = vpop.f32.mrf.mxu0
  %v2378 = vadd.f32 0.0, %v2377
  %v2379 = vpop.f32.mrf.mxu0
  %2380 = vmatprep.mubr.f32.mxu0 0.0
  %2381 = vmatmul.mubr.f32.gmra.mxu0 %v2257
  %v2382 = vpop.f32.mrf.mxu0
  %v2383 = vadd.f32 0.0, %v2382
  %v2384 = vpop.f32.mrf.mxu0
  %2385 = vmatprep.mubr.f32.mxu0 0.0
  %2386 = vmatmul.mubr.f32.gmra.mxu0 %v2260
  %v2387 = vpop.f32.mrf.mxu0
  %v2388 = vadd.f32 0.0, %v2387
  %v2389 = vpop.f32.mrf.mxu0
  %2390 = vmatprep.mubr.f32.mxu0 0.0
  %2391 = vmatmul.mubr.f32.gmra.mxu0 %v2263
  %v2392 = vpop.f32.mrf.mxu0
  %v2393 = vadd.f32 0.0, %v2392
  %v2394 = vpop.f32.mrf.mxu0
  %2395 = vmatprep.mubr.f32.mxu0 0.0
  %2396 = vmatmul.mubr.f32.gmra.mxu0 %v2266
  %v2397 = vpop.f32.mrf.mxu0
  %v2398 = vadd.f32 0.0, %v2397
  %v2399 = vpop.f32.mrf.mxu0
  %2400 = vmatprep.mubr.f32.mxu0 0.0
  %2401 = vmatmul.mubr.f32.gmra.mxu0 %v2269
  %v2402 = vpop.f32.mrf.mxu0
  %v2403 = vadd.f32 0.0, %v2402
  %v2404 = vpop.f32.mrf.mxu0
  %2405 = vmatprep.mubr.f32.mxu0 0.0
  %2406 = vmatmul.mubr.f32.gmra.mxu0 %v2272
  %v2407 = vpop.f32.mrf.mxu0
  %v2408 = vadd.f32 0.0, %v2407
  %v2409 = vpop.f32.mrf.mxu0
  %2410 = vmatprep.mubr.f32.mxu0 0.0
  %2411 = vmatmul.mubr.f32.gmra.mxu0 %v2275
  %v2412 = vpop.f32.mrf.mxu0
  %v2413 = vadd.f32 0.0, %v2412
  %v2414 = vpop.f32.mrf.mxu0
  %2415 = vmatprep.mubr.f32.mxu0 0.0
  %2416 = vmatmul.mubr.f32.gmra.mxu0 %v2278
  %v2417 = vpop.f32.mrf.mxu0
  %v2418 = vadd.f32 0.0, %v2417
  %v2419 = vpop.f32.mrf.mxu0
  %2420 = vmatprep.mubr.f32.mxu0 0.0
  %2421 = vmatmul.mubr.f32.gmra.mxu0 %v2281
  %v2422 = vpop.f32.mrf.mxu0
  %v2423 = vadd.f32 0.0, %v2422
  %v2424 = vpop.f32.mrf.mxu0
  %2425 = vmatprep.mubr.f32.mxu0 0.0
  %2426 = vmatmul.mubr.f32.gmra.mxu0 %v2284
  %v2427 = vpop.f32.mrf.mxu0
  %v2428 = vadd.f32 0.0, %v2427
  %v2429 = vpop.f32.mrf.mxu0
  %2430 = vdwg.mxu0
  %v2431 = vrcp.pop 7.0
  %v2432 = vmul.f32 %v2353, %v2431
  %v2433 = vmul.f32 %v2358, %v2431
  %v2434 = vmul.f32 %v2363, %v2431
  %v2435 = vmul.f32 %v2368, %v2431
  %v2436 = vmul.f32 %v2373, %v2431
  %v2437 = vmul.f32 %v2378, %v2431
  %v2438 = vmul.f32 %v2383, %v2431
  %v2439 = vmul.f32 %v2388, %v2431
  %v2440 = vmul.f32 %v2393, %v2431
  %v2441 = vmul.f32 %v2398, %v2431
  %v2442 = vmul.f32 %v2403, %v2431
  %v2443 = vmul.f32 %v2408, %v2431
  %v2444 = vmul.f32 %v2413, %v2431
  %v2445 = vmul.f32 %v2418, %v2431
  %v2446 = vmul.f32 %v2423, %v2431
  %v2447 = vmul.f32 %v2428, %v2431
  %2448 = vst [vmem:[%s4] sm:$0xff] %v2432
  %2449 = vst [vmem:[%s4 + $0x8] sm:$0xff] %v2433
  %2450 = vst [vmem:[%s4 + $0x10] sm:$0xff] %v2434
  %2451 = vst [vmem:[%s4 + $0x18] sm:$0xff] %v2435
  %2452 = vst [vmem:[%s4 + $0x20] sm:$0xff] %v2436
  %2453 = vst [vmem:[%s4 + $0x28] sm:$0xff] %v2437
  %2454 = vst [vmem:[%s4 + $0x30] sm:$0xff] %v2438
  %2455 = vst [vmem:[%s4 + $0x38] sm:$0xff] %v2439
  %2456 = vst [vmem:[%s4 + $0x40] sm:$0xff] %v2440
  %2457 = vst [vmem:[%s4 + $0x48] sm:$0xff] %v2441
  %2458 = vst [vmem:[%s4 + $0x50] sm:$0xff] %v2442
  %2459 = vst [vmem:[%s4 + $0x58] sm:$0xff] %v2443
  %2460 = vst [vmem:[%s4 + $0x60] sm:$0xff] %v2444
  %2461 = vst [vmem:[%s4 + $0x68] sm:$0xff] %v2445
  %2462 = vst [vmem:[%s4 + $0x70] sm:$0xff] %v2446
  %2463 = vst [vmem:[%s4 + $0x78] sm:$0xff] %v2447
  %v2464 = vrot.slane %v2193, 4
  %v2465 = vadd.f32 %v2193, %v2464
  %v2466 = vrot.slane %v2465, 2
  %v2467 = vadd.f32 %v2465, %v2466
  %v2468 = vrot.slane %v2467, 1
  %v2469 = vadd.f32 %v2467, %v2468
  %v2470 = vmul.f32 %v2469, %v2202
  %v2471 = vsub.f32 %v2193, %v2470
  %2472 = vxpose.xlu0.b32.start [1/16] %v2471, 128
  %2473 = vxpose.xlu0.b32.cont [2/16] 0.0, 128
  %2474 = vxpose.xlu0.b32.cont [3/16] 0.0, 128
  %2475 = vxpose.xlu0.b32.cont [4/16] 0.0, 128
  %2476 = vxpose.xlu0.b32.cont [5/16] 0.0, 128
  %2477 = vxpose.xlu0.b32.cont [6/16] 0.0, 128
  %2478 = vxpose.xlu0.b32.cont [7/16] 0.0, 128
  %2479 = vxpose.xlu0.b32.cont [8/16] 0.0, 128
  %2480 = vxpose.xlu0.b32.cont [9/16] 0.0, 128
  %2481 = vxpose.xlu0.b32.cont [10/16] 0.0, 128
  %2482 = vxpose.xlu0.b32.cont [11/16] 0.0, 128
  %2483 = vxpose.xlu0.b32.cont [12/16] 0.0, 128
  %2484 = vxpose.xlu0.b32.cont [13/16] 0.0, 128
  %2485 = vxpose.xlu0.b32.cont [14/16] 0.0, 128
  %2486 = vxpose.xlu0.b32.cont [15/16] 0.0, 128
  %2487 = vxpose.xlu0.b32.end [16/16] 0.0, 128
  %v2488 = vpop.trf.xlu0
  %v2489 = vpop.trf.xlu0
  %v2490 = vpop.trf.xlu0
  %v2491 = vpop.trf.xlu0
  %v2492 = vpop.trf.xlu0
  %v2493 = vpop.trf.xlu0
  %v2494 = vpop.trf.xlu0
  %v2495 = vpop.trf.xlu0
  %v2496 = vpop.trf.xlu0
  %v2497 = vpop.trf.xlu0
  %v2498 = vpop.trf.xlu0
  %v2499 = vpop.trf.xlu0
  %v2500 = vpop.trf.xlu0
  %v2501 = vpop.trf.xlu0
  %v2502 = vpop.trf.xlu0
  %v2503 = vpop.trf.xlu0
  %v2505 = vsel %vm2237, %v2488, 0
  %v2508 = vsel %vm2237, %v2489, 0
  %v2511 = vsel %vm2237, %v2490, 0
  %v2514 = vsel %vm2237, %v2491, 0
  %v2517 = vsel %vm2237, %v2492, 0
  %v2520 = vsel %vm2237, %v2493, 0
  %v2523 = vsel %vm2237, %v2494, 0
  %v2526 = vsel %vm2237, %v2495, 0
  %v2529 = vsel %vm2237, %v2496, 0
  %v2532 = vsel %vm2237, %v2497, 0
  %v2535 = vsel %vm2237, %v2498, 0
  %v2538 = vsel %vm2237, %v2499, 0
  %v2541 = vsel %vm2237, %v2500, 0
  %v2544 = vsel %vm2237, %v2501, 0
  %v2547 = vsel %vm2237, %v2502, 0
  %v2550 = vsel %vm2237, %v2503, 0
  %2552 = vmatprep.subr.mxu0 0.0
  %2553 = vmatpush1.msra.mxu0 0.0
  %2554 = vmatprep.subr.mxu0 0.0
  %2555 = vmatpush1.msra.mxu0 0.0
  %2556 = vmatprep.subr.mxu0 0.0
  %2557 = vmatpush1.msra.mxu0 0.0
  %2558 = vmatprep.subr.mxu0 0.0
  %2559 = vmatpush1.msra.mxu0 0.0
  %2560 = vmatprep.subr.mxu0 0.0
  %2561 = vmatpush1.msra.mxu0 0.0
  %2562 = vmatprep.subr.mxu0 0.0
  %2563 = vmatpush1.msra.mxu0 0.0
  %2564 = vmatprep.subr.mxu0 0.0
  %2565 = vmatpush1.msra.mxu0 0.0
  %2566 = vmatprep.subr.mxu0 0.0
  %2567 = vmatpush1.msra.mxu0 0.0
  %2568 = vmatprep.subr.mxu0 0.0
  %2569 = vmatpush1.msra.mxu0 0.0
  %2570 = vmatprep.subr.mxu0 0.0
  %2571 = vmatpush1.msra.mxu0 0.0
  %2572 = vmatprep.subr.mxu0 0.0
  %2573 = vmatpush1.msra.mxu0 0.0
  %2574 = vmatprep.subr.mxu0 0.0
  %2575 = vmatpush1.msra.mxu0 0.0
  %2576 = vmatprep.subr.mxu0 0.0
  %2577 = vmatpush1.msra.mxu0 0.0
  %2578 = vmatprep.subr.mxu0 0.0
  %2579 = vmatpush1.msra.mxu0 0.0
  %2580 = vmatprep.subr.mxu0 0.0
  %2581 = vmatpush1.msra.mxu0 0.0
  %2582 = vmatprep.subr.mxu0 0.0
  %2583 = vmatpush1.msra.mxu0 %v2471
  %2584 = vmatprep.subr.mxu0 0.0
  %2585 = vmatpush2.msra.mxu0 0.0
  %2586 = vmatprep.subr.mxu0 0.0
  %2587 = vmatpush2.msra.mxu0 0.0
  %2588 = vmatprep.subr.mxu0 0.0
  %2589 = vmatpush2.msra.mxu0 0.0
  %2590 = vmatprep.subr.mxu0 0.0
  %2591 = vmatpush2.msra.mxu0 0.0
  %2592 = vmatprep.subr.mxu0 0.0
  %2593 = vmatpush2.msra.mxu0 0.0
  %2594 = vmatprep.subr.mxu0 0.0
  %2595 = vmatpush2.msra.mxu0 0.0
  %2596 = vmatprep.subr.mxu0 0.0
  %2597 = vmatpush2.msra.mxu0 0.0
  %2598 = vmatprep.subr.mxu0 0.0
  %2599 = vmatpush2.msra.mxu0 0.0
  %2600 = vmatprep.subr.mxu0 0.0
  %2601 = vmatpush2.msra.mxu0 0.0
  %2602 = vmatprep.subr.mxu0 0.0
  %2603 = vmatpush2.msra.mxu0 0.0
  %2604 = vmatprep.subr.mxu0 0.0
  %2605 = vmatpush2.msra.mxu0 0.0
  %2606 = vmatprep.subr.mxu0 0.0
  %2607 = vmatpush2.msra.mxu0 0.0
  %2608 = vmatprep.subr.mxu0 0.0
  %2609 = vmatpush2.msra.mxu0 0.0
  %2610 = vmatprep.subr.mxu0 0.0
  %2611 = vmatpush2.msra.mxu0 0.0
  %2612 = vmatprep.subr.mxu0 0.0
  %2613 = vmatpush2.msra.mxu0 0.0
  %2614 = vmatprep.subr.mxu0 0.0
  %2615 = vmatpush2.msra.mxu0 0.0
  %2616 = vmatprep.mubr.f32.mxu0 0.0
  %2617 = vmatmul.mubr.f32.gmra.mxu0 %v2505
  %v2618 = vpop.f32.mrf.mxu0
  %v2619 = vadd.f32 0.0, %v2618
  %v2620 = vpop.f32.mrf.mxu0
  %2621 = vmatprep.mubr.f32.mxu0 0.0
  %2622 = vmatmul.mubr.f32.gmra.mxu0 %v2508
  %v2623 = vpop.f32.mrf.mxu0
  %v2624 = vadd.f32 0.0, %v2623
  %v2625 = vpop.f32.mrf.mxu0
  %2626 = vmatprep.mubr.f32.mxu0 0.0
  %2627 = vmatmul.mubr.f32.gmra.mxu0 %v2511
  %v2628 = vpop.f32.mrf.mxu0
  %v2629 = vadd.f32 0.0, %v2628
  %v2630 = vpop.f32.mrf.mxu0
  %2631 = vmatprep.mubr.f32.mxu0 0.0
  %2632 = vmatmul.mubr.f32.gmra.mxu0 %v2514
  %v2633 = vpop.f32.mrf.mxu0
  %v2634 = vadd.f32 0.0, %v2633
  %v2635 = vpop.f32.mrf.mxu0
  %2636 = vmatprep.mubr.f32.mxu0 0.0
  %2637 = vmatmul.mubr.f32.gmra.mxu0 %v2517
  %v2638 = vpop.f32.mrf.mxu0
  %v2639 = vadd.f32 0.0, %v2638
  %v2640 = vpop.f32.mrf.mxu0
  %2641 = vmatprep.mubr.f32.mxu0 0.0
  %2642 = vmatmul.mubr.f32.gmra.mxu0 %v2520
  %v2643 = vpop.f32.mrf.mxu0
  %v2644 = vadd.f32 0.0, %v2643
  %v2645 = vpop.f32.mrf.mxu0
  %2646 = vmatprep.mubr.f32.mxu0 0.0
  %2647 = vmatmul.mubr.f32.gmra.mxu0 %v2523
  %v2648 = vpop.f32.mrf.mxu0
  %v2649 = vadd.f32 0.0, %v2648
  %v2650 = vpop.f32.mrf.mxu0
  %2651 = vmatprep.mubr.f32.mxu0 0.0
  %2652 = vmatmul.mubr.f32.gmra.mxu0 %v2526
  %v2653 = vpop.f32.mrf.mxu0
  %v2654 = vadd.f32 0.0, %v2653
  %v2655 = vpop.f32.mrf.mxu0
  %2656 = vmatprep.mubr.f32.mxu0 0.0
  %2657 = vmatmul.mubr.f32.gmra.mxu0 %v2529
  %v2658 = vpop.f32.mrf.mxu0
  %v2659 = vadd.f32 0.0, %v2658
  %v2660 = vpop.f32.mrf.mxu0
  %2661 = vmatprep.mubr.f32.mxu0 0.0
  %2662 = vmatmul.mubr.f32.gmra.mxu0 %v2532
  %v2663 = vpop.f32.mrf.mxu0
  %v2664 = vadd.f32 0.0, %v2663
  %v2665 = vpop.f32.mrf.mxu0
  %2666 = vmatprep.mubr.f32.mxu0 0.0
  %2667 = vmatmul.mubr.f32.gmra.mxu0 %v2535
  %v2668 = vpop.f32.mrf.mxu0
  %v2669 = vadd.f32 0.0, %v2668
  %v2670 = vpop.f32.mrf.mxu0
  %2671 = vmatprep.mubr.f32.mxu0 0.0
  %2672 = vmatmul.mubr.f32.gmra.mxu0 %v2538
  %v2673 = vpop.f32.mrf.mxu0
  %v2674 = vadd.f32 0.0, %v2673
  %v2675 = vpop.f32.mrf.mxu0
  %2676 = vmatprep.mubr.f32.mxu0 0.0
  %2677 = vmatmul.mubr.f32.gmra.mxu0 %v2541
  %v2678 = vpop.f32.mrf.mxu0
  %v2679 = vadd.f32 0.0, %v2678
  %v2680 = vpop.f32.mrf.mxu0
  %2681 = vmatprep.mubr.f32.mxu0 0.0
  %2682 = vmatmul.mubr.f32.gmra.mxu0 %v2544
  %v2683 = vpop.f32.mrf.mxu0
  %v2684 = vadd.f32 0.0, %v2683
  %v2685 = vpop.f32.mrf.mxu0
  %2686 = vmatprep.mubr.f32.mxu0 0.0
  %2687 = vmatmul.mubr.f32.gmra.mxu0 %v2547
  %v2688 = vpop.f32.mrf.mxu0
  %v2689 = vadd.f32 0.0, %v2688
  %v2690 = vpop.f32.mrf.mxu0
  %2691 = vmatprep.mubr.f32.mxu0 0.0
  %2692 = vmatmul.mubr.f32.gmra.mxu0 %v2550
  %v2693 = vpop.f32.mrf.mxu0
  %v2694 = vadd.f32 0.0, %v2693
  %v2695 = vpop.f32.mrf.mxu0
  %2696 = vdwg.mxu0
  %v2697 = vmul.f32 %v2619, %v2431
  %v2698 = vmul.f32 %v2624, %v2431
  %v2699 = vmul.f32 %v2629, %v2431
  %v2700 = vmul.f32 %v2634, %v2431
  %v2701 = vmul.f32 %v2639, %v2431
  %v2702 = vmul.f32 %v2644, %v2431
  %v2703 = vmul.f32 %v2649, %v2431
  %v2704 = vmul.f32 %v2654, %v2431
  %v2705 = vmul.f32 %v2659, %v2431
  %v2706 = vmul.f32 %v2664, %v2431
  %v2707 = vmul.f32 %v2669, %v2431
  %v2708 = vmul.f32 %v2674, %v2431
  %v2709 = vmul.f32 %v2679, %v2431
  %v2710 = vmul.f32 %v2684, %v2431
  %v2711 = vmul.f32 %v2689, %v2431
  %v2712 = vmul.f32 %v2694, %v2431
  %s2713 = scalar_lea.vmem %s4, 128
  %2714 = vst [vmem:[%s2713] sm:$0xff] %v2697
  %2715 = vst [vmem:[%s2713 + $0x8] sm:$0xff] %v2698
  %2716 = vst [vmem:[%s2713 + $0x10] sm:$0xff] %v2699
  %2717 = vst [vmem:[%s2713 + $0x18] sm:$0xff] %v2700
  %2718 = vst [vmem:[%s2713 + $0x20] sm:$0xff] %v2701
  %2719 = vst [vmem:[%s2713 + $0x28] sm:$0xff] %v2702
  %2720 = vst [vmem:[%s2713 + $0x30] sm:$0xff] %v2703
  %2721 = vst [vmem:[%s2713 + $0x38] sm:$0xff] %v2704
  %2722 = vst [vmem:[%s2713 + $0x40] sm:$0xff] %v2705
  %2723 = vst [vmem:[%s2713 + $0x48] sm:$0xff] %v2706
  %2724 = vst [vmem:[%s2713 + $0x50] sm:$0xff] %v2707
  %2725 = vst [vmem:[%s2713 + $0x58] sm:$0xff] %v2708
  %2726 = vst [vmem:[%s2713 + $0x60] sm:$0xff] %v2709
  %2727 = vst [vmem:[%s2713 + $0x68] sm:$0xff] %v2710
  %2728 = vst [vmem:[%s2713 + $0x70] sm:$0xff] %v2711
  %2729 = vst [vmem:[%s2713 + $0x78] sm:$0xff] %v2712
  %vm2730 = vcmask 1040384
  %v2731 = vsel %vm2730, %v2203, %v2470
  %2732 = vst [vmem:[%s3] sm:$0x3] %v2731
  // Predicated region
  $region14: #{fvd_loss.2} parent=0 // pred_check
    _
  $region15: #{fvd_loss.2} parent=0 // pred_check_branch
    %2734 = sbr.rel (0) target = $region17
  $region16: #{fvd_loss.2} parent=0 // pred_region
    _
  $region17: #{fvd_loss.2} parent=0 // pred_fallthru
    _
  // Predicated region
  $region18: #{fvd_loss.2} parent=0 // pred_check
    _
  $region19: #{fvd_loss.2} parent=0 // pred_check_branch
    %2736 = sbr.rel (0) target = $region21
  $region20: #{fvd_loss.2} parent=0 // pred_region
    _
  $region21: #{fvd_loss.2} parent=0 // pred_fallthru
    _
  // Predicated region
  $region22: #{fvd_loss.2} parent=0 // pred_check
    _
  $region23: #{fvd_loss.2} parent=0 // pred_check_branch
    %2738 = sbr.rel (0) target = $region25
  $region24: #{fvd_loss.2} parent=0 // pred_region
    _
  $region25: #{fvd_loss.2} parent=0 // pred_fallthru
    _
  // Predicated region
  $region26: #{fvd_loss.2} parent=0 // pred_check
    _
  $region27: #{fvd_loss.2} parent=0 // pred_check_branch
    %2740 = sbr.rel (0) target = $region29
  $region28: #{fvd_loss.2} parent=0 // pred_region
    _
  $region29: #{fvd_loss.2} parent=0 // pred_fallthru
    _

</llo_original>
